<compile_context>
chip_gen: v7x
topology: tpu7x:2x2x1
jax: 0.10.0
libtpu: 0.0.40
codegen_flags: <defaults>
</compile_context>

<pallas_src>
import math

import jax
import jax.numpy as jnp
from jax.experimental import pallas as pl
from jax.experimental.pallas import tpu as pltpu


# ---------------------------------------------------------------------------
# In-kernel helpers
# ---------------------------------------------------------------------------
def _layernorm(x, g, b, eps=1e-12):
    mu = jnp.mean(x, axis=-1, keepdims=True)
    d = x - mu
    var = jnp.mean(d * d, axis=-1, keepdims=True)
    return d * jax.lax.rsqrt(var + eps) * g + b


# ---------------------------------------------------------------------------
# Fused encoder kernel: grid=(L,), activation resident in VMEM scratch
# ---------------------------------------------------------------------------
def _make_encoder_kernel(B, S, n_heads, Dh):
    H = n_heads * Dh
    scale = 1.0 / math.sqrt(Dh)

    def kernel(x_ref, mask_ref, embg_ref, embb_ref,
               wqkv_ref, bqkv_ref, wo_ref, bo_ref, ln1g_ref, ln1b_ref,
               w1_ref, b1_ref, w2_ref, b2_ref, ln2g_ref, ln2b_ref,
               o_ref, x_scr):
        l = pl.program_id(0)
        R = B * S

        # Layer 0: load embeddings and apply the embedding LayerNorm once.
        @pl.when(l == 0)
        def _():
            x_scr[...] = _layernorm(x_ref[...], embg_ref[...], embb_ref[...])

        x = x_scr[...]                                           # (R, H) f32

        # ---- fused QKV projection -------------------------------------------------
        qkv = (jnp.dot(x, wqkv_ref[...], preferred_element_type=jnp.float32)
               + bqkv_ref[...])                                  # (R, 3H)

        mask = mask_ref[...]                                     # (B, S) additive bias
        wo = wo_ref[...]                                         # (H, H)

        # ---- multi-head attention, fused output projection ------------------------
        attn = jnp.zeros((R, H), jnp.float32)
        for h in range(n_heads):                                 # static unroll
            qh = qkv[:, h * Dh:(h + 1) * Dh].reshape(B, S, Dh)
            kh = qkv[:, H + h * Dh:H + (h + 1) * Dh].reshape(B, S, Dh)
            vh = qkv[:, 2 * H + h * Dh:2 * H + (h + 1) * Dh].reshape(B, S, Dh)

            s = jnp.einsum("bqd,bkd->bqk", qh, kh,
                           preferred_element_type=jnp.float32) * scale
            s = s + mask[:, None, :]                             # (B, 1, S) broadcast
            s = s - jnp.max(s, axis=-1, keepdims=True)
            p = jnp.exp(s)
            p = p * pl.reciprocal(jnp.sum(p, axis=-1, keepdims=True), approx=True)
            ctx = jnp.einsum("bqk,bkd->bqd", p, vh,
                             preferred_element_type=jnp.float32)  # (B, S, Dh)

            # per-head output projection (avoids lane concat): ctx_h @ wo[h*Dh:(h+1)*Dh]
            attn = attn + jnp.dot(ctx.reshape(R, Dh),
                                  wo[h * Dh:(h + 1) * Dh, :],
                                  preferred_element_type=jnp.float32)

        # ---- residual + LayerNorm 1 (fused epilogue) -------------------------------
        x = _layernorm(attn + bo_ref[...] + x, ln1g_ref[...], ln1b_ref[...])

        # ---- FFN with fused bias + GELU, then residual + LayerNorm 2 ---------------
        ffn = (jnp.dot(x, w1_ref[...], preferred_element_type=jnp.float32)
               + b1_ref[...])
        # TODO(synk): HF BERT default is exact erf-based GELU; tanh approximation
        # is used for a robust EUP lowering on TPU.
        ffn = jax.nn.gelu(ffn, approximate=True)
        ffn = (jnp.dot(ffn, w2_ref[...], preferred_element_type=jnp.float32)
               + b2_ref[...])
        x = _layernorm(ffn + x, ln2g_ref[...], ln2b_ref[...])

        x_scr[...] = x

        @pl.when(l == pl.num_programs(0) - 1)
        def _():
            o_ref[...] = x.astype(o_ref.dtype)

    return kernel


def encoder_pallas(x_emb, mask_bias, params, n_heads):
    """x_emb:(B*S,H) raw embeddings; mask_bias:(B,S) additive; returns (B*S,H)."""
    R, H = x_emb.shape
    B, S = mask_bias.shape
    Dh = H // n_heads
    L = params["wqkv"].shape[0]
    I = params["w1"].shape[-1]

    def rep(shape):                     # same block every layer iteration
        return pl.BlockSpec(shape, lambda l, _n=len(shape): (0,) * _n)

    def per_layer(shape):               # leading layer dim squeezed out
        nd = len(shape)
        return pl.BlockSpec((None,) + tuple(shape[1:]),
                            lambda l, _nd=nd: (l,) + (0,) * (_nd - 1))

    kernel = _make_encoder_kernel(B, S, n_heads, Dh)

    return pl.pallas_call(
        kernel,
        out_shape=jax.ShapeDtypeStruct((R, H), jnp.float32),
        grid=(L,),
        in_specs=[
            rep((R, H)),                         # x_emb
            rep((B, S)),                         # mask bias
            rep((1, H)), rep((1, H)),            # emb LN gamma/beta
            per_layer((L, H, 3 * H)), per_layer((L, 1, 3 * H)),   # wqkv, bqkv
            per_layer((L, H, H)), per_layer((L, 1, H)),           # wo, bo
            per_layer((L, 1, H)), per_layer((L, 1, H)),           # ln1 g/b
            per_layer((L, H, I)), per_layer((L, 1, I)),           # w1, b1
            per_layer((L, I, H)), per_layer((L, 1, H)),           # w2, b2
            per_layer((L, 1, H)), per_layer((L, 1, H)),           # ln2 g/b
        ],
        out_specs=rep((R, H)),
        scratch_shapes=[pltpu.VMEM((R, H), jnp.float32)],
        compiler_params=pltpu.CompilerParams(dimension_semantics=("arbitrary",)),
    )(x_emb, mask_bias, params["emb_ln_g"], params["emb_ln_b"],
      params["wqkv"], params["bqkv"], params["wo"], params["bo"],
      params["ln1_g"], params["ln1_b"],
      params["w1"], params["b1"], params["w2"], params["b2"],
      params["ln2_g"], params["ln2_b"])


# ---------------------------------------------------------------------------
# Fused head kernel: pooler (tanh) + classifier + BCEWithLogits + sigmoid
# ---------------------------------------------------------------------------
def head_pallas(cls, pool_w, pool_b, cls_w, cls_b, labels2d):
    B, H = cls.shape
    N = cls_w.shape[1]

    def kernel(c_ref, pw_ref, pb_ref, cw_ref, cb_ref, y_ref, loss_ref, p_ref):
        pooled = jnp.tanh(
            jnp.dot(c_ref[...], pw_ref[...], preferred_element_type=jnp.float32)
            + pb_ref[...])
        z = (jnp.dot(pooled, cw_ref[...], preferred_element_type=jnp.float32)
             + cb_ref[...])                                      # (B, N)
        y = y_ref[...]
        # numerically stable BCE with logits (matches torch.nn.BCEWithLogitsLoss)
        loss_el = jnp.maximum(z, 0.0) - z * y + jnp.log1p(jnp.exp(-jnp.abs(z)))
        loss_ref[...] = jnp.sum(loss_el, keepdims=True) / loss_el.size
        p_ref[...] = 1.0 / (1.0 + jnp.exp(-z))

    loss, probs = pl.pallas_call(
        kernel,
        out_shape=(jax.ShapeDtypeStruct((1, 1), jnp.float32),
                   jax.ShapeDtypeStruct((B, N), jnp.float32)),
        grid=(1,),
        in_specs=[
            pl.BlockSpec((B, H), lambda i: (0, 0)),
            pl.BlockSpec((H, H), lambda i: (0, 0)),
            pl.BlockSpec((1, H), lambda i: (0, 0)),
            pl.BlockSpec((H, N), lambda i: (0, 0)),
            pl.BlockSpec((1, N), lambda i: (0, 0)),
            pl.BlockSpec((B, N), lambda i: (0, 0)),
        ],
        out_specs=(pl.BlockSpec((1, 1), lambda i: (0, 0)),
                   pl.BlockSpec((B, N), lambda i: (0, 0))),
    )(cls, pool_w, pool_b, cls_w, cls_b, labels2d)
    return loss[0, 0], probs


# ---------------------------------------------------------------------------
# Parameters (deterministic synthetic init, BERT-style 0.02 normal), pre-stacked
# per layer and pre-shaped for the kernels (no per-call reshapes).
# ---------------------------------------------------------------------------
def init_params(key, *, vocab=100, max_pos=16, type_vocab=2, hidden=32,
                layers=2, inter=64, num_labels=1):
    H, I = hidden, inter
    ks = iter(jax.random.split(key, 5 + layers * 6))
    nrm = lambda k, s: 0.02 * jax.random.normal(k, s, jnp.float32)

    p = dict(
        word_emb=nrm(next(ks), (vocab, H)),
        pos_emb=nrm(next(ks), (max_pos, H)),
        type_emb=nrm(next(ks), (type_vocab, H)),
        emb_ln_g=jnp.ones((1, H), jnp.float32),
        emb_ln_b=jnp.zeros((1, H), jnp.float32),
        pool_w=nrm(next(ks), (H, H)),
        pool_b=jnp.zeros((1, H), jnp.float32),
        cls_w=nrm(next(ks), (H, num_labels)),
        cls_b=jnp.zeros((1, num_labels), jnp.float32),
    )
    wqkv, wo, w1, w2 = [], [], [], []
    for _ in range(layers):
        wq, wk, wv = nrm(next(ks), (H, H)), nrm(next(ks), (H, H)), nrm(next(ks), (H, H))
        wqkv.append(jnp.concatenate([wq, wk, wv], axis=1))       # (H, 3H)
        wo.append(nrm(next(ks), (H, H)))
        w1.append(nrm(next(ks), (H, I)))
        w2.append(nrm(next(ks), (I, H)))
    p.update(
        wqkv=jnp.stack(wqkv),                                    # (L, H, 3H)
        bqkv=jnp.zeros((layers, 1, 3 * H), jnp.float32),
        wo=jnp.stack(wo), bo=jnp.zeros((layers, 1, H), jnp.float32),
        ln1_g=jnp.ones((layers, 1, H), jnp.float32),
        ln1_b=jnp.zeros((layers, 1, H), jnp.float32),
        w1=jnp.stack(w1), b1=jnp.zeros((layers, 1, I), jnp.float32),
        w2=jnp.stack(w2), b2=jnp.zeros((layers, 1, H), jnp.float32),
        ln2_g=jnp.ones((layers, 1, H), jnp.float32),
        ln2_b=jnp.zeros((layers, 1, H), jnp.float32),
    )
    return p


# ---------------------------------------------------------------------------
# Forward pass == BertClassifier.forward
# ---------------------------------------------------------------------------
def bert_classifier_forward(params, input_ids, attention_mask, labels, n_heads):
    B, S = input_ids.shape
    H = params["word_emb"].shape[1]

    # Embeddings (gather is plain-JAX glue; token_type_ids implicitly all-zero).
    pos_ids = jnp.arange(S)
    x = (jnp.take(params["word_emb"], input_ids, axis=0)
         + params["pos_emb"][pos_ids][None, :, :]
         + params["type_emb"][0][None, None, :])
    x = x.reshape(B * S, H).astype(jnp.float32)

    # additive attention mask bias, shape (B, S)
    mask_bias = (1.0 - attention_mask.astype(jnp.float32)) * -1e9

    # whole encoder in one pallas_call (activation resident in VMEM across layers)
    x = encoder_pallas(x, mask_bias, params, n_heads)

    # Pooler(tanh) + classifier + BCEWithLogits + sigmoid (one fused kernel).
    cls = x.reshape(B, S, H)[:, 0, :]                            # (B, H) glue slice
    labels_2d = labels.reshape(B, 1).astype(jnp.float32)
    loss, probs = head_pallas(cls, params["pool_w"], params["pool_b"],
                              params["cls_w"], params["cls_b"], labels_2d)
    return dict(loss=loss, logits=probs.reshape(B))


# ---------------------------------------------------------------------------
if __name__ == "__main__":
    B, S, H, nH, L, INTER, VOCAB = 2, 8, 32, 4, 2, 64, 100

    key = jax.random.PRNGKey(0)
    kp, kid = jax.random.split(key)
    params = init_params(kp, vocab=VOCAB, max_pos=16, hidden=H, layers=L, inter=INTER)

    input_ids = jax.random.randint(kid, (B, S), 0, VOCAB, dtype=jnp.int32)
    attention_mask = jnp.array([[1] * S, [1] * (S - 2) + [0] * 2], dtype=jnp.int32)
    labels = jnp.array([1.0, 0.0], dtype=jnp.float32)

    fwd = jax.jit(bert_classifier_forward, static_argnames=("n_heads",))
    out = fwd(params, input_ids, attention_mask, labels, n_heads=nH)
    jax.block_until_ready(out)

    assert out["loss"].shape == () and out["logits"].shape == (B,)
    assert bool(jnp.isfinite(out["loss"])) and bool(jnp.all(jnp.isfinite(out["logits"])))
    print("KERNEL_OK")
</pallas_src>

<mosaic_0001>
module attributes {stable_mosaic.version = 11 : i64} {
  func.func @kernel(%arg0: i32, %arg1: memref<2x32xf32, #tpu.memory_space<vmem>>, %arg2: memref<32x32xf32, #tpu.memory_space<vmem>>, %arg3: memref<1x32xf32, #tpu.memory_space<vmem>>, %arg4: memref<32x1xf32, #tpu.memory_space<vmem>>, %arg5: memref<1x1xf32, #tpu.memory_space<vmem>>, %arg6: memref<2x1xf32, #tpu.memory_space<vmem>>, %arg7: memref<1x1xf32, #tpu.memory_space<vmem>>, %arg8: memref<2x1xf32, #tpu.memory_space<vmem>>) attributes {dimension_semantics = [#tpu.dimension_semantics<arbitrary>], iteration_bounds = array<i64: 1>, scalar_prefetch = 0 : i64, scratch_operands = 0 : i64, tpu.core_type = #tpu.core_type<tc>, window_params = [{pipeline_mode = #tpu.pipeline_mode<synchronous>, transform_indices = @transform_0, window_bounds = array<i64: 2, 32>}, {pipeline_mode = #tpu.pipeline_mode<synchronous>, transform_indices = @transform_1, window_bounds = array<i64: 32, 32>}, {pipeline_mode = #tpu.pipeline_mode<synchronous>, transform_indices = @transform_2, window_bounds = array<i64: 1, 32>}, {pipeline_mode = #tpu.pipeline_mode<synchronous>, transform_indices = @transform_3, window_bounds = array<i64: 32, 1>}, {pipeline_mode = #tpu.pipeline_mode<synchronous>, transform_indices = @transform_4, window_bounds = array<i64: 1, 1>}, {pipeline_mode = #tpu.pipeline_mode<synchronous>, transform_indices = @transform_5, window_bounds = array<i64: 2, 1>}, {pipeline_mode = #tpu.pipeline_mode<synchronous>, transform_indices = @transform_6, window_bounds = array<i64: 1, 1>}, {pipeline_mode = #tpu.pipeline_mode<synchronous>, transform_indices = @transform_7, window_bounds = array<i64: 2, 1>}]} {
    %c0 = arith.constant 0 : index
    %c0_0 = arith.constant 0 : index
    %0 = vector.load %arg1[%c0, %c0_0] : memref<2x32xf32, #tpu.memory_space<vmem>>, vector<2x32xf32>
    %c0_1 = arith.constant 0 : index
    %c0_2 = arith.constant 0 : index
    %1 = vector.load %arg2[%c0_1, %c0_2] : memref<32x32xf32, #tpu.memory_space<vmem>>, vector<32x32xf32>
    %cst = arith.constant dense<0.000000e+00> : vector<2x32xf32>
    %2 = tpu.matmul %0, %1, %cst {dimension_numbers = #tpu.dot_dimension_numbers<[1], [0], [0], [1], [0, 0, 1, 1], [], []>} : vector<2x32xf32>, vector<32x32xf32>, vector<2x32xf32> -> vector<2x32xf32>
    %c0_3 = arith.constant 0 : index
    %c0_4 = arith.constant 0 : index
    %3 = vector.load %arg3[%c0_3, %c0_4] : memref<1x32xf32, #tpu.memory_space<vmem>>, vector<1x32xf32>
    %4 = vector.broadcast %3 : vector<1x32xf32> to vector<2x32xf32>
    %5 = arith.addf %2, %4 : vector<2x32xf32>
    %6 = math.tanh %5 : vector<2x32xf32>
    %c0_5 = arith.constant 0 : index
    %c0_6 = arith.constant 0 : index
    %7 = vector.load %arg4[%c0_5, %c0_6] : memref<32x1xf32, #tpu.memory_space<vmem>>, vector<32x1xf32>
    %cst_7 = arith.constant dense<0.000000e+00> : vector<2x1xf32>
    %8 = tpu.matmul %6, %7, %cst_7 {dimension_numbers = #tpu.dot_dimension_numbers<[1], [0], [0], [1], [0, 0, 1, 1], [], []>} : vector<2x32xf32>, vector<32x1xf32>, vector<2x1xf32> -> vector<2x1xf32>
    %c0_8 = arith.constant 0 : index
    %c0_9 = arith.constant 0 : index
    %9 = vector.load %arg5[%c0_8, %c0_9] : memref<1x1xf32, #tpu.memory_space<vmem>>, vector<1x1xf32>
    %10 = vector.broadcast %9 : vector<1x1xf32> to vector<2x1xf32>
    %11 = arith.addf %8, %10 : vector<2x1xf32>
    %c0_10 = arith.constant 0 : index
    %c0_11 = arith.constant 0 : index
    %12 = vector.load %arg6[%c0_10, %c0_11] : memref<2x1xf32, #tpu.memory_space<vmem>>, vector<2x1xf32>
    %cst_12 = arith.constant 0.000000e+00 : f32
    %13 = vector.broadcast %cst_12 : f32 to vector<2x1xf32>
    %14 = arith.maximumf %11, %13 : vector<2x1xf32>
    %15 = arith.mulf %11, %12 : vector<2x1xf32>
    %16 = arith.subf %14, %15 : vector<2x1xf32>
    %17 = math.absf %11 : vector<2x1xf32>
    %cst_13 = arith.constant 0.000000e+00 : f32
    %18 = vector.broadcast %cst_13 : f32 to vector<2x1xf32>
    %19 = arith.subf %18, %17 : vector<2x1xf32>
    %20 = math.exp %19 : vector<2x1xf32>
    %21 = math.log1p %20 : vector<2x1xf32>
    %22 = arith.addf %16, %21 : vector<2x1xf32>
    %23 = vector.shape_cast %22 : vector<2x1xf32> to vector<1x2x1xf32>
    %cst_14 = arith.constant dense<0.000000e+00> : vector<1xf32>
    %24 = vector.multi_reduction <add>, %23, %cst_14 [1, 2] : vector<1x2x1xf32> to vector<1xf32>
    %25 = vector.shape_cast %24 : vector<1xf32> to vector<1x1x1xf32>
    %26 = vector.extract %25[0, 0, 0] : f32 from vector<1x1x1xf32>
    %27 = vector.broadcast %26 : f32 to vector<1x1xf32>
    %cst_15 = arith.constant 2.000000e+00 : f32
    %28 = vector.broadcast %cst_15 : f32 to vector<1x1xf32>
    %29 = arith.divf %27, %28 : vector<1x1xf32>
    %c0_16 = arith.constant 0 : index
    %c0_17 = arith.constant 0 : index
    %30 = vector.load %arg7[%c0_16, %c0_17] : memref<1x1xf32, #tpu.memory_space<vmem>>, vector<1x1xf32>
    tpu.vector_store %arg7[%c0_16, %c0_17], %29 {strides = array<i32>} : memref<1x1xf32, #tpu.memory_space<vmem>>, vector<1x1xf32>,
    %cst_18 = arith.constant 0.000000e+00 : f32
    %31 = vector.broadcast %cst_18 : f32 to vector<2x1xf32>
    %32 = arith.subf %31, %11 : vector<2x1xf32>
    %33 = math.exp %32 : vector<2x1xf32>
    %cst_19 = arith.constant 1.000000e+00 : f32
    %34 = vector.broadcast %cst_19 : f32 to vector<2x1xf32>
    %35 = arith.addf %34, %33 : vector<2x1xf32>
    %cst_20 = arith.constant 1.000000e+00 : f32
    %36 = vector.broadcast %cst_20 : f32 to vector<2x1xf32>
    %37 = arith.divf %36, %35 : vector<2x1xf32>
    %c0_21 = arith.constant 0 : index
    %c0_22 = arith.constant 0 : index
    %38 = vector.load %arg8[%c0_21, %c0_22] : memref<2x1xf32, #tpu.memory_space<vmem>>, vector<2x1xf32>
    tpu.vector_store %arg8[%c0_21, %c0_22], %37 {strides = array<i32>} : memref<2x1xf32, #tpu.memory_space<vmem>>, vector<2x1xf32>,
    return
  }
  func.func @transform_0(%arg0: i32) -> (i32, i32) {
    %c0_i32 = arith.constant 0 : i32
    %c0_i32_0 = arith.constant 0 : i32
    %c0_i32_1 = arith.constant 0 : i32
    return %c0_i32, %c0_i32_0 : i32, i32
  }
  func.func @transform_1(%arg0: i32) -> (i32, i32) {
    %c0_i32 = arith.constant 0 : i32
    %c0_i32_0 = arith.constant 0 : i32
    %c0_i32_1 = arith.constant 0 : i32
    return %c0_i32, %c0_i32_0 : i32, i32
  }
  func.func @transform_2(%arg0: i32) -> (i32, i32) {
    %c0_i32 = arith.constant 0 : i32
    %c0_i32_0 = arith.constant 0 : i32
    %c0_i32_1 = arith.constant 0 : i32
    return %c0_i32, %c0_i32_0 : i32, i32
  }
  func.func @transform_3(%arg0: i32) -> (i32, i32) {
    %c0_i32 = arith.constant 0 : i32
    %c0_i32_0 = arith.constant 0 : i32
    %c0_i32_1 = arith.constant 0 : i32
    return %c0_i32, %c0_i32_0 : i32, i32
  }
  func.func @transform_4(%arg0: i32) -> (i32, i32) {
    %c0_i32 = arith.constant 0 : i32
    %c0_i32_0 = arith.constant 0 : i32
    %c0_i32_1 = arith.constant 0 : i32
    return %c0_i32, %c0_i32_0 : i32, i32
  }
  func.func @transform_5(%arg0: i32) -> (i32, i32) {
    %c0_i32 = arith.constant 0 : i32
    %c0_i32_0 = arith.constant 0 : i32
    %c0_i32_1 = arith.constant 0 : i32
    return %c0_i32, %c0_i32_0 : i32, i32
  }
  func.func @transform_6(%arg0: i32) -> (i32, i32) {
    %c0_i32 = arith.constant 0 : i32
    %c0_i32_0 = arith.constant 0 : i32
    %c0_i32_1 = arith.constant 0 : i32
    return %c0_i32, %c0_i32_0 : i32, i32
  }
  func.func @transform_7(%arg0: i32) -> (i32, i32) {
    %c0_i32 = arith.constant 0 : i32
    %c0_i32_0 = arith.constant 0 : i32
    %c0_i32_1 = arith.constant 0 : i32
    return %c0_i32, %c0_i32_0 : i32, i32
  }
}

module attributes {stable_mosaic.version = 11 : i64} {
  func.func @kernel(%arg0: i32, %arg1: memref<16x32xf32, #tpu.memory_space<vmem>>, %arg2: memref<2x8xf32, #tpu.memory_space<vmem>>, %arg3: memref<1x32xf32, #tpu.memory_space<vmem>>, %arg4: memref<1x32xf32, #tpu.memory_space<vmem>>, %arg5: memref<1x32x96xf32, #tpu.memory_space<vmem>>, %arg6: memref<1x1x96xf32, #tpu.memory_space<vmem>>, %arg7: memref<1x32x32xf32, #tpu.memory_space<vmem>>, %arg8: memref<1x1x32xf32, #tpu.memory_space<vmem>>, %arg9: memref<1x1x32xf32, #tpu.memory_space<vmem>>, %arg10: memref<1x1x32xf32, #tpu.memory_space<vmem>>, %arg11: memref<1x32x64xf32, #tpu.memory_space<vmem>>, %arg12: memref<1x1x64xf32, #tpu.memory_space<vmem>>, %arg13: memref<1x64x32xf32, #tpu.memory_space<vmem>>, %arg14: memref<1x1x32xf32, #tpu.memory_space<vmem>>, %arg15: memref<1x1x32xf32, #tpu.memory_space<vmem>>, %arg16: memref<1x1x32xf32, #tpu.memory_space<vmem>>, %arg17: memref<16x32xf32, #tpu.memory_space<vmem>>, %arg18: memref<16x32xf32, #tpu.memory_space<vmem>>) attributes {dimension_semantics = [#tpu.dimension_semantics<arbitrary>], iteration_bounds = array<i64: 2>, scalar_prefetch = 0 : i64, scratch_operands = 1 : i64, tpu.core_type = #tpu.core_type<tc>, window_params = [{pipeline_mode = #tpu.pipeline_mode<synchronous>, transform_indices = @transform_0, window_bounds = array<i64: 16, 32>}, {pipeline_mode = #tpu.pipeline_mode<synchronous>, transform_indices = @transform_1, window_bounds = array<i64: 2, 8>}, {pipeline_mode = #tpu.pipeline_mode<synchronous>, transform_indices = @transform_2, window_bounds = array<i64: 1, 32>}, {pipeline_mode = #tpu.pipeline_mode<synchronous>, transform_indices = @transform_3, window_bounds = array<i64: 1, 32>}, {transform_indices = @transform_4, window_bounds = array<i64: 1, 32, 96>}, {transform_indices = @transform_5, window_bounds = array<i64: 1, 1, 96>}, {transform_indices = @transform_6, window_bounds = array<i64: 1, 32, 32>}, {transform_indices = @transform_7, window_bounds = array<i64: 1, 1, 32>}, {transform_indices = @transform_8, window_bounds = array<i64: 1, 1, 32>}, {transform_indices = @transform_9, window_bounds = array<i64: 1, 1, 32>}, {transform_indices = @transform_10, window_bounds = array<i64: 1, 32, 64>}, {transform_indices = @transform_11, window_bounds = array<i64: 1, 1, 64>}, {transform_indices = @transform_12, window_bounds = array<i64: 1, 64, 32>}, {transform_indices = @transform_13, window_bounds = array<i64: 1, 1, 32>}, {transform_indices = @transform_14, window_bounds = array<i64: 1, 1, 32>}, {transform_indices = @transform_15, window_bounds = array<i64: 1, 1, 32>}, {pipeline_mode = #tpu.pipeline_mode<synchronous>, transform_indices = @transform_16, window_bounds = array<i64: 16, 32>}]} {
    %c0_i32 = arith.constant 0 : i32
    %0 = arith.cmpi eq, %arg0, %c0_i32 : i32
    %1 = arith.extui %0 : i1 to i32
    %c0_i32_0 = arith.constant 0 : i32
    %2 = arith.cmpi ne, %1, %c0_i32_0 : i32
    scf.if %2 {
      %c0_84 = arith.constant 0 : index
      %c0_85 = arith.constant 0 : index
      %208 = vector.load %arg1[%c0_84, %c0_85] : memref<16x32xf32, #tpu.memory_space<vmem>>, vector<16x32xf32>
      %c0_86 = arith.constant 0 : index
      %c0_87 = arith.constant 0 : index
      %209 = vector.load %arg3[%c0_86, %c0_87] : memref<1x32xf32, #tpu.memory_space<vmem>>, vector<1x32xf32>
      %c0_88 = arith.constant 0 : index
      %c0_89 = arith.constant 0 : index
      %210 = vector.load %arg4[%c0_88, %c0_89] : memref<1x32xf32, #tpu.memory_space<vmem>>, vector<1x32xf32>
      %cst_90 = arith.constant dense<0.000000e+00> : vector<16xf32>
      %211 = vector.multi_reduction <add>, %208, %cst_90 [1] : vector<16x32xf32> to vector<16xf32>
      %212 = vector.shape_cast %211 : vector<16xf32> to vector<16x1xf32>
      %cst_91 = arith.constant 3.200000e+01 : f32
      %213 = vector.broadcast %cst_91 : f32 to vector<16x1xf32>
      %214 = arith.divf %212, %213 : vector<16x1xf32>
      %215 = vector.broadcast %214 : vector<16x1xf32> to vector<16x32xf32>
      %216 = arith.subf %208, %215 : vector<16x32xf32>
      %217 = arith.mulf %216, %216 : vector<16x32xf32>
      %cst_92 = arith.constant dense<0.000000e+00> : vector<16xf32>
      %218 = vector.multi_reduction <add>, %217, %cst_92 [1] : vector<16x32xf32> to vector<16xf32>
      %219 = vector.shape_cast %218 : vector<16xf32> to vector<16x1xf32>
      %cst_93 = arith.constant 3.200000e+01 : f32
      %220 = vector.broadcast %cst_93 : f32 to vector<16x1xf32>
      %221 = arith.divf %219, %220 : vector<16x1xf32>
      %cst_94 = arith.constant 9.99999996E-13 : f32
      %222 = vector.broadcast %cst_94 : f32 to vector<16x1xf32>
      %223 = arith.addf %221, %222 : vector<16x1xf32>
      %224 = math.rsqrt %223 : vector<16x1xf32>
      %225 = vector.broadcast %224 : vector<16x1xf32> to vector<16x32xf32>
      %226 = arith.mulf %216, %225 : vector<16x32xf32>
      %227 = vector.broadcast %209 : vector<1x32xf32> to vector<16x32xf32>
      %228 = arith.mulf %226, %227 : vector<16x32xf32>
      %229 = vector.broadcast %210 : vector<1x32xf32> to vector<16x32xf32>
      %230 = arith.addf %228, %229 : vector<16x32xf32>
      %c0_95 = arith.constant 0 : index
      %c0_96 = arith.constant 0 : index
      %231 = vector.load %arg18[%c0_95, %c0_96] : memref<16x32xf32, #tpu.memory_space<vmem>>, vector<16x32xf32>
      tpu.vector_store %arg18[%c0_95, %c0_96], %230 {strides = array<i32>} : memref<16x32xf32, #tpu.memory_space<vmem>>, vector<16x32xf32>,
    } else {
    }
    %c0 = arith.constant 0 : index
    %c0_1 = arith.constant 0 : index
    %3 = vector.load %arg18[%c0, %c0_1] : memref<16x32xf32, #tpu.memory_space<vmem>>, vector<16x32xf32>
    %c0_2 = arith.constant 0 : index
    %c0_3 = arith.constant 0 : index
    %c0_4 = arith.constant 0 : index
    %4 = vector.load %arg5[%c0_2, %c0_3, %c0_4] : memref<1x32x96xf32, #tpu.memory_space<vmem>>, vector<1x32x96xf32>
    %5 = vector.shape_cast %4 : vector<1x32x96xf32> to vector<32x96xf32>
    %cst = arith.constant dense<0.000000e+00> : vector<16x96xf32>
    %6 = tpu.matmul %3, %5, %cst {dimension_numbers = #tpu.dot_dimension_numbers<[1], [0], [0], [1], [0, 0, 1, 1], [], []>} : vector<16x32xf32>, vector<32x96xf32>, vector<16x96xf32> -> vector<16x96xf32>
    %c0_5 = arith.constant 0 : index
    %c0_6 = arith.constant 0 : index
    %c0_7 = arith.constant 0 : index
    %7 = vector.load %arg6[%c0_5, %c0_6, %c0_7] : memref<1x1x96xf32, #tpu.memory_space<vmem>>, vector<1x1x96xf32>
    %8 = vector.shape_cast %7 : vector<1x1x96xf32> to vector<1x96xf32>
    %9 = vector.broadcast %8 : vector<1x96xf32> to vector<16x96xf32>
    %10 = arith.addf %6, %9 : vector<16x96xf32>
    %c0_8 = arith.constant 0 : index
    %c0_9 = arith.constant 0 : index
    %11 = vector.load %arg2[%c0_8, %c0_9] : memref<2x8xf32, #tpu.memory_space<vmem>>, vector<2x8xf32>
    %c0_10 = arith.constant 0 : index
    %c0_11 = arith.constant 0 : index
    %c0_12 = arith.constant 0 : index
    %12 = vector.load %arg7[%c0_10, %c0_11, %c0_12] : memref<1x32x32xf32, #tpu.memory_space<vmem>>, vector<1x32x32xf32>
    %13 = vector.shape_cast %12 : vector<1x32x32xf32> to vector<32x32xf32>
    %cst_13 = arith.constant 0.000000e+00 : f32
    %14 = vector.broadcast %cst_13 : f32 to vector<16x32xf32>
    %15 = vector.extract_strided_slice %10 {offsets = [0, 0], sizes = [16, 8], strides = [1, 1]} : vector<16x96xf32> to vector<16x8xf32>
    %16 = vector.shape_cast %15 : vector<16x8xf32> to vector<2x8x8xf32>
    %17 = vector.extract_strided_slice %10 {offsets = [0, 32], sizes = [16, 8], strides = [1, 1]} : vector<16x96xf32> to vector<16x8xf32>
    %18 = vector.shape_cast %17 : vector<16x8xf32> to vector<2x8x8xf32>
    %19 = vector.extract_strided_slice %10 {offsets = [0, 64], sizes = [16, 8], strides = [1, 1]} : vector<16x96xf32> to vector<16x8xf32>
    %20 = vector.shape_cast %19 : vector<16x8xf32> to vector<2x8x8xf32>
    "tpu.trace_start"() <{level = 10 : i32, message = "bqd,bkd->bqk"}> : () -> ()
    %cst_14 = arith.constant dense<0.000000e+00> : vector<2x8x8xf32>
    %21 = tpu.matmul %16, %18, %cst_14 {dimension_numbers = #tpu.dot_dimension_numbers<[2], [2], [1], [1], [0, 0, 0, 1, 1, 1], [0], [0]>} : vector<2x8x8xf32>, vector<2x8x8xf32>, vector<2x8x8xf32> -> vector<2x8x8xf32>
    "tpu.trace_stop"() : () -> ()
    %cst_15 = arith.constant 0.353553385 : f32
    %22 = vector.broadcast %cst_15 : f32 to vector<2x8x8xf32>
    %23 = arith.mulf %21, %22 : vector<2x8x8xf32>
    %24 = vector.shape_cast %11 : vector<2x8xf32> to vector<2x1x8xf32>
    %25 = vector.broadcast %24 : vector<2x1x8xf32> to vector<2x8x8xf32>
    %26 = arith.addf %23, %25 : vector<2x8x8xf32>
    %cst_16 = arith.constant dense<0xFF800000> : vector<2x8xf32>
    %27 = vector.multi_reduction <maximumf>, %26, %cst_16 [2] : vector<2x8x8xf32> to vector<2x8xf32>
    %28 = vector.shape_cast %27 : vector<2x8xf32> to vector<2x8x1xf32>
    %29 = vector.broadcast %28 : vector<2x8x1xf32> to vector<2x8x8xf32>
    %30 = arith.subf %26, %29 : vector<2x8x8xf32>
    %31 = math.exp %30 : vector<2x8x8xf32>
    %cst_17 = arith.constant dense<0.000000e+00> : vector<2x8xf32>
    %32 = vector.multi_reduction <add>, %31, %cst_17 [2] : vector<2x8x8xf32> to vector<2x8xf32>
    %33 = vector.shape_cast %32 : vector<2x8xf32> to vector<2x8x1xf32>
    %34 = tpu.reciprocal %33 {approx = true} : vector<2x8x1xf32> -> vector<2x8x1xf32>
    %35 = vector.broadcast %34 : vector<2x8x1xf32> to vector<2x8x8xf32>
    %36 = arith.mulf %31, %35 : vector<2x8x8xf32>
    "tpu.trace_start"() <{level = 10 : i32, message = "bqk,bkd->bqd"}> : () -> ()
    %cst_18 = arith.constant dense<0.000000e+00> : vector<2x8x8xf32>
    %37 = tpu.matmul %36, %20, %cst_18 {dimension_numbers = #tpu.dot_dimension_numbers<[2], [1], [1], [2], [0, 0, 0, 1, 1, 2], [0], [0]>} : vector<2x8x8xf32>, vector<2x8x8xf32>, vector<2x8x8xf32> -> vector<2x8x8xf32>
    "tpu.trace_stop"() : () -> ()
    %38 = vector.shape_cast %37 : vector<2x8x8xf32> to vector<16x8xf32>
    %39 = vector.extract_strided_slice %13 {offsets = [0, 0], sizes = [8, 32], strides = [1, 1]} : vector<32x32xf32> to vector<8x32xf32>
    %cst_19 = arith.constant dense<0.000000e+00> : vector<16x32xf32>
    %40 = tpu.matmul %38, %39, %cst_19 {dimension_numbers = #tpu.dot_dimension_numbers<[1], [0], [0], [1], [0, 0, 1, 1], [], []>} : vector<16x8xf32>, vector<8x32xf32>, vector<16x32xf32> -> vector<16x32xf32>
    %41 = arith.addf %14, %40 : vector<16x32xf32>
    %42 = vector.extract_strided_slice %10 {offsets = [0, 8], sizes = [16, 8], strides = [1, 1]} : vector<16x96xf32> to vector<16x8xf32>
    %43 = vector.shape_cast %42 : vector<16x8xf32> to vector<2x8x8xf32>
    %44 = vector.extract_strided_slice %10 {offsets = [0, 40], sizes = [16, 8], strides = [1, 1]} : vector<16x96xf32> to vector<16x8xf32>
    %45 = vector.shape_cast %44 : vector<16x8xf32> to vector<2x8x8xf32>
    %46 = vector.extract_strided_slice %10 {offsets = [0, 72], sizes = [16, 8], strides = [1, 1]} : vector<16x96xf32> to vector<16x8xf32>
    %47 = vector.shape_cast %46 : vector<16x8xf32> to vector<2x8x8xf32>
    "tpu.trace_start"() <{level = 10 : i32, message = "bqd,bkd->bqk"}> : () -> ()
    %cst_20 = arith.constant dense<0.000000e+00> : vector<2x8x8xf32>
    %48 = tpu.matmul %43, %45, %cst_20 {dimension_numbers = #tpu.dot_dimension_numbers<[2], [2], [1], [1], [0, 0, 0, 1, 1, 1], [0], [0]>} : vector<2x8x8xf32>, vector<2x8x8xf32>, vector<2x8x8xf32> -> vector<2x8x8xf32>
    "tpu.trace_stop"() : () -> ()
    %cst_21 = arith.constant 0.353553385 : f32
    %49 = vector.broadcast %cst_21 : f32 to vector<2x8x8xf32>
    %50 = arith.mulf %48, %49 : vector<2x8x8xf32>
    %51 = vector.shape_cast %11 : vector<2x8xf32> to vector<2x1x8xf32>
    %52 = vector.broadcast %51 : vector<2x1x8xf32> to vector<2x8x8xf32>
    %53 = arith.addf %50, %52 : vector<2x8x8xf32>
    %cst_22 = arith.constant dense<0xFF800000> : vector<2x8xf32>
    %54 = vector.multi_reduction <maximumf>, %53, %cst_22 [2] : vector<2x8x8xf32> to vector<2x8xf32>
    %55 = vector.shape_cast %54 : vector<2x8xf32> to vector<2x8x1xf32>
    %56 = vector.broadcast %55 : vector<2x8x1xf32> to vector<2x8x8xf32>
    %57 = arith.subf %53, %56 : vector<2x8x8xf32>
    %58 = math.exp %57 : vector<2x8x8xf32>
    %cst_23 = arith.constant dense<0.000000e+00> : vector<2x8xf32>
    %59 = vector.multi_reduction <add>, %58, %cst_23 [2] : vector<2x8x8xf32> to vector<2x8xf32>
    %60 = vector.shape_cast %59 : vector<2x8xf32> to vector<2x8x1xf32>
    %61 = tpu.reciprocal %60 {approx = true} : vector<2x8x1xf32> -> vector<2x8x1xf32>
    %62 = vector.broadcast %61 : vector<2x8x1xf32> to vector<2x8x8xf32>
    %63 = arith.mulf %58, %62 : vector<2x8x8xf32>
    "tpu.trace_start"() <{level = 10 : i32, message = "bqk,bkd->bqd"}> : () -> ()
    %cst_24 = arith.constant dense<0.000000e+00> : vector<2x8x8xf32>
    %64 = tpu.matmul %63, %47, %cst_24 {dimension_numbers = #tpu.dot_dimension_numbers<[2], [1], [1], [2], [0, 0, 0, 1, 1, 2], [0], [0]>} : vector<2x8x8xf32>, vector<2x8x8xf32>, vector<2x8x8xf32> -> vector<2x8x8xf32>
    "tpu.trace_stop"() : () -> ()
    %65 = vector.shape_cast %64 : vector<2x8x8xf32> to vector<16x8xf32>
    %66 = vector.extract_strided_slice %13 {offsets = [8, 0], sizes = [8, 32], strides = [1, 1]} : vector<32x32xf32> to vector<8x32xf32>
    %cst_25 = arith.constant dense<0.000000e+00> : vector<16x32xf32>
    %67 = tpu.matmul %65, %66, %cst_25 {dimension_numbers = #tpu.dot_dimension_numbers<[1], [0], [0], [1], [0, 0, 1, 1], [], []>} : vector<16x8xf32>, vector<8x32xf32>, vector<16x32xf32> -> vector<16x32xf32>
    %68 = arith.addf %41, %67 : vector<16x32xf32>
    %69 = vector.extract_strided_slice %10 {offsets = [0, 16], sizes = [16, 8], strides = [1, 1]} : vector<16x96xf32> to vector<16x8xf32>
    %70 = vector.shape_cast %69 : vector<16x8xf32> to vector<2x8x8xf32>
    %71 = vector.extract_strided_slice %10 {offsets = [0, 48], sizes = [16, 8], strides = [1, 1]} : vector<16x96xf32> to vector<16x8xf32>
    %72 = vector.shape_cast %71 : vector<16x8xf32> to vector<2x8x8xf32>
    %73 = vector.extract_strided_slice %10 {offsets = [0, 80], sizes = [16, 8], strides = [1, 1]} : vector<16x96xf32> to vector<16x8xf32>
    %74 = vector.shape_cast %73 : vector<16x8xf32> to vector<2x8x8xf32>
    "tpu.trace_start"() <{level = 10 : i32, message = "bqd,bkd->bqk"}> : () -> ()
    %cst_26 = arith.constant dense<0.000000e+00> : vector<2x8x8xf32>
    %75 = tpu.matmul %70, %72, %cst_26 {dimension_numbers = #tpu.dot_dimension_numbers<[2], [2], [1], [1], [0, 0, 0, 1, 1, 1], [0], [0]>} : vector<2x8x8xf32>, vector<2x8x8xf32>, vector<2x8x8xf32> -> vector<2x8x8xf32>
    "tpu.trace_stop"() : () -> ()
    %cst_27 = arith.constant 0.353553385 : f32
    %76 = vector.broadcast %cst_27 : f32 to vector<2x8x8xf32>
    %77 = arith.mulf %75, %76 : vector<2x8x8xf32>
    %78 = vector.shape_cast %11 : vector<2x8xf32> to vector<2x1x8xf32>
    %79 = vector.broadcast %78 : vector<2x1x8xf32> to vector<2x8x8xf32>
    %80 = arith.addf %77, %79 : vector<2x8x8xf32>
    %cst_28 = arith.constant dense<0xFF800000> : vector<2x8xf32>
    %81 = vector.multi_reduction <maximumf>, %80, %cst_28 [2] : vector<2x8x8xf32> to vector<2x8xf32>
    %82 = vector.shape_cast %81 : vector<2x8xf32> to vector<2x8x1xf32>
    %83 = vector.broadcast %82 : vector<2x8x1xf32> to vector<2x8x8xf32>
    %84 = arith.subf %80, %83 : vector<2x8x8xf32>
    %85 = math.exp %84 : vector<2x8x8xf32>
    %cst_29 = arith.constant dense<0.000000e+00> : vector<2x8xf32>
    %86 = vector.multi_reduction <add>, %85, %cst_29 [2] : vector<2x8x8xf32> to vector<2x8xf32>
    %87 = vector.shape_cast %86 : vector<2x8xf32> to vector<2x8x1xf32>
    %88 = tpu.reciprocal %87 {approx = true} : vector<2x8x1xf32> -> vector<2x8x1xf32>
    %89 = vector.broadcast %88 : vector<2x8x1xf32> to vector<2x8x8xf32>
    %90 = arith.mulf %85, %89 : vector<2x8x8xf32>
    "tpu.trace_start"() <{level = 10 : i32, message = "bqk,bkd->bqd"}> : () -> ()
    %cst_30 = arith.constant dense<0.000000e+00> : vector<2x8x8xf32>
    %91 = tpu.matmul %90, %74, %cst_30 {dimension_numbers = #tpu.dot_dimension_numbers<[2], [1], [1], [2], [0, 0, 0, 1, 1, 2], [0], [0]>} : vector<2x8x8xf32>, vector<2x8x8xf32>, vector<2x8x8xf32> -> vector<2x8x8xf32>
    "tpu.trace_stop"() : () -> ()
    %92 = vector.shape_cast %91 : vector<2x8x8xf32> to vector<16x8xf32>
    %93 = vector.extract_strided_slice %13 {offsets = [16, 0], sizes = [8, 32], strides = [1, 1]} : vector<32x32xf32> to vector<8x32xf32>
    %cst_31 = arith.constant dense<0.000000e+00> : vector<16x32xf32>
    %94 = tpu.matmul %92, %93, %cst_31 {dimension_numbers = #tpu.dot_dimension_numbers<[1], [0], [0], [1], [0, 0, 1, 1], [], []>} : vector<16x8xf32>, vector<8x32xf32>, vector<16x32xf32> -> vector<16x32xf32>
    %95 = arith.addf %68, %94 : vector<16x32xf32>
    %96 = vector.extract_strided_slice %10 {offsets = [0, 24], sizes = [16, 8], strides = [1, 1]} : vector<16x96xf32> to vector<16x8xf32>
    %97 = vector.shape_cast %96 : vector<16x8xf32> to vector<2x8x8xf32>
    %98 = vector.extract_strided_slice %10 {offsets = [0, 56], sizes = [16, 8], strides = [1, 1]} : vector<16x96xf32> to vector<16x8xf32>
    %99 = vector.shape_cast %98 : vector<16x8xf32> to vector<2x8x8xf32>
    %100 = vector.extract_strided_slice %10 {offsets = [0, 88], sizes = [16, 8], strides = [1, 1]} : vector<16x96xf32> to vector<16x8xf32>
    %101 = vector.shape_cast %100 : vector<16x8xf32> to vector<2x8x8xf32>
    "tpu.trace_start"() <{level = 10 : i32, message = "bqd,bkd->bqk"}> : () -> ()
    %cst_32 = arith.constant dense<0.000000e+00> : vector<2x8x8xf32>
    %102 = tpu.matmul %97, %99, %cst_32 {dimension_numbers = #tpu.dot_dimension_numbers<[2], [2], [1], [1], [0, 0, 0, 1, 1, 1], [0], [0]>} : vector<2x8x8xf32>, vector<2x8x8xf32>, vector<2x8x8xf32> -> vector<2x8x8xf32>
    "tpu.trace_stop"() : () -> ()
    %cst_33 = arith.constant 0.353553385 : f32
    %103 = vector.broadcast %cst_33 : f32 to vector<2x8x8xf32>
    %104 = arith.mulf %102, %103 : vector<2x8x8xf32>
    %105 = vector.shape_cast %11 : vector<2x8xf32> to vector<2x1x8xf32>
    %106 = vector.broadcast %105 : vector<2x1x8xf32> to vector<2x8x8xf32>
    %107 = arith.addf %104, %106 : vector<2x8x8xf32>
    %cst_34 = arith.constant dense<0xFF800000> : vector<2x8xf32>
    %108 = vector.multi_reduction <maximumf>, %107, %cst_34 [2] : vector<2x8x8xf32> to vector<2x8xf32>
    %109 = vector.shape_cast %108 : vector<2x8xf32> to vector<2x8x1xf32>
    %110 = vector.broadcast %109 : vector<2x8x1xf32> to vector<2x8x8xf32>
    %111 = arith.subf %107, %110 : vector<2x8x8xf32>
    %112 = math.exp %111 : vector<2x8x8xf32>
    %cst_35 = arith.constant dense<0.000000e+00> : vector<2x8xf32>
    %113 = vector.multi_reduction <add>, %112, %cst_35 [2] : vector<2x8x8xf32> to vector<2x8xf32>
    %114 = vector.shape_cast %113 : vector<2x8xf32> to vector<2x8x1xf32>
    %115 = tpu.reciprocal %114 {approx = true} : vector<2x8x1xf32> -> vector<2x8x1xf32>
    %116 = vector.broadcast %115 : vector<2x8x1xf32> to vector<2x8x8xf32>
    %117 = arith.mulf %112, %116 : vector<2x8x8xf32>
    "tpu.trace_start"() <{level = 10 : i32, message = "bqk,bkd->bqd"}> : () -> ()
    %cst_36 = arith.constant dense<0.000000e+00> : vector<2x8x8xf32>
    %118 = tpu.matmul %117, %101, %cst_36 {dimension_numbers = #tpu.dot_dimension_numbers<[2], [1], [1], [2], [0, 0, 0, 1, 1, 2], [0], [0]>} : vector<2x8x8xf32>, vector<2x8x8xf32>, vector<2x8x8xf32> -> vector<2x8x8xf32>
    "tpu.trace_stop"() : () -> ()
    %119 = vector.shape_cast %118 : vector<2x8x8xf32> to vector<16x8xf32>
    %120 = vector.extract_strided_slice %13 {offsets = [24, 0], sizes = [8, 32], strides = [1, 1]} : vector<32x32xf32> to vector<8x32xf32>
    %cst_37 = arith.constant dense<0.000000e+00> : vector<16x32xf32>
    %121 = tpu.matmul %119, %120, %cst_37 {dimension_numbers = #tpu.dot_dimension_numbers<[1], [0], [0], [1], [0, 0, 1, 1], [], []>} : vector<16x8xf32>, vector<8x32xf32>, vector<16x32xf32> -> vector<16x32xf32>
    %122 = arith.addf %95, %121 : vector<16x32xf32>
    %c0_38 = arith.constant 0 : index
    %c0_39 = arith.constant 0 : index
    %c0_40 = arith.constant 0 : index
    %123 = vector.load %arg8[%c0_38, %c0_39, %c0_40] : memref<1x1x32xf32, #tpu.memory_space<vmem>>, vector<1x1x32xf32>
    %124 = vector.shape_cast %123 : vector<1x1x32xf32> to vector<1x32xf32>
    %125 = vector.broadcast %124 : vector<1x32xf32> to vector<16x32xf32>
    %126 = arith.addf %122, %125 : vector<16x32xf32>
    %127 = arith.addf %126, %3 : vector<16x32xf32>
    %c0_41 = arith.constant 0 : index
    %c0_42 = arith.constant 0 : index
    %c0_43 = arith.constant 0 : index
    %128 = vector.load %arg9[%c0_41, %c0_42, %c0_43] : memref<1x1x32xf32, #tpu.memory_space<vmem>>, vector<1x1x32xf32>
    %129 = vector.shape_cast %128 : vector<1x1x32xf32> to vector<1x32xf32>
    %c0_44 = arith.constant 0 : index
    %c0_45 = arith.constant 0 : index
    %c0_46 = arith.constant 0 : index
    %130 = vector.load %arg10[%c0_44, %c0_45, %c0_46] : memref<1x1x32xf32, #tpu.memory_space<vmem>>, vector<1x1x32xf32>
    %131 = vector.shape_cast %130 : vector<1x1x32xf32> to vector<1x32xf32>
    %cst_47 = arith.constant dense<0.000000e+00> : vector<16xf32>
    %132 = vector.multi_reduction <add>, %127, %cst_47 [1] : vector<16x32xf32> to vector<16xf32>
    %133 = vector.shape_cast %132 : vector<16xf32> to vector<16x1xf32>
    %cst_48 = arith.constant 3.200000e+01 : f32
    %134 = vector.broadcast %cst_48 : f32 to vector<16x1xf32>
    %135 = arith.divf %133, %134 : vector<16x1xf32>
    %136 = vector.broadcast %135 : vector<16x1xf32> to vector<16x32xf32>
    %137 = arith.subf %127, %136 : vector<16x32xf32>
    %138 = arith.mulf %137, %137 : vector<16x32xf32>
    %cst_49 = arith.constant dense<0.000000e+00> : vector<16xf32>
    %139 = vector.multi_reduction <add>, %138, %cst_49 [1] : vector<16x32xf32> to vector<16xf32>
    %140 = vector.shape_cast %139 : vector<16xf32> to vector<16x1xf32>
    %cst_50 = arith.constant 3.200000e+01 : f32
    %141 = vector.broadcast %cst_50 : f32 to vector<16x1xf32>
    %142 = arith.divf %140, %141 : vector<16x1xf32>
    %cst_51 = arith.constant 9.99999996E-13 : f32
    %143 = vector.broadcast %cst_51 : f32 to vector<16x1xf32>
    %144 = arith.addf %142, %143 : vector<16x1xf32>
    %145 = math.rsqrt %144 : vector<16x1xf32>
    %146 = vector.broadcast %145 : vector<16x1xf32> to vector<16x32xf32>
    %147 = arith.mulf %137, %146 : vector<16x32xf32>
    %148 = vector.broadcast %129 : vector<1x32xf32> to vector<16x32xf32>
    %149 = arith.mulf %147, %148 : vector<16x32xf32>
    %150 = vector.broadcast %131 : vector<1x32xf32> to vector<16x32xf32>
    %151 = arith.addf %149, %150 : vector<16x32xf32>
    %c0_52 = arith.constant 0 : index
    %c0_53 = arith.constant 0 : index
    %c0_54 = arith.constant 0 : index
    %152 = vector.load %arg11[%c0_52, %c0_53, %c0_54] : memref<1x32x64xf32, #tpu.memory_space<vmem>>, vector<1x32x64xf32>
    %153 = vector.shape_cast %152 : vector<1x32x64xf32> to vector<32x64xf32>
    %cst_55 = arith.constant dense<0.000000e+00> : vector<16x64xf32>
    %154 = tpu.matmul %151, %153, %cst_55 {dimension_numbers = #tpu.dot_dimension_numbers<[1], [0], [0], [1], [0, 0, 1, 1], [], []>} : vector<16x32xf32>, vector<32x64xf32>, vector<16x64xf32> -> vector<16x64xf32>
    %c0_56 = arith.constant 0 : index
    %c0_57 = arith.constant 0 : index
    %c0_58 = arith.constant 0 : index
    %155 = vector.load %arg12[%c0_56, %c0_57, %c0_58] : memref<1x1x64xf32, #tpu.memory_space<vmem>>, vector<1x1x64xf32>
    %156 = vector.shape_cast %155 : vector<1x1x64xf32> to vector<1x64xf32>
    %157 = vector.broadcast %156 : vector<1x64xf32> to vector<16x64xf32>
    %158 = arith.addf %154, %157 : vector<16x64xf32>
    %159 = arith.mulf %158, %158 : vector<16x64xf32>
    %160 = arith.mulf %158, %159 : vector<16x64xf32>
    %cst_59 = arith.constant 4.471500e-02 : f32
    %161 = vector.broadcast %cst_59 : f32 to vector<16x64xf32>
    %162 = arith.mulf %161, %160 : vector<16x64xf32>
    %163 = arith.addf %158, %162 : vector<16x64xf32>
    %cst_60 = arith.constant 0.797884583 : f32
    %164 = vector.broadcast %cst_60 : f32 to vector<16x64xf32>
    %165 = arith.mulf %164, %163 : vector<16x64xf32>
    %166 = math.tanh %165 : vector<16x64xf32>
    %cst_61 = arith.constant 1.000000e+00 : f32
    %167 = vector.broadcast %cst_61 : f32 to vector<16x64xf32>
    %168 = arith.addf %167, %166 : vector<16x64xf32>
    %cst_62 = arith.constant 5.000000e-01 : f32
    %169 = vector.broadcast %cst_62 : f32 to vector<16x64xf32>
    %170 = arith.mulf %169, %168 : vector<16x64xf32>
    %171 = arith.mulf %158, %170 : vector<16x64xf32>
    %c0_63 = arith.constant 0 : index
    %c0_64 = arith.constant 0 : index
    %c0_65 = arith.constant 0 : index
    %172 = vector.load %arg13[%c0_63, %c0_64, %c0_65] : memref<1x64x32xf32, #tpu.memory_space<vmem>>, vector<1x64x32xf32>
    %173 = vector.shape_cast %172 : vector<1x64x32xf32> to vector<64x32xf32>
    %cst_66 = arith.constant dense<0.000000e+00> : vector<16x32xf32>
    %174 = tpu.matmul %171, %173, %cst_66 {dimension_numbers = #tpu.dot_dimension_numbers<[1], [0], [0], [1], [0, 0, 1, 1], [], []>} : vector<16x64xf32>, vector<64x32xf32>, vector<16x32xf32> -> vector<16x32xf32>
    %c0_67 = arith.constant 0 : index
    %c0_68 = arith.constant 0 : index
    %c0_69 = arith.constant 0 : index
    %175 = vector.load %arg14[%c0_67, %c0_68, %c0_69] : memref<1x1x32xf32, #tpu.memory_space<vmem>>, vector<1x1x32xf32>
    %176 = vector.shape_cast %175 : vector<1x1x32xf32> to vector<1x32xf32>
    %177 = vector.broadcast %176 : vector<1x32xf32> to vector<16x32xf32>
    %178 = arith.addf %174, %177 : vector<16x32xf32>
    %179 = arith.addf %178, %151 : vector<16x32xf32>
    %c0_70 = arith.constant 0 : index
    %c0_71 = arith.constant 0 : index
    %c0_72 = arith.constant 0 : index
    %180 = vector.load %arg15[%c0_70, %c0_71, %c0_72] : memref<1x1x32xf32, #tpu.memory_space<vmem>>, vector<1x1x32xf32>
    %181 = vector.shape_cast %180 : vector<1x1x32xf32> to vector<1x32xf32>
    %c0_73 = arith.constant 0 : index
    %c0_74 = arith.constant 0 : index
    %c0_75 = arith.constant 0 : index
    %182 = vector.load %arg16[%c0_73, %c0_74, %c0_75] : memref<1x1x32xf32, #tpu.memory_space<vmem>>, vector<1x1x32xf32>
    %183 = vector.shape_cast %182 : vector<1x1x32xf32> to vector<1x32xf32>
    %cst_76 = arith.constant dense<0.000000e+00> : vector<16xf32>
    %184 = vector.multi_reduction <add>, %179, %cst_76 [1] : vector<16x32xf32> to vector<16xf32>
    %185 = vector.shape_cast %184 : vector<16xf32> to vector<16x1xf32>
    %cst_77 = arith.constant 3.200000e+01 : f32
    %186 = vector.broadcast %cst_77 : f32 to vector<16x1xf32>
    %187 = arith.divf %185, %186 : vector<16x1xf32>
    %188 = vector.broadcast %187 : vector<16x1xf32> to vector<16x32xf32>
    %189 = arith.subf %179, %188 : vector<16x32xf32>
    %190 = arith.mulf %189, %189 : vector<16x32xf32>
    %cst_78 = arith.constant dense<0.000000e+00> : vector<16xf32>
    %191 = vector.multi_reduction <add>, %190, %cst_78 [1] : vector<16x32xf32> to vector<16xf32>
    %192 = vector.shape_cast %191 : vector<16xf32> to vector<16x1xf32>
    %cst_79 = arith.constant 3.200000e+01 : f32
    %193 = vector.broadcast %cst_79 : f32 to vector<16x1xf32>
    %194 = arith.divf %192, %193 : vector<16x1xf32>
    %cst_80 = arith.constant 9.99999996E-13 : f32
    %195 = vector.broadcast %cst_80 : f32 to vector<16x1xf32>
    %196 = arith.addf %194, %195 : vector<16x1xf32>
    %197 = math.rsqrt %196 : vector<16x1xf32>
    %198 = vector.broadcast %197 : vector<16x1xf32> to vector<16x32xf32>
    %199 = arith.mulf %189, %198 : vector<16x32xf32>
    %200 = vector.broadcast %181 : vector<1x32xf32> to vector<16x32xf32>
    %201 = arith.mulf %199, %200 : vector<16x32xf32>
    %202 = vector.broadcast %183 : vector<1x32xf32> to vector<16x32xf32>
    %203 = arith.addf %201, %202 : vector<16x32xf32>
    %c0_81 = arith.constant 0 : index
    %c0_82 = arith.constant 0 : index
    %204 = vector.load %arg18[%c0_81, %c0_82] : memref<16x32xf32, #tpu.memory_space<vmem>>, vector<16x32xf32>
    tpu.vector_store %arg18[%c0_81, %c0_82], %203 {strides = array<i32>} : memref<16x32xf32, #tpu.memory_space<vmem>>, vector<16x32xf32>,
    %c1_i32 = arith.constant 1 : i32
    %205 = arith.cmpi eq, %arg0, %c1_i32 : i32
    %206 = arith.extui %205 : i1 to i32
    %c0_i32_83 = arith.constant 0 : i32
    %207 = arith.cmpi ne, %206, %c0_i32_83 : i32
    scf.if %207 {
      %c0_84 = arith.constant 0 : index
      %c0_85 = arith.constant 0 : index
      %208 = vector.load %arg17[%c0_84, %c0_85] : memref<16x32xf32, #tpu.memory_space<vmem>>, vector<16x32xf32>
      tpu.vector_store %arg17[%c0_84, %c0_85], %203 {strides = array<i32>} : memref<16x32xf32, #tpu.memory_space<vmem>>, vector<16x32xf32>,
    } else {
    }
    return
  }
  func.func @transform_0(%arg0: i32) -> (i32, i32) {
    %c0_i32 = arith.constant 0 : i32
    %c0_i32_0 = arith.constant 0 : i32
    %c0_i32_1 = arith.constant 0 : i32
    return %c0_i32, %c0_i32_0 : i32, i32
  }
  func.func @transform_1(%arg0: i32) -> (i32, i32) {
    %c0_i32 = arith.constant 0 : i32
    %c0_i32_0 = arith.constant 0 : i32
    %c0_i32_1 = arith.constant 0 : i32
    return %c0_i32, %c0_i32_0 : i32, i32
  }
  func.func @transform_2(%arg0: i32) -> (i32, i32) {
    %c0_i32 = arith.constant 0 : i32
    %c0_i32_0 = arith.constant 0 : i32
    %c0_i32_1 = arith.constant 0 : i32
    return %c0_i32, %c0_i32_0 : i32, i32
  }
  func.func @transform_3(%arg0: i32) -> (i32, i32) {
    %c0_i32 = arith.constant 0 : i32
    %c0_i32_0 = arith.constant 0 : i32
    %c0_i32_1 = arith.constant 0 : i32
    return %c0_i32, %c0_i32_0 : i32, i32
  }
  func.func @transform_4(%arg0: i32) -> (i32, i32, i32) {
    %c0_i32 = arith.constant 0 : i32
    %c0_i32_0 = arith.constant 0 : i32
    %c0_i32_1 = arith.constant 0 : i32
    return %arg0, %c0_i32, %c0_i32_0 : i32, i32, i32
  }
  func.func @transform_5(%arg0: i32) -> (i32, i32, i32) {
    %c0_i32 = arith.constant 0 : i32
    %c0_i32_0 = arith.constant 0 : i32
    %c0_i32_1 = arith.constant 0 : i32
    return %arg0, %c0_i32, %c0_i32_0 : i32, i32, i32
  }
  func.func @transform_6(%arg0: i32) -> (i32, i32, i32) {
    %c0_i32 = arith.constant 0 : i32
    %c0_i32_0 = arith.constant 0 : i32
    %c0_i32_1 = arith.constant 0 : i32
    return %arg0, %c0_i32, %c0_i32_0 : i32, i32, i32
  }
  func.func @transform_7(%arg0: i32) -> (i32, i32, i32) {
    %c0_i32 = arith.constant 0 : i32
    %c0_i32_0 = arith.constant 0 : i32
    %c0_i32_1 = arith.constant 0 : i32
    return %arg0, %c0_i32, %c0_i32_0 : i32, i32, i32
  }
  func.func @transform_8(%arg0: i32) -> (i32, i32, i32) {
    %c0_i32 = arith.constant 0 : i32
    %c0_i32_0 = arith.constant 0 : i32
    %c0_i32_1 = arith.constant 0 : i32
    return %arg0, %c0_i32, %c0_i32_0 : i32, i32, i32
  }
  func.func @transform_9(%arg0: i32) -> (i32, i32, i32) {
    %c0_i32 = arith.constant 0 : i32
    %c0_i32_0 = arith.constant 0 : i32
    %c0_i32_1 = arith.constant 0 : i32
    return %arg0, %c0_i32, %c0_i32_0 : i32, i32, i32
  }
  func.func @transform_10(%arg0: i32) -> (i32, i32, i32) {
    %c0_i32 = arith.constant 0 : i32
    %c0_i32_0 = arith.constant 0 : i32
    %c0_i32_1 = arith.constant 0 : i32
    return %arg0, %c0_i32, %c0_i32_0 : i32, i32, i32
  }
  func.func @transform_11(%arg0: i32) -> (i32, i32, i32) {
    %c0_i32 = arith.constant 0 : i32
    %c0_i32_0 = arith.constant 0 : i32
    %c0_i32_1 = arith.constant 0 : i32
    return %arg0, %c0_i32, %c0_i32_0 : i32, i32, i32
  }
  func.func @transform_12(%arg0: i32) -> (i32, i32, i32) {
    %c0_i32 = arith.constant 0 : i32
    %c0_i32_0 = arith.constant 0 : i32
    %c0_i32_1 = arith.constant 0 : i32
    return %arg0, %c0_i32, %c0_i32_0 : i32, i32, i32
  }
  func.func @transform_13(%arg0: i32) -> (i32, i32, i32) {
    %c0_i32 = arith.constant 0 : i32
    %c0_i32_0 = arith.constant 0 : i32
    %c0_i32_1 = arith.constant 0 : i32
    return %arg0, %c0_i32, %c0_i32_0 : i32, i32, i32
  }
  func.func @transform_14(%arg0: i32) -> (i32, i32, i32) {
    %c0_i32 = arith.constant 0 : i32
    %c0_i32_0 = arith.constant 0 : i32
    %c0_i32_1 = arith.constant 0 : i32
    return %arg0, %c0_i32, %c0_i32_0 : i32, i32, i32
  }
  func.func @transform_15(%arg0: i32) -> (i32, i32, i32) {
    %c0_i32 = arith.constant 0 : i32
    %c0_i32_0 = arith.constant 0 : i32
    %c0_i32_1 = arith.constant 0 : i32
    return %arg0, %c0_i32, %c0_i32_0 : i32, i32, i32
  }
  func.func @transform_16(%arg0: i32) -> (i32, i32) {
    %c0_i32 = arith.constant 0 : i32
    %c0_i32_0 = arith.constant 0 : i32
    %c0_i32_1 = arith.constant 0 : i32
    return %c0_i32, %c0_i32_0 : i32, i32
  }
}

</mosaic_0001>

<llo_original>
// kernel: bert_classifier_forward.3
$region0: #{bert_classifier_forward.3}
  #allocation0 [shape = 'u32[]', space=smem, size = 0x4, offset = 0x4, fixed_abs, tag = 'smem constant byte address 0x4 - core index']
  #allocation1 [shape = 'u32[144,128]{1,0:T(1,128)}', space=vmem, size = 0x12000, scoped, tag = 'internal scratch']
  #allocation2 [shape = 'f32[1,1]{1,0:T(1,128)S(1)}', space=vmem, size = 0x200, scoped, tag = 'scoped memory for bert_classifier_forward.3']
  %s0 = inlined_call_operand.vmem [shape: f32[2,32], index: 0, kind: input, shape index: {}]
  %s1 = inlined_call_operand.vmem [shape: f32[32,32], index: 1, kind: input, shape index: {}]
  %s2 = inlined_call_operand.vmem [shape: f32[1,32], index: 2, kind: input, shape index: {}]
  %s3 = inlined_call_operand.vmem [shape: f32[32,1], index: 3, kind: input, shape index: {}]
  %s4 = inlined_call_operand.<no memory space> [shape: f32[1,1], index: 4, kind: input, shape index: {}]
  %s5 = inlined_call_operand.vmem [shape: f32[2,1], index: 5, kind: input, shape index: {}]
  %s6 = inlined_call_operand.hbm [shape: f32[1,1], index: 6, kind: output, shape index: {0}]
  %s7 = inlined_call_operand.vmem [shape: f32[2,1], index: 7, kind: output, shape index: {1}]
  %8 = xla_tuple %s6, %s7
  %s9 = sld [smem:[#allocation0]]
  $region42: #{bert_classifier_forward.3} parent=0
    _
  %s11 = ssub.s32 1, %s9
  %s12 = scalar_select 0, %s11, %s9
  %v13 = vstv %s4
  %14 = vst [vmem:[#allocation2] sm:$0x1] %v13
  $region1: #{bert_classifier_forward.3} parent=0
    #allocation3 [shape = 'u8[512]{0}', space=vmem, size = 0x400, scoped, tag = 'output window, operand 0, single buffered']
    #allocation4 [shape = 's32[1]{0}', space=sflag, size = 0x4, scoped, tag = 'scoped memory for bert_classifier_forward.3']
    %15 = vsyncpa [#allocation4], 0
    // Predicated region
    $region2: #{bert_classifier_forward.3} parent=1 // pred_check
      _
    $region3: #{bert_classifier_forward.3} parent=1 // pred_check_branch
      %17 = sbr.rel (0) target = $region5
    $region4: #{bert_classifier_forward.3} parent=1 // pred_region
      _
    $region5: #{bert_classifier_forward.3} parent=1 // pred_fallthru
      _
    // Predicated region
    $region6: #{bert_classifier_forward.3} parent=1 // pred_check
      _
    $region7: #{bert_classifier_forward.3} parent=1 // pred_check_branch
      %19 = sbr.rel (0) target = $region9
    $region8: #{bert_classifier_forward.3} parent=1 // pred_region
      _
    $region9: #{bert_classifier_forward.3} parent=1 // pred_fallthru
      _
    // Predicated region
    $region10: #{bert_classifier_forward.3} parent=1 // pred_check
      _
    $region11: #{bert_classifier_forward.3} parent=1 // pred_check_branch
      %21 = sbr.rel (0) target = $region13
    $region12: #{bert_classifier_forward.3} parent=1 // pred_region
      _
    $region13: #{bert_classifier_forward.3} parent=1 // pred_fallthru
      _
    // Predicated region
    $region14: #{bert_classifier_forward.3} parent=1 // pred_check
      _
    $region15: #{bert_classifier_forward.3} parent=1 // pred_check_branch
      %23 = sbr.rel (0) target = $region17
    $region16: #{bert_classifier_forward.3} parent=1 // pred_region
      _
    $region17: #{bert_classifier_forward.3} parent=1 // pred_fallthru
      _
    // Predicated region
    $region18: #{bert_classifier_forward.3} parent=1 // pred_check
      _
    $region19: #{bert_classifier_forward.3} parent=1 // pred_check_branch
      %25 = sbr.rel (0) target = $region21
    $region20: #{bert_classifier_forward.3} parent=1 // pred_region
      _
    $region21: #{bert_classifier_forward.3} parent=1 // pred_fallthru
      _
    // Predicated region
    $region22: #{bert_classifier_forward.3} parent=1 // pred_check
      _
    $region23: #{bert_classifier_forward.3} parent=1 // pred_check_branch
      %27 = sbr.rel (0) target = $region25
    $region24: #{bert_classifier_forward.3} parent=1 // pred_region
      _
    $region25: #{bert_classifier_forward.3} parent=1 // pred_fallthru
      _
    %v28 = vld [vmem:[%s0] sm:$0x3]
    %v29 = vld [vmem:[%s1] sm:$0xff]
    %v30 = vld [vmem:[%s1 + $0x8] sm:$0xff]
    %v31 = vld [vmem:[%s1 + $0x10] sm:$0xff]
    %v32 = vld [vmem:[%s1 + $0x18] sm:$0xff]
    %v33 = vld [vmem:[%s2] sm:$0x1]
    %v35 = vlaneseq
    %v36 = vshrl.u32 %v35, 7
    %v37 = vsub.s32 0, %v36
    %v38 = vrot.slane %v33, %v37
    %vm40 = vcmask 261120
    %v42 = vsel %vm40, %v28, 0
    %44 = vmatprep.subr.mxu0 0.0
    %45 = vmatpush1.msra.mxu0 %v29
    %46 = vmatprep.subr.mxu0 0.0
    %47 = vmatpush1.msra.mxu0 %v30
    %48 = vmatprep.subr.mxu0 0.0
    %49 = vmatpush1.msra.mxu0 %v31
    %50 = vmatprep.subr.mxu0 0.0
    %51 = vmatpush1.msra.mxu0 %v32
    %52 = vmatprep.subr.mxu0 0.0
    %53 = vmatpush1.msra.mxu0 0.0
    %54 = vmatprep.subr.mxu0 0.0
    %55 = vmatpush1.msra.mxu0 0.0
    %56 = vmatprep.subr.mxu0 0.0
    %57 = vmatpush1.msra.mxu0 0.0
    %58 = vmatprep.subr.mxu0 0.0
    %59 = vmatpush1.msra.mxu0 0.0
    %60 = vmatprep.subr.mxu0 0.0
    %61 = vmatpush1.msra.mxu0 0.0
    %62 = vmatprep.subr.mxu0 0.0
    %63 = vmatpush1.msra.mxu0 0.0
    %64 = vmatprep.subr.mxu0 0.0
    %65 = vmatpush1.msra.mxu0 0.0
    %66 = vmatprep.subr.mxu0 0.0
    %67 = vmatpush1.msra.mxu0 0.0
    %68 = vmatprep.subr.mxu0 0.0
    %69 = vmatpush1.msra.mxu0 0.0
    %70 = vmatprep.subr.mxu0 0.0
    %71 = vmatpush1.msra.mxu0 0.0
    %72 = vmatprep.subr.mxu0 0.0
    %73 = vmatpush1.msra.mxu0 0.0
    %74 = vmatprep.subr.mxu0 0.0
    %75 = vmatpush1.msra.mxu0 0.0
    %76 = vmatprep.subr.mxu0 0.0
    %77 = vmatpush1.msra.mxu0 0.0
    %78 = vmatprep.subr.mxu0 0.0
    %79 = vmatpush1.msra.mxu0 0.0
    %80 = vmatprep.subr.mxu0 0.0
    %81 = vmatpush1.msra.mxu0 0.0
    %82 = vmatprep.subr.mxu0 0.0
    %83 = vmatpush1.msra.mxu0 0.0
    %84 = vmatprep.subr.mxu0 0.0
    %85 = vmatpush1.msra.mxu0 0.0
    %86 = vmatprep.subr.mxu0 0.0
    %87 = vmatpush1.msra.mxu0 0.0
    %88 = vmatprep.subr.mxu0 0.0
    %89 = vmatpush1.msra.mxu0 0.0
    %90 = vmatprep.subr.mxu0 0.0
    %91 = vmatpush1.msra.mxu0 0.0
    %92 = vmatprep.subr.mxu0 0.0
    %93 = vmatpush1.msra.mxu0 0.0
    %94 = vmatprep.subr.mxu0 0.0
    %95 = vmatpush1.msra.mxu0 0.0
    %96 = vmatprep.subr.mxu0 0.0
    %97 = vmatpush1.msra.mxu0 0.0
    %98 = vmatprep.subr.mxu0 0.0
    %99 = vmatpush1.msra.mxu0 0.0
    %100 = vmatprep.subr.mxu0 0.0
    %101 = vmatpush1.msra.mxu0 0.0
    %102 = vmatprep.subr.mxu0 0.0
    %103 = vmatpush1.msra.mxu0 0.0
    %104 = vmatprep.subr.mxu0 0.0
    %105 = vmatpush1.msra.mxu0 0.0
    %106 = vmatprep.subr.mxu0 0.0
    %107 = vmatpush1.msra.mxu0 0.0
    %108 = vmatprep.mubr.f32.mxu0 0.0
    %109 = vmatmul.mubr.f32.gmra.mrb[0].mxu0 %v42
    %v110 = vpop.f32.mrb[0].mxu0
    %v111 = vadd.f32 %v38, %v110
    %v112 = vpop.f32.mrb[0].mxu0
    %113 = vdwg.mxu0
    %v114 = vtanh.pop %v111
    %v115 = vld [vmem:[%s3] sm:$0xff]
    %v116 = vld [vmem:[%s3 + $0x8] sm:$0xff]
    %v117 = vld [vmem:[%s3 + $0x10] sm:$0xff]
    %v118 = vld [vmem:[%s3 + $0x18] sm:$0xff]
    %v119 = vld [vmem:[#allocation2] sm:$0x1]
    %v121 = vlaneseq
    %v122 = vshrl.u32 %v121, 7
    %v123 = vsub.s32 0, %v122
    %v124 = vrot.slane %v119, %v123
    %v127 = vsel %vm40, %v114, 0
    %129 = vmatprep.subr.mxu0 0.0
    %130 = vmatpush1.msra.mxu0 %v115
    %131 = vmatprep.subr.mxu0 0.0
    %132 = vmatpush1.msra.mxu0 %v116
    %133 = vmatprep.subr.mxu0 0.0
    %134 = vmatpush1.msra.mxu0 %v117
    %135 = vmatprep.subr.mxu0 0.0
    %136 = vmatpush1.msra.mxu0 %v118
    %137 = vmatprep.subr.mxu0 0.0
    %138 = vmatpush1.msra.mxu0 0.0
    %139 = vmatprep.subr.mxu0 0.0
    %140 = vmatpush1.msra.mxu0 0.0
    %141 = vmatprep.subr.mxu0 0.0
    %142 = vmatpush1.msra.mxu0 0.0
    %143 = vmatprep.subr.mxu0 0.0
    %144 = vmatpush1.msra.mxu0 0.0
    %145 = vmatprep.subr.mxu0 0.0
    %146 = vmatpush1.msra.mxu0 0.0
    %147 = vmatprep.subr.mxu0 0.0
    %148 = vmatpush1.msra.mxu0 0.0
    %149 = vmatprep.subr.mxu0 0.0
    %150 = vmatpush1.msra.mxu0 0.0
    %151 = vmatprep.subr.mxu0 0.0
    %152 = vmatpush1.msra.mxu0 0.0
    %153 = vmatprep.subr.mxu0 0.0
    %154 = vmatpush1.msra.mxu0 0.0
    %155 = vmatprep.subr.mxu0 0.0
    %156 = vmatpush1.msra.mxu0 0.0
    %157 = vmatprep.subr.mxu0 0.0
    %158 = vmatpush1.msra.mxu0 0.0
    %159 = vmatprep.subr.mxu0 0.0
    %160 = vmatpush1.msra.mxu0 0.0
    %161 = vmatprep.subr.mxu0 0.0
    %162 = vmatpush1.msra.mxu0 0.0
    %163 = vmatprep.subr.mxu0 0.0
    %164 = vmatpush1.msra.mxu0 0.0
    %165 = vmatprep.subr.mxu0 0.0
    %166 = vmatpush1.msra.mxu0 0.0
    %167 = vmatprep.subr.mxu0 0.0
    %168 = vmatpush1.msra.mxu0 0.0
    %169 = vmatprep.subr.mxu0 0.0
    %170 = vmatpush1.msra.mxu0 0.0
    %171 = vmatprep.subr.mxu0 0.0
    %172 = vmatpush1.msra.mxu0 0.0
    %173 = vmatprep.subr.mxu0 0.0
    %174 = vmatpush1.msra.mxu0 0.0
    %175 = vmatprep.subr.mxu0 0.0
    %176 = vmatpush1.msra.mxu0 0.0
    %177 = vmatprep.subr.mxu0 0.0
    %178 = vmatpush1.msra.mxu0 0.0
    %179 = vmatprep.subr.mxu0 0.0
    %180 = vmatpush1.msra.mxu0 0.0
    %181 = vmatprep.subr.mxu0 0.0
    %182 = vmatpush1.msra.mxu0 0.0
    %183 = vmatprep.subr.mxu0 0.0
    %184 = vmatpush1.msra.mxu0 0.0
    %185 = vmatprep.subr.mxu0 0.0
    %186 = vmatpush1.msra.mxu0 0.0
    %187 = vmatprep.subr.mxu0 0.0
    %188 = vmatpush1.msra.mxu0 0.0
    %189 = vmatprep.subr.mxu0 0.0
    %190 = vmatpush1.msra.mxu0 0.0
    %191 = vmatprep.subr.mxu0 0.0
    %192 = vmatpush1.msra.mxu0 0.0
    %193 = vmatprep.mubr.f32.mxu0 0.0
    %194 = vmatmul.mubr.f32.gmra.mrb[0].mxu0 %v127
    %v195 = vpop.f32.mrb[0].mxu0
    %v196 = vadd.f32 %v124, %v195
    %v197 = vpop.f32.mrb[0].mxu0
    %198 = vdwg.mxu0
    %v199 = vld [vmem:[%s5] sm:$0x3]
    %v200 = vmax.f32 %v196, 0.0
    %v201 = vmul.f32 %v196, %v199
    %v202 = vsub.f32 %v200, %v201
    %v203 = vand.u32 2147483647, %v196
    %v204 = vsub.f32 0.0, %v203
    %v205 = vmul.f32 %v204, 1.442695
    %v206 = vpow.pop %v205
    %v207 = vadd.f32 %v206, 1.0
    %v208 = vlog2.pop %v207
    %v209 = vmul.f32 %v208, 0.6931472
    %v210 = vmul.f32 -0.5, %v206
    %v211 = vadd.f32 %v210, 1.0
    %v212 = vmul.f32 %v211, %v206
    %v213 = vand.u32 2147483647, %v206
    %vm214 = vcmp.lt.f32.partialorder %v213, 0.0004427343
    %v215 = vsel %vm214, %v212, %v209
    %v216 = vadd.f32 %v202, %v215
    %vm217 = vcmask 1024
    %v218 = vsel %vm217, %v216, 0.0
    %219 = vadd.xlane.f32.xlu0 %v218
    %v220 = vpop.xlane.xlu0 %219
    %v221 = vrot.slane %v220, 4
    %v222 = vadd.f32 %v220, %v221
    %v223 = vrot.slane %v222, 2
    %v224 = vadd.f32 %v222, %v223
    %v225 = vrot.slane %v224, 1
    %v226 = vadd.f32 %v224, %v225
    %s227 = vtos %v226
    %v228 = vstv %s227
    %v229 = vrcp.pop 2.0
    %v230 = vmul.f32 %v228, %v229
    %vm231 = vcmask 0
    %232 = vst.msk [vmem:[#allocation3] sm:$0x1] %vm231, %v230
    %v233 = vsub.f32 0.0, %v196
    %v234 = vmul.f32 %v233, 1.442695
    %v235 = vpow.pop %v234
    %v236 = vadd.f32 %v235, 1.0
    %v237 = vrcp.pop %v236
    %v238 = vmul.f32 1.0, %v237
    %239 = vst.msk [vmem:[%s7] sm:$0x3] %vm217, %v238
    // Predicated region
    $region26: #{bert_classifier_forward.3} parent=1 // pred_check
      _
    $region27: #{bert_classifier_forward.3} parent=1 // pred_check_branch
      %241 = sbr.rel (0) target = $region29
    $region28: #{bert_classifier_forward.3} parent=1 // pred_region
      %s243 = ssub.s32 16, 16
      %244 = vsyncadd [#allocation4], %s243
      %s246 = sshll.u32 [#allocation3], 4
      %s247 = int_to_ptr.vmem [resolvable:$true] %s246
      %249 = dma.vmem_to_hbm [thread:$0]  %s247, 16, %s6, [#allocation4]
    $region29: #{bert_classifier_forward.3} parent=1 // pred_fallthru
      _
    // Predicated region
    $region30: #{bert_classifier_forward.3} parent=1 // pred_check
      _
    $region31: #{bert_classifier_forward.3} parent=1 // pred_check_branch
      %251 = sbr.rel (0) target = $region33
    $region32: #{bert_classifier_forward.3} parent=1 // pred_region
      _
    $region33: #{bert_classifier_forward.3} parent=1 // pred_fallthru
      _
    // Predicated region
    $region34: #{bert_classifier_forward.3} parent=1 // pred_check
      _
    $region35: #{bert_classifier_forward.3} parent=1 // pred_check_branch
      %253 = sbr.rel (0) target = $region37
    $region36: #{bert_classifier_forward.3} parent=1 // pred_region
      %254 = dma.done [#allocation4], 16
    $region37: #{bert_classifier_forward.3} parent=1 // pred_fallthru
      _
    // Predicated region
    $region38: #{bert_classifier_forward.3} parent=1 // pred_check
      _
    $region39: #{bert_classifier_forward.3} parent=1 // pred_check_branch
      %256 = sbr.rel (0) target = $region41
    $region40: #{bert_classifier_forward.3} parent=1 // pred_region
      _
    $region41: #{bert_classifier_forward.3} parent=1 // pred_fallthru
      _
    %257 = vsyncpa [#allocation4], 1

// kernel: bert_classifier_forward.2
$region0: #{bert_classifier_forward.2}
  #allocation0 [shape = 'u32[]', space=smem, size = 0x4, offset = 0x4, fixed_abs, tag = 'smem constant byte address 0x4 - core index']
  #allocation1 [shape = 'u32[144,128]{1,0:T(1,128)}', space=vmem, size = 0x12000, scoped, tag = 'internal scratch']
  #allocation2 [shape = 'f32[16,32]{1,0:T(8,128)}', space=vmem, size = 0x2000, scoped, tag = 'scratch operand']
  %s0 = inlined_call_operand.vmem [shape: f32[16,32], index: 0, kind: input, shape index: {}]
  %s1 = inlined_call_operand.vmem [shape: f32[2,8], index: 1, kind: input, shape index: {}]
  %s2 = inlined_call_operand.vmem [shape: f32[1,32], index: 2, kind: input, shape index: {}]
  %s3 = inlined_call_operand.vmem [shape: f32[1,32], index: 3, kind: input, shape index: {}]
  %s4 = inlined_call_operand.vmem [shape: f32[2,32,96], index: 4, kind: input, shape index: {}]
  %s5 = inlined_call_operand.vmem [shape: f32[2,1,96], index: 5, kind: input, shape index: {}]
  %s6 = inlined_call_operand.vmem [shape: f32[2,32,32], index: 6, kind: input, shape index: {}]
  %s7 = inlined_call_operand.vmem [shape: f32[2,1,32], index: 7, kind: input, shape index: {}]
  %s8 = inlined_call_operand.vmem [shape: f32[2,1,32], index: 8, kind: input, shape index: {}]
  %s9 = inlined_call_operand.vmem [shape: f32[2,1,32], index: 9, kind: input, shape index: {}]
  %s10 = inlined_call_operand.vmem [shape: f32[2,32,64], index: 10, kind: input, shape index: {}]
  %s11 = inlined_call_operand.vmem [shape: f32[2,1,64], index: 11, kind: input, shape index: {}]
  %s12 = inlined_call_operand.vmem [shape: f32[2,64,32], index: 12, kind: input, shape index: {}]
  %s13 = inlined_call_operand.vmem [shape: f32[2,1,32], index: 13, kind: input, shape index: {}]
  %s14 = inlined_call_operand.vmem [shape: f32[2,1,32], index: 14, kind: input, shape index: {}]
  %s15 = inlined_call_operand.vmem [shape: f32[2,1,32], index: 15, kind: input, shape index: {}]
  %s16 = inlined_call_operand.vmem [shape: f32[16,32], index: 16, kind: output, shape index: {}]
  %s17 = sld [smem:[#allocation0]]
  $region105: #{bert_classifier_forward.2} parent=0
    _
  %s19 = ssub.s32 1, %s17
  %s20 = scalar_select 0, %s19, %s17
  loop: start=0, step=1, limit=4
  $region2: #{bert_classifier_forward.2} parent=0 // loop_pre_header
    _
  $region3: #{bert_classifier_forward.2} parent=0 // loop_header
    %s22 = sphi 0, %s26
    %p23 = scmp.ge.s32.totalorder %s22, 4
    %s30 = sphi 0, %s30
    %s32 = sphi 0, %s30
    %s33 = sphi 0, %s32
    %s47 = sphi 0, %s33
    %s51 = sphi 0, %s51
    %s53 = sphi 0, %s51
    %s54 = sphi 0, %s53
    %s68 = sphi 0, %s54
    %s72 = sphi 0, %s72
    %s74 = sphi 0, %s72
    %s75 = sphi 0, %s74
    %s89 = sphi 0, %s75
    %s93 = sphi 0, %s93
    %s95 = sphi 0, %s93
    %s96 = sphi 0, %s95
    %s110 = sphi 0, %s96
    %s116 = sphi 0, %s118
    %s119 = sphi 0, %s116
    %s120 = sphi 0, %s119
    %s136 = sphi 0, %s120
    %s142 = sphi 0, %s144
    %s145 = sphi 0, %s142
    %s146 = sphi 0, %s145
    %s162 = sphi 0, %s146
    %s168 = sphi 0, %s170
    %s171 = sphi 0, %s168
    %s172 = sphi 0, %s171
    %s188 = sphi 0, %s172
    %s194 = sphi 0, %s196
    %s197 = sphi 0, %s194
    %s198 = sphi 0, %s197
    %s214 = sphi 0, %s198
    %s220 = sphi 0, %s222
    %s223 = sphi 0, %s220
    %s224 = sphi 0, %s223
    %s240 = sphi 0, %s224
    %s246 = sphi 0, %s248
    %s249 = sphi 0, %s246
    %s250 = sphi 0, %s249
    %s266 = sphi 0, %s250
    %s272 = sphi 0, %s274
    %s275 = sphi 0, %s272
    %s276 = sphi 0, %s275
    %s292 = sphi 0, %s276
    %s298 = sphi 0, %s300
    %s301 = sphi 0, %s298
    %s302 = sphi 0, %s301
    %s318 = sphi 0, %s302
    %s324 = sphi 0, %s326
    %s327 = sphi 0, %s324
    %s328 = sphi 0, %s327
    %s344 = sphi 0, %s328
    %s350 = sphi 0, %s352
    %s353 = sphi 0, %s350
    %s354 = sphi 0, %s353
    %s370 = sphi 0, %s354
    %s376 = sphi 0, %s378
    %s379 = sphi 0, %s376
    %s380 = sphi 0, %s379
    %s396 = sphi 0, %s380
    %s402 = sphi 0, %s404
    %s405 = sphi 0, %s402
    %s406 = sphi 0, %s405
    %s422 = sphi 0, %s406
    %s426 = sphi 0, %s426
    %s428 = sphi 0, %s426
    %s429 = sphi 0, %s428
    %s443 = sphi 0, %s429
  $region4: #{bert_classifier_forward.2} parent=0 // loop_header_branch
    %25 = sbr.rel (%p23) target = $region8
  $region5: #{bert_classifier_forward.2} parent=0 // loop_body
    %s27 = ssub.s32 %s22, 1
    %s28 = ssub.s32 %s22, 2
    %s29 = sadd.s32 %s22, 1
    %s31 = sadd.s32 %s30, 1
    %p34 = scmp.eq.s32.totalorder %s22, 1
    %p35 = scmp.ne.s32.totalorder %s30, %s32
    %p36 = scmp.eq.s32.totalorder %s22, 0
    %p37 = por %p35, %p36
    %p38 = scmp.ne.s32.totalorder %s30, %s32
    %p39 = scmp.eq.s32.totalorder %s27, 1
    %p40 = por %p38, %p39
    %p41 = scmp.ne.s32.totalorder %s32, %s33
    %p42 = scmp.eq.s32.totalorder %s27, 0
    %p43 = por %p41, %p42
    %p44 = scmp.ne.s32.totalorder %s32, %s33
    %p45 = scmp.eq.s32.totalorder %s28, 1
    %p46 = por %p44, %p45
    %p48 = scmp.ne.s32.totalorder %s33, %s47
    %p49 = scmp.eq.s32.totalorder %s28, 0
    %p50 = por %p48, %p49
    %s52 = sadd.s32 %s51, 1
    %p55 = scmp.eq.s32.totalorder %s22, 1
    %p56 = scmp.ne.s32.totalorder %s51, %s53
    %p57 = scmp.eq.s32.totalorder %s22, 0
    %p58 = por %p56, %p57
    %p59 = scmp.ne.s32.totalorder %s51, %s53
    %p60 = scmp.eq.s32.totalorder %s27, 1
    %p61 = por %p59, %p60
    %p62 = scmp.ne.s32.totalorder %s53, %s54
    %p63 = scmp.eq.s32.totalorder %s27, 0
    %p64 = por %p62, %p63
    %p65 = scmp.ne.s32.totalorder %s53, %s54
    %p66 = scmp.eq.s32.totalorder %s28, 1
    %p67 = por %p65, %p66
    %p69 = scmp.ne.s32.totalorder %s54, %s68
    %p70 = scmp.eq.s32.totalorder %s28, 0
    %p71 = por %p69, %p70
    %s73 = sadd.s32 %s72, 1
    %p76 = scmp.eq.s32.totalorder %s22, 1
    %p77 = scmp.ne.s32.totalorder %s72, %s74
    %p78 = scmp.eq.s32.totalorder %s22, 0
    %p79 = por %p77, %p78
    %p80 = scmp.ne.s32.totalorder %s72, %s74
    %p81 = scmp.eq.s32.totalorder %s27, 1
    %p82 = por %p80, %p81
    %p83 = scmp.ne.s32.totalorder %s74, %s75
    %p84 = scmp.eq.s32.totalorder %s27, 0
    %p85 = por %p83, %p84
    %p86 = scmp.ne.s32.totalorder %s74, %s75
    %p87 = scmp.eq.s32.totalorder %s28, 1
    %p88 = por %p86, %p87
    %p90 = scmp.ne.s32.totalorder %s75, %s89
    %p91 = scmp.eq.s32.totalorder %s28, 0
    %p92 = por %p90, %p91
    %s94 = sadd.s32 %s93, 1
    %p97 = scmp.eq.s32.totalorder %s22, 1
    %p98 = scmp.ne.s32.totalorder %s93, %s95
    %p99 = scmp.eq.s32.totalorder %s22, 0
    %p100 = por %p98, %p99
    %p101 = scmp.ne.s32.totalorder %s93, %s95
    %p102 = scmp.eq.s32.totalorder %s27, 1
    %p103 = por %p101, %p102
    %p104 = scmp.ne.s32.totalorder %s95, %s96
    %p105 = scmp.eq.s32.totalorder %s27, 0
    %p106 = por %p104, %p105
    %p107 = scmp.ne.s32.totalorder %s95, %s96
    %p108 = scmp.eq.s32.totalorder %s28, 1
    %p109 = por %p107, %p108
    %p111 = scmp.ne.s32.totalorder %s96, %s110
    %p112 = scmp.eq.s32.totalorder %s28, 0
    %p113 = por %p111, %p112
    %s114 = ssub.s32 %s22, %s29
    %p115 = scmp.eq.s32.totalorder %s114, 0
    %s117 = sadd.s32 %s116, 1
    %s118 = scalar_select %p115, %s116, %s117
    %p121 = pneg %p115
    %p122 = scmp.eq.s32.totalorder %s22, 1
    %p123 = por %p121, %p122
    %p124 = scmp.ne.s32.totalorder %s116, %s119
    %p125 = scmp.eq.s32.totalorder %s22, 0
    %p126 = por %p124, %p125
    %p127 = scmp.ne.s32.totalorder %s116, %s119
    %p128 = scmp.eq.s32.totalorder %s27, 1
    %p129 = por %p127, %p128
    %p130 = scmp.ne.s32.totalorder %s119, %s120
    %p131 = scmp.eq.s32.totalorder %s27, 0
    %p132 = por %p130, %p131
    %p133 = scmp.ne.s32.totalorder %s119, %s120
    %p134 = scmp.eq.s32.totalorder %s28, 1
    %p135 = por %p133, %p134
    %p137 = scmp.ne.s32.totalorder %s120, %s136
    %p138 = scmp.eq.s32.totalorder %s28, 0
    %p139 = por %p137, %p138
    %s140 = ssub.s32 %s22, %s29
    %p141 = scmp.eq.s32.totalorder %s140, 0
    %s143 = sadd.s32 %s142, 1
    %s144 = scalar_select %p141, %s142, %s143
    %p147 = pneg %p141
    %p148 = scmp.eq.s32.totalorder %s22, 1
    %p149 = por %p147, %p148
    %p150 = scmp.ne.s32.totalorder %s142, %s145
    %p151 = scmp.eq.s32.totalorder %s22, 0
    %p152 = por %p150, %p151
    %p153 = scmp.ne.s32.totalorder %s142, %s145
    %p154 = scmp.eq.s32.totalorder %s27, 1
    %p155 = por %p153, %p154
    %p156 = scmp.ne.s32.totalorder %s145, %s146
    %p157 = scmp.eq.s32.totalorder %s27, 0
    %p158 = por %p156, %p157
    %p159 = scmp.ne.s32.totalorder %s145, %s146
    %p160 = scmp.eq.s32.totalorder %s28, 1
    %p161 = por %p159, %p160
    %p163 = scmp.ne.s32.totalorder %s146, %s162
    %p164 = scmp.eq.s32.totalorder %s28, 0
    %p165 = por %p163, %p164
    %s166 = ssub.s32 %s22, %s29
    %p167 = scmp.eq.s32.totalorder %s166, 0
    %s169 = sadd.s32 %s168, 1
    %s170 = scalar_select %p167, %s168, %s169
    %p173 = pneg %p167
    %p174 = scmp.eq.s32.totalorder %s22, 1
    %p175 = por %p173, %p174
    %p176 = scmp.ne.s32.totalorder %s168, %s171
    %p177 = scmp.eq.s32.totalorder %s22, 0
    %p178 = por %p176, %p177
    %p179 = scmp.ne.s32.totalorder %s168, %s171
    %p180 = scmp.eq.s32.totalorder %s27, 1
    %p181 = por %p179, %p180
    %p182 = scmp.ne.s32.totalorder %s171, %s172
    %p183 = scmp.eq.s32.totalorder %s27, 0
    %p184 = por %p182, %p183
    %p185 = scmp.ne.s32.totalorder %s171, %s172
    %p186 = scmp.eq.s32.totalorder %s28, 1
    %p187 = por %p185, %p186
    %p189 = scmp.ne.s32.totalorder %s172, %s188
    %p190 = scmp.eq.s32.totalorder %s28, 0
    %p191 = por %p189, %p190
    %s192 = ssub.s32 %s22, %s29
    %p193 = scmp.eq.s32.totalorder %s192, 0
    %s195 = sadd.s32 %s194, 1
    %s196 = scalar_select %p193, %s194, %s195
    %p199 = pneg %p193
    %p200 = scmp.eq.s32.totalorder %s22, 1
    %p201 = por %p199, %p200
    %p202 = scmp.ne.s32.totalorder %s194, %s197
    %p203 = scmp.eq.s32.totalorder %s22, 0
    %p204 = por %p202, %p203
    %p205 = scmp.ne.s32.totalorder %s194, %s197
    %p206 = scmp.eq.s32.totalorder %s27, 1
    %p207 = por %p205, %p206
    %p208 = scmp.ne.s32.totalorder %s197, %s198
    %p209 = scmp.eq.s32.totalorder %s27, 0
    %p210 = por %p208, %p209
    %p211 = scmp.ne.s32.totalorder %s197, %s198
    %p212 = scmp.eq.s32.totalorder %s28, 1
    %p213 = por %p211, %p212
    %p215 = scmp.ne.s32.totalorder %s198, %s214
    %p216 = scmp.eq.s32.totalorder %s28, 0
    %p217 = por %p215, %p216
    %s218 = ssub.s32 %s22, %s29
    %p219 = scmp.eq.s32.totalorder %s218, 0
    %s221 = sadd.s32 %s220, 1
    %s222 = scalar_select %p219, %s220, %s221
    %p225 = pneg %p219
    %p226 = scmp.eq.s32.totalorder %s22, 1
    %p227 = por %p225, %p226
    %p228 = scmp.ne.s32.totalorder %s220, %s223
    %p229 = scmp.eq.s32.totalorder %s22, 0
    %p230 = por %p228, %p229
    %p231 = scmp.ne.s32.totalorder %s220, %s223
    %p232 = scmp.eq.s32.totalorder %s27, 1
    %p233 = por %p231, %p232
    %p234 = scmp.ne.s32.totalorder %s223, %s224
    %p235 = scmp.eq.s32.totalorder %s27, 0
    %p236 = por %p234, %p235
    %p237 = scmp.ne.s32.totalorder %s223, %s224
    %p238 = scmp.eq.s32.totalorder %s28, 1
    %p239 = por %p237, %p238
    %p241 = scmp.ne.s32.totalorder %s224, %s240
    %p242 = scmp.eq.s32.totalorder %s28, 0
    %p243 = por %p241, %p242
    %s244 = ssub.s32 %s22, %s29
    %p245 = scmp.eq.s32.totalorder %s244, 0
    %s247 = sadd.s32 %s246, 1
    %s248 = scalar_select %p245, %s246, %s247
    %p251 = pneg %p245
    %p252 = scmp.eq.s32.totalorder %s22, 1
    %p253 = por %p251, %p252
    %p254 = scmp.ne.s32.totalorder %s246, %s249
    %p255 = scmp.eq.s32.totalorder %s22, 0
    %p256 = por %p254, %p255
    %p257 = scmp.ne.s32.totalorder %s246, %s249
    %p258 = scmp.eq.s32.totalorder %s27, 1
    %p259 = por %p257, %p258
    %p260 = scmp.ne.s32.totalorder %s249, %s250
    %p261 = scmp.eq.s32.totalorder %s27, 0
    %p262 = por %p260, %p261
    %p263 = scmp.ne.s32.totalorder %s249, %s250
    %p264 = scmp.eq.s32.totalorder %s28, 1
    %p265 = por %p263, %p264
    %p267 = scmp.ne.s32.totalorder %s250, %s266
    %p268 = scmp.eq.s32.totalorder %s28, 0
    %p269 = por %p267, %p268
    %s270 = ssub.s32 %s22, %s29
    %p271 = scmp.eq.s32.totalorder %s270, 0
    %s273 = sadd.s32 %s272, 1
    %s274 = scalar_select %p271, %s272, %s273
    %p277 = pneg %p271
    %p278 = scmp.eq.s32.totalorder %s22, 1
    %p279 = por %p277, %p278
    %p280 = scmp.ne.s32.totalorder %s272, %s275
    %p281 = scmp.eq.s32.totalorder %s22, 0
    %p282 = por %p280, %p281
    %p283 = scmp.ne.s32.totalorder %s272, %s275
    %p284 = scmp.eq.s32.totalorder %s27, 1
    %p285 = por %p283, %p284
    %p286 = scmp.ne.s32.totalorder %s275, %s276
    %p287 = scmp.eq.s32.totalorder %s27, 0
    %p288 = por %p286, %p287
    %p289 = scmp.ne.s32.totalorder %s275, %s276
    %p290 = scmp.eq.s32.totalorder %s28, 1
    %p291 = por %p289, %p290
    %p293 = scmp.ne.s32.totalorder %s276, %s292
    %p294 = scmp.eq.s32.totalorder %s28, 0
    %p295 = por %p293, %p294
    %s296 = ssub.s32 %s22, %s29
    %p297 = scmp.eq.s32.totalorder %s296, 0
    %s299 = sadd.s32 %s298, 1
    %s300 = scalar_select %p297, %s298, %s299
    %p303 = pneg %p297
    %p304 = scmp.eq.s32.totalorder %s22, 1
    %p305 = por %p303, %p304
    %p306 = scmp.ne.s32.totalorder %s298, %s301
    %p307 = scmp.eq.s32.totalorder %s22, 0
    %p308 = por %p306, %p307
    %p309 = scmp.ne.s32.totalorder %s298, %s301
    %p310 = scmp.eq.s32.totalorder %s27, 1
    %p311 = por %p309, %p310
    %p312 = scmp.ne.s32.totalorder %s301, %s302
    %p313 = scmp.eq.s32.totalorder %s27, 0
    %p314 = por %p312, %p313
    %p315 = scmp.ne.s32.totalorder %s301, %s302
    %p316 = scmp.eq.s32.totalorder %s28, 1
    %p317 = por %p315, %p316
    %p319 = scmp.ne.s32.totalorder %s302, %s318
    %p320 = scmp.eq.s32.totalorder %s28, 0
    %p321 = por %p319, %p320
    %s322 = ssub.s32 %s22, %s29
    %p323 = scmp.eq.s32.totalorder %s322, 0
    %s325 = sadd.s32 %s324, 1
    %s326 = scalar_select %p323, %s324, %s325
    %p329 = pneg %p323
    %p330 = scmp.eq.s32.totalorder %s22, 1
    %p331 = por %p329, %p330
    %p332 = scmp.ne.s32.totalorder %s324, %s327
    %p333 = scmp.eq.s32.totalorder %s22, 0
    %p334 = por %p332, %p333
    %p335 = scmp.ne.s32.totalorder %s324, %s327
    %p336 = scmp.eq.s32.totalorder %s27, 1
    %p337 = por %p335, %p336
    %p338 = scmp.ne.s32.totalorder %s327, %s328
    %p339 = scmp.eq.s32.totalorder %s27, 0
    %p340 = por %p338, %p339
    %p341 = scmp.ne.s32.totalorder %s327, %s328
    %p342 = scmp.eq.s32.totalorder %s28, 1
    %p343 = por %p341, %p342
    %p345 = scmp.ne.s32.totalorder %s328, %s344
    %p346 = scmp.eq.s32.totalorder %s28, 0
    %p347 = por %p345, %p346
    %s348 = ssub.s32 %s22, %s29
    %p349 = scmp.eq.s32.totalorder %s348, 0
    %s351 = sadd.s32 %s350, 1
    %s352 = scalar_select %p349, %s350, %s351
    %p355 = pneg %p349
    %p356 = scmp.eq.s32.totalorder %s22, 1
    %p357 = por %p355, %p356
    %p358 = scmp.ne.s32.totalorder %s350, %s353
    %p359 = scmp.eq.s32.totalorder %s22, 0
    %p360 = por %p358, %p359
    %p361 = scmp.ne.s32.totalorder %s350, %s353
    %p362 = scmp.eq.s32.totalorder %s27, 1
    %p363 = por %p361, %p362
    %p364 = scmp.ne.s32.totalorder %s353, %s354
    %p365 = scmp.eq.s32.totalorder %s27, 0
    %p366 = por %p364, %p365
    %p367 = scmp.ne.s32.totalorder %s353, %s354
    %p368 = scmp.eq.s32.totalorder %s28, 1
    %p369 = por %p367, %p368
    %p371 = scmp.ne.s32.totalorder %s354, %s370
    %p372 = scmp.eq.s32.totalorder %s28, 0
    %p373 = por %p371, %p372
    %s374 = ssub.s32 %s22, %s29
    %p375 = scmp.eq.s32.totalorder %s374, 0
    %s377 = sadd.s32 %s376, 1
    %s378 = scalar_select %p375, %s376, %s377
    %p381 = pneg %p375
    %p382 = scmp.eq.s32.totalorder %s22, 1
    %p383 = por %p381, %p382
    %p384 = scmp.ne.s32.totalorder %s376, %s379
    %p385 = scmp.eq.s32.totalorder %s22, 0
    %p386 = por %p384, %p385
    %p387 = scmp.ne.s32.totalorder %s376, %s379
    %p388 = scmp.eq.s32.totalorder %s27, 1
    %p389 = por %p387, %p388
    %p390 = scmp.ne.s32.totalorder %s379, %s380
    %p391 = scmp.eq.s32.totalorder %s27, 0
    %p392 = por %p390, %p391
    %p393 = scmp.ne.s32.totalorder %s379, %s380
    %p394 = scmp.eq.s32.totalorder %s28, 1
    %p395 = por %p393, %p394
    %p397 = scmp.ne.s32.totalorder %s380, %s396
    %p398 = scmp.eq.s32.totalorder %s28, 0
    %p399 = por %p397, %p398
    %s400 = ssub.s32 %s22, %s29
    %p401 = scmp.eq.s32.totalorder %s400, 0
    %s403 = sadd.s32 %s402, 1
    %s404 = scalar_select %p401, %s402, %s403
    %p407 = pneg %p401
    %p408 = scmp.eq.s32.totalorder %s22, 1
    %p409 = por %p407, %p408
    %p410 = scmp.ne.s32.totalorder %s402, %s405
    %p411 = scmp.eq.s32.totalorder %s22, 0
    %p412 = por %p410, %p411
    %p413 = scmp.ne.s32.totalorder %s402, %s405
    %p414 = scmp.eq.s32.totalorder %s27, 1
    %p415 = por %p413, %p414
    %p416 = scmp.ne.s32.totalorder %s405, %s406
    %p417 = scmp.eq.s32.totalorder %s27, 0
    %p418 = por %p416, %p417
    %p419 = scmp.ne.s32.totalorder %s405, %s406
    %p420 = scmp.eq.s32.totalorder %s28, 1
    %p421 = por %p419, %p420
    %p423 = scmp.ne.s32.totalorder %s406, %s422
    %p424 = scmp.eq.s32.totalorder %s28, 0
    %p425 = por %p423, %p424
    %s427 = sadd.s32 %s426, 1
    %p430 = scmp.eq.s32.totalorder %s22, 1
    %p431 = scmp.ne.s32.totalorder %s426, %s428
    %p432 = scmp.eq.s32.totalorder %s22, 0
    %p433 = por %p431, %p432
    %p434 = scmp.ne.s32.totalorder %s426, %s428
    %p435 = scmp.eq.s32.totalorder %s27, 1
    %p436 = por %p434, %p435
    %p437 = scmp.ne.s32.totalorder %s428, %s429
    %p438 = scmp.eq.s32.totalorder %s27, 0
    %p439 = por %p437, %p438
    %p440 = scmp.ne.s32.totalorder %s428, %s429
    %p441 = scmp.eq.s32.totalorder %s28, 1
    %p442 = por %p440, %p441
    %p444 = scmp.ne.s32.totalorder %s429, %s443
    %p445 = scmp.eq.s32.totalorder %s28, 0
    %p446 = por %p444, %p445
    %p447 = scmp.le.s32.totalorder 1, %s22
    %p448 = scmp.lt.s32.totalorder %s22, 3
    %p449 = pnand %p447, %p448
    %p450 = pneg %p449
    // Predicated region
    $region9: #{bert_classifier_forward.2} parent=5 // pred_check
      _
    $region10: #{bert_classifier_forward.2} parent=5 // pred_check_branch
      %452 = sbr.rel (%p449) target = $region12
    $region11: #{bert_classifier_forward.2} parent=5 // pred_region
      %s453 = ssub.s32 %s22, 1
      // Predicated region
      $region13: #{bert_classifier_forward.2} parent=11 // pred_check
        %p454 = pneg %p43
      $region14: #{bert_classifier_forward.2} parent=11 // pred_check_branch
        %456 = sbr.rel (%p454) target = $region16
      $region15: #{bert_classifier_forward.2} parent=11 // pred_region
        _
      $region16: #{bert_classifier_forward.2} parent=11 // pred_fallthru
        _
      // Predicated region
      $region17: #{bert_classifier_forward.2} parent=11 // pred_check
        %p457 = pneg %p64
      $region18: #{bert_classifier_forward.2} parent=11 // pred_check_branch
        %459 = sbr.rel (%p457) target = $region20
      $region19: #{bert_classifier_forward.2} parent=11 // pred_region
        _
      $region20: #{bert_classifier_forward.2} parent=11 // pred_fallthru
        _
      // Predicated region
      $region21: #{bert_classifier_forward.2} parent=11 // pred_check
        %p460 = pneg %p85
      $region22: #{bert_classifier_forward.2} parent=11 // pred_check_branch
        %462 = sbr.rel (%p460) target = $region24
      $region23: #{bert_classifier_forward.2} parent=11 // pred_region
        _
      $region24: #{bert_classifier_forward.2} parent=11 // pred_fallthru
        _
      // Predicated region
      $region25: #{bert_classifier_forward.2} parent=11 // pred_check
        %p463 = pneg %p106
      $region26: #{bert_classifier_forward.2} parent=11 // pred_check_branch
        %465 = sbr.rel (%p463) target = $region28
      $region27: #{bert_classifier_forward.2} parent=11 // pred_region
        _
      $region28: #{bert_classifier_forward.2} parent=11 // pred_fallthru
        _
    $region12: #{bert_classifier_forward.2} parent=5 // pred_fallthru
      _
    %p466 = scmp.lt.s32.totalorder %s22, 2
    // Predicated region
    $region29: #{bert_classifier_forward.2} parent=5 // pred_check
      %p467 = pneg %p466
    $region30: #{bert_classifier_forward.2} parent=5 // pred_check_branch
      %469 = sbr.rel (%p467) target = $region32
    $region31: #{bert_classifier_forward.2} parent=5 // pred_region
      // Predicated region
      $region33: #{bert_classifier_forward.2} parent=31 // pred_check
        %p470 = pneg %p126
      $region34: #{bert_classifier_forward.2} parent=31 // pred_check_branch
        %472 = sbr.rel (%p470) target = $region36
      $region35: #{bert_classifier_forward.2} parent=31 // pred_region
        %p473 = scmp.lt.s32.totalorder %s22, 1
        %s474 = scalar_select %p473, %s22, 1
        %s475 = smul.addr %s474, 4
        %s476 = smul.addr %s475, 8
        %s477 = scalar_lea.vmem %s4, %s476
      $region36: #{bert_classifier_forward.2} parent=31 // pred_fallthru
        _
      // Predicated region
      $region37: #{bert_classifier_forward.2} parent=31 // pred_check
        %p478 = pneg %p152
      $region38: #{bert_classifier_forward.2} parent=31 // pred_check_branch
        %480 = sbr.rel (%p478) target = $region40
      $region39: #{bert_classifier_forward.2} parent=31 // pred_region
        %p481 = scmp.lt.s32.totalorder %s22, 1
        %s482 = scalar_select %p481, %s22, 1
        %s483 = scalar_lea.vmem %s5, %s482
      $region40: #{bert_classifier_forward.2} parent=31 // pred_fallthru
        _
      // Predicated region
      $region41: #{bert_classifier_forward.2} parent=31 // pred_check
        %p484 = pneg %p178
      $region42: #{bert_classifier_forward.2} parent=31 // pred_check_branch
        %486 = sbr.rel (%p484) target = $region44
      $region43: #{bert_classifier_forward.2} parent=31 // pred_region
        %p487 = scmp.lt.s32.totalorder %s22, 1
        %s488 = scalar_select %p487, %s22, 1
        %s489 = smul.addr %s488, 4
        %s490 = smul.addr %s489, 8
        %s491 = scalar_lea.vmem %s6, %s490
      $region44: #{bert_classifier_forward.2} parent=31 // pred_fallthru
        _
      // Predicated region
      $region45: #{bert_classifier_forward.2} parent=31 // pred_check
        %p492 = pneg %p204
      $region46: #{bert_classifier_forward.2} parent=31 // pred_check_branch
        %494 = sbr.rel (%p492) target = $region48
      $region47: #{bert_classifier_forward.2} parent=31 // pred_region
        %p495 = scmp.lt.s32.totalorder %s22, 1
        %s496 = scalar_select %p495, %s22, 1
        %s497 = scalar_lea.vmem %s7, %s496
      $region48: #{bert_classifier_forward.2} parent=31 // pred_fallthru
        _
      // Predicated region
      $region49: #{bert_classifier_forward.2} parent=31 // pred_check
        %p498 = pneg %p230
      $region50: #{bert_classifier_forward.2} parent=31 // pred_check_branch
        %500 = sbr.rel (%p498) target = $region52
      $region51: #{bert_classifier_forward.2} parent=31 // pred_region
        %p501 = scmp.lt.s32.totalorder %s22, 1
        %s502 = scalar_select %p501, %s22, 1
        %s503 = scalar_lea.vmem %s8, %s502
      $region52: #{bert_classifier_forward.2} parent=31 // pred_fallthru
        _
      // Predicated region
      $region53: #{bert_classifier_forward.2} parent=31 // pred_check
        %p504 = pneg %p256
      $region54: #{bert_classifier_forward.2} parent=31 // pred_check_branch
        %506 = sbr.rel (%p504) target = $region56
      $region55: #{bert_classifier_forward.2} parent=31 // pred_region
        %p507 = scmp.lt.s32.totalorder %s22, 1
        %s508 = scalar_select %p507, %s22, 1
        %s509 = scalar_lea.vmem %s9, %s508
      $region56: #{bert_classifier_forward.2} parent=31 // pred_fallthru
        _
      // Predicated region
      $region57: #{bert_classifier_forward.2} parent=31 // pred_check
        %p510 = pneg %p282
      $region58: #{bert_classifier_forward.2} parent=31 // pred_check_branch
        %512 = sbr.rel (%p510) target = $region60
      $region59: #{bert_classifier_forward.2} parent=31 // pred_region
        %p513 = scmp.lt.s32.totalorder %s22, 1
        %s514 = scalar_select %p513, %s22, 1
        %s515 = smul.addr %s514, 4
        %s516 = smul.addr %s515, 8
        %s517 = scalar_lea.vmem %s10, %s516
      $region60: #{bert_classifier_forward.2} parent=31 // pred_fallthru
        _
      // Predicated region
      $region61: #{bert_classifier_forward.2} parent=31 // pred_check
        %p518 = pneg %p308
      $region62: #{bert_classifier_forward.2} parent=31 // pred_check_branch
        %520 = sbr.rel (%p518) target = $region64
      $region63: #{bert_classifier_forward.2} parent=31 // pred_region
        %p521 = scmp.lt.s32.totalorder %s22, 1
        %s522 = scalar_select %p521, %s22, 1
        %s523 = scalar_lea.vmem %s11, %s522
      $region64: #{bert_classifier_forward.2} parent=31 // pred_fallthru
        _
      // Predicated region
      $region65: #{bert_classifier_forward.2} parent=31 // pred_check
        %p524 = pneg %p334
      $region66: #{bert_classifier_forward.2} parent=31 // pred_check_branch
        %526 = sbr.rel (%p524) target = $region68
      $region67: #{bert_classifier_forward.2} parent=31 // pred_region
        %p527 = scmp.lt.s32.totalorder %s22, 1
        %s528 = scalar_select %p527, %s22, 1
        %s529 = smul.addr %s528, 8
        %s530 = smul.addr %s529, 8
        %s531 = scalar_lea.vmem %s12, %s530
      $region68: #{bert_classifier_forward.2} parent=31 // pred_fallthru
        _
      // Predicated region
      $region69: #{bert_classifier_forward.2} parent=31 // pred_check
        %p532 = pneg %p360
      $region70: #{bert_classifier_forward.2} parent=31 // pred_check_branch
        %534 = sbr.rel (%p532) target = $region72
      $region71: #{bert_classifier_forward.2} parent=31 // pred_region
        %p535 = scmp.lt.s32.totalorder %s22, 1
        %s536 = scalar_select %p535, %s22, 1
        %s537 = scalar_lea.vmem %s13, %s536
      $region72: #{bert_classifier_forward.2} parent=31 // pred_fallthru
        _
      // Predicated region
      $region73: #{bert_classifier_forward.2} parent=31 // pred_check
        %p538 = pneg %p386
      $region74: #{bert_classifier_forward.2} parent=31 // pred_check_branch
        %540 = sbr.rel (%p538) target = $region76
      $region75: #{bert_classifier_forward.2} parent=31 // pred_region
        %p541 = scmp.lt.s32.totalorder %s22, 1
        %s542 = scalar_select %p541, %s22, 1
        %s543 = scalar_lea.vmem %s14, %s542
      $region76: #{bert_classifier_forward.2} parent=31 // pred_fallthru
        _
      // Predicated region
      $region77: #{bert_classifier_forward.2} parent=31 // pred_check
        %p544 = pneg %p412
      $region78: #{bert_classifier_forward.2} parent=31 // pred_check_branch
        %546 = sbr.rel (%p544) target = $region80
      $region79: #{bert_classifier_forward.2} parent=31 // pred_region
        %p547 = scmp.lt.s32.totalorder %s22, 1
        %s548 = scalar_select %p547, %s22, 1
        %s549 = scalar_lea.vmem %s15, %s548
      $region80: #{bert_classifier_forward.2} parent=31 // pred_fallthru
        _
    $region32: #{bert_classifier_forward.2} parent=5 // pred_fallthru
      _
    %p550 = scmp.le.s32.totalorder 1, %s22
    %p551 = scmp.lt.s32.totalorder %s22, 3
    %p552 = pnand %p550, %p551
    %p553 = pneg %p552
    // Predicated region
    $region81: #{bert_classifier_forward.2} parent=5 // pred_check
      _
    $region82: #{bert_classifier_forward.2} parent=5 // pred_check_branch
      %555 = sbr.rel (%p552) target = $region84
    $region83: #{bert_classifier_forward.2} parent=5 // pred_region
      %s556 = ssub.s32 %s22, 1
      %p557 = pneg %p43
      %p558 = pneg %p40
      %p559 = pneg %p64
      %p560 = pneg %p61
      %p561 = pneg %p85
      %p562 = pneg %p82
      %p563 = pneg %p106
      %p564 = pneg %p103
      %p565 = scmp.lt.s32.totalorder %s27, 1
      %s566 = scalar_select %p565, %s27, 1
      %s567 = smul.addr %s566, 4
      %s568 = smul.addr %s567, 8
      %s569 = scalar_lea.vmem %s4, %s568
      %p570 = pneg %p132
      %p571 = pneg %p129
      %p572 = scmp.lt.s32.totalorder %s27, 1
      %s573 = scalar_select %p572, %s27, 1
      %s574 = scalar_lea.vmem %s5, %s573
      %p575 = pneg %p158
      %p576 = pneg %p155
      %p577 = scmp.lt.s32.totalorder %s27, 1
      %s578 = scalar_select %p577, %s27, 1
      %s579 = smul.addr %s578, 4
      %s580 = smul.addr %s579, 8
      %s581 = scalar_lea.vmem %s6, %s580
      %p582 = pneg %p184
      %p583 = pneg %p181
      %p584 = scmp.lt.s32.totalorder %s27, 1
      %s585 = scalar_select %p584, %s27, 1
      %s586 = scalar_lea.vmem %s7, %s585
      %p587 = pneg %p210
      %p588 = pneg %p207
      %p589 = scmp.lt.s32.totalorder %s27, 1
      %s590 = scalar_select %p589, %s27, 1
      %s591 = scalar_lea.vmem %s8, %s590
      %p592 = pneg %p236
      %p593 = pneg %p233
      %p594 = scmp.lt.s32.totalorder %s27, 1
      %s595 = scalar_select %p594, %s27, 1
      %s596 = scalar_lea.vmem %s9, %s595
      %p597 = pneg %p262
      %p598 = pneg %p259
      %p599 = scmp.lt.s32.totalorder %s27, 1
      %s600 = scalar_select %p599, %s27, 1
      %s601 = smul.addr %s600, 4
      %s602 = smul.addr %s601, 8
      %s603 = scalar_lea.vmem %s10, %s602
      %p604 = pneg %p288
      %p605 = pneg %p285
      %p606 = scmp.lt.s32.totalorder %s27, 1
      %s607 = scalar_select %p606, %s27, 1
      %s608 = scalar_lea.vmem %s11, %s607
      %p609 = pneg %p314
      %p610 = pneg %p311
      %p611 = scmp.lt.s32.totalorder %s27, 1
      %s612 = scalar_select %p611, %s27, 1
      %s613 = smul.addr %s612, 8
      %s614 = smul.addr %s613, 8
      %s615 = scalar_lea.vmem %s12, %s614
      %p616 = pneg %p340
      %p617 = pneg %p337
      %p618 = scmp.lt.s32.totalorder %s27, 1
      %s619 = scalar_select %p618, %s27, 1
      %s620 = scalar_lea.vmem %s13, %s619
      %p621 = pneg %p366
      %p622 = pneg %p363
      %p623 = scmp.lt.s32.totalorder %s27, 1
      %s624 = scalar_select %p623, %s27, 1
      %s625 = scalar_lea.vmem %s14, %s624
      %p626 = pneg %p392
      %p627 = pneg %p389
      %p628 = scmp.lt.s32.totalorder %s27, 1
      %s629 = scalar_select %p628, %s27, 1
      %s630 = scalar_lea.vmem %s15, %s629
      %p631 = pneg %p418
      %p632 = pneg %p415
      %p633 = pneg %p439
      %p634 = pneg %p436
      %p635 = scmp.lt.s32.totalorder %s27, 1
      %s636 = scalar_select %p635, %s27, 1
      %s637 = smul.addr %s636, 4
      %s638 = smul.addr %s637, 8
      %s639 = scalar_lea.vmem %s4, %s638
      %p640 = scmp.lt.s32.totalorder %s27, 1
      %s641 = scalar_select %p640, %s27, 1
      %s642 = scalar_lea.vmem %s5, %s641
      %p643 = scmp.lt.s32.totalorder %s27, 1
      %s644 = scalar_select %p643, %s27, 1
      %s645 = smul.addr %s644, 4
      %s646 = smul.addr %s645, 8
      %s647 = scalar_lea.vmem %s6, %s646
      %p648 = scmp.lt.s32.totalorder %s27, 1
      %s649 = scalar_select %p648, %s27, 1
      %s650 = scalar_lea.vmem %s7, %s649
      %p651 = scmp.lt.s32.totalorder %s27, 1
      %s652 = scalar_select %p651, %s27, 1
      %s653 = scalar_lea.vmem %s8, %s652
      %p654 = scmp.lt.s32.totalorder %s27, 1
      %s655 = scalar_select %p654, %s27, 1
      %s656 = scalar_lea.vmem %s9, %s655
      %p657 = scmp.lt.s32.totalorder %s27, 1
      %s658 = scalar_select %p657, %s27, 1
      %s659 = smul.addr %s658, 4
      %s660 = smul.addr %s659, 8
      %s661 = scalar_lea.vmem %s10, %s660
      %p662 = scmp.lt.s32.totalorder %s27, 1
      %s663 = scalar_select %p662, %s27, 1
      %s664 = scalar_lea.vmem %s11, %s663
      %p665 = scmp.lt.s32.totalorder %s27, 1
      %s666 = scalar_select %p665, %s27, 1
      %s667 = smul.addr %s666, 8
      %s668 = smul.addr %s667, 8
      %s669 = scalar_lea.vmem %s12, %s668
      %p670 = scmp.lt.s32.totalorder %s27, 1
      %s671 = scalar_select %p670, %s27, 1
      %s672 = scalar_lea.vmem %s13, %s671
      %p673 = scmp.lt.s32.totalorder %s27, 1
      %s674 = scalar_select %p673, %s27, 1
      %s675 = scalar_lea.vmem %s14, %s674
      %p676 = scmp.lt.s32.totalorder %s27, 1
      %s677 = scalar_select %p676, %s27, 1
      %s678 = scalar_lea.vmem %s15, %s677
      %p679 = scmp.eq.s32.totalorder %s27, 0
      // Predicated region
      $region85: #{bert_classifier_forward.2} parent=83 // pred_check
        %p680 = pneg %p679
      $region86: #{bert_classifier_forward.2} parent=83 // pred_check_branch
        %682 = sbr.rel (%p680) target = $region88
      $region87: #{bert_classifier_forward.2} parent=83 // pred_region
        %v683 = vld [vmem:[%s0] sm:$0xff]
        %v684 = vld [vmem:[%s0 + $0x8] sm:$0xff]
        %v685 = vld [vmem:[%s2] sm:$0x1]
        %v686 = vld [vmem:[%s3] sm:$0x1]
        %vm687 = vcmask 261120
        %v688 = vsel %vm687, %v683, 0.0
        %689 = vadd.xlane.f32.xlu0 %v688
        %v690 = vpop.xlane.xlu0 %689
        %v691 = vsel %vm687, %v684, 0.0
        %692 = vadd.xlane.f32.xlu0 %v691
        %v693 = vpop.xlane.xlu0 %692
        %v694 = vrcp.pop 32.0
        %v695 = vmul.f32 %v690, %v694
        %v696 = vmul.f32 %v693, %v694
        %v697 = vsub.f32 %v683, %v695
        %v698 = vsub.f32 %v684, %v696
        %v699 = vmul.f32 %v697, %v697
        %v700 = vmul.f32 %v698, %v698
        %v701 = vsel %vm687, %v699, 0.0
        %702 = vadd.xlane.f32.xlu0 %v701
        %v703 = vpop.xlane.xlu0 %702
        %v704 = vsel %vm687, %v700, 0.0
        %705 = vadd.xlane.f32.xlu0 %v704
        %v706 = vpop.xlane.xlu0 %705
        %v707 = vmul.f32 %v703, %v694
        %v708 = vmul.f32 %v706, %v694
        %v709 = vadd.f32 %v707, 1e-12
        %v710 = vadd.f32 %v708, 1e-12
        %v711 = vrsqrt.pop %v709
        %v712 = vrsqrt.pop %v710
        %v713 = vmul.f32 %v697, %v711
        %v714 = vmul.f32 %v698, %v712
        %v716 = vlaneseq
        %v717 = vshrl.u32 %v716, 7
        %v718 = vsub.s32 0, %v717
        %v719 = vrot.slane %v685, %v718
        %v721 = vmul.f32 %v713, %v719
        %v722 = vmul.f32 %v714, %v719
        %v724 = vlaneseq
        %v725 = vshrl.u32 %v724, 7
        %v726 = vsub.s32 0, %v725
        %v727 = vrot.slane %v686, %v726
        %v729 = vadd.f32 %v721, %v727
        %v730 = vadd.f32 %v722, %v727
        %731 = vst.msk [vmem:[#allocation2] sm:$0xff] %vm687, %v729
        %732 = vst.msk [vmem:[#allocation2 + $0x8] sm:$0xff] %vm687, %v730
      $region88: #{bert_classifier_forward.2} parent=83 // pred_fallthru
        _
      %v733 = vld [vmem:[#allocation2] sm:$0xff]
      %v734 = vld [vmem:[#allocation2 + $0x8] sm:$0xff]
      %v735 = vld [vmem:[%s639] sm:$0xff]
      %v736 = vld [vmem:[%s639 + $0x8] sm:$0xff]
      %v737 = vld [vmem:[%s639 + $0x10] sm:$0xff]
      %v738 = vld [vmem:[%s639 + $0x18] sm:$0xff]
      %v739 = vld [vmem:[%s642] sm:$0x1]
      %v741 = vlaneseq
      %v742 = vshrl.u32 %v741, 7
      %v743 = vsub.s32 0, %v742
      %v744 = vrot.slane %v739, %v743
      %vm746 = vcmask 261120
      %v748 = vsel %vm746, %v733, 0
      %v751 = vsel %vm746, %v734, 0
      %753 = vmatprep.subr.mxu0 0.0
      %754 = vmatpush1.msra.mxu0 %v735
      %755 = vmatprep.subr.mxu0 0.0
      %756 = vmatpush1.msra.mxu0 %v736
      %757 = vmatprep.subr.mxu0 0.0
      %758 = vmatpush1.msra.mxu0 %v737
      %759 = vmatprep.subr.mxu0 0.0
      %760 = vmatpush1.msra.mxu0 %v738
      %761 = vmatprep.subr.mxu0 0.0
      %762 = vmatpush1.msra.mxu0 0.0
      %763 = vmatprep.subr.mxu0 0.0
      %764 = vmatpush1.msra.mxu0 0.0
      %765 = vmatprep.subr.mxu0 0.0
      %766 = vmatpush1.msra.mxu0 0.0
      %767 = vmatprep.subr.mxu0 0.0
      %768 = vmatpush1.msra.mxu0 0.0
      %769 = vmatprep.subr.mxu0 0.0
      %770 = vmatpush1.msra.mxu0 0.0
      %771 = vmatprep.subr.mxu0 0.0
      %772 = vmatpush1.msra.mxu0 0.0
      %773 = vmatprep.subr.mxu0 0.0
      %774 = vmatpush1.msra.mxu0 0.0
      %775 = vmatprep.subr.mxu0 0.0
      %776 = vmatpush1.msra.mxu0 0.0
      %777 = vmatprep.subr.mxu0 0.0
      %778 = vmatpush1.msra.mxu0 0.0
      %779 = vmatprep.subr.mxu0 0.0
      %780 = vmatpush1.msra.mxu0 0.0
      %781 = vmatprep.subr.mxu0 0.0
      %782 = vmatpush1.msra.mxu0 0.0
      %783 = vmatprep.subr.mxu0 0.0
      %784 = vmatpush1.msra.mxu0 0.0
      %785 = vmatprep.subr.mxu0 0.0
      %786 = vmatpush1.msra.mxu0 0.0
      %787 = vmatprep.subr.mxu0 0.0
      %788 = vmatpush1.msra.mxu0 0.0
      %789 = vmatprep.subr.mxu0 0.0
      %790 = vmatpush1.msra.mxu0 0.0
      %791 = vmatprep.subr.mxu0 0.0
      %792 = vmatpush1.msra.mxu0 0.0
      %793 = vmatprep.subr.mxu0 0.0
      %794 = vmatpush1.msra.mxu0 0.0
      %795 = vmatprep.subr.mxu0 0.0
      %796 = vmatpush1.msra.mxu0 0.0
      %797 = vmatprep.subr.mxu0 0.0
      %798 = vmatpush1.msra.mxu0 0.0
      %799 = vmatprep.subr.mxu0 0.0
      %800 = vmatpush1.msra.mxu0 0.0
      %801 = vmatprep.subr.mxu0 0.0
      %802 = vmatpush1.msra.mxu0 0.0
      %803 = vmatprep.subr.mxu0 0.0
      %804 = vmatpush1.msra.mxu0 0.0
      %805 = vmatprep.subr.mxu0 0.0
      %806 = vmatpush1.msra.mxu0 0.0
      %807 = vmatprep.subr.mxu0 0.0
      %808 = vmatpush1.msra.mxu0 0.0
      %809 = vmatprep.subr.mxu0 0.0
      %810 = vmatpush1.msra.mxu0 0.0
      %811 = vmatprep.subr.mxu0 0.0
      %812 = vmatpush1.msra.mxu0 0.0
      %813 = vmatprep.subr.mxu0 0.0
      %814 = vmatpush1.msra.mxu0 0.0
      %815 = vmatprep.subr.mxu0 0.0
      %816 = vmatpush1.msra.mxu0 0.0
      %817 = vmatprep.mubr.f32.mxu0 0.0
      %818 = vmatmul.mubr.f32.gmra.mrb[0].mxu0 %v748
      %v819 = vpop.f32.mrb[0].mxu0
      %v820 = vadd.f32 %v744, %v819
      %v821 = vpop.f32.mrb[0].mxu0
      %822 = vmatprep.mubr.f32.mxu0 0.0
      %823 = vmatmul.mubr.f32.gmra.mrb[0].mxu0 %v751
      %v824 = vpop.f32.mrb[0].mxu0
      %v825 = vadd.f32 %v744, %v824
      %v826 = vpop.f32.mrb[0].mxu0
      %827 = vdwg.mxu0
      %v828 = vld [vmem:[%s1] sm:$0x3]
      %v829 = vld [vmem:[%s647] sm:$0xff]
      %v830 = vld [vmem:[%s647 + $0x8] sm:$0xff]
      %v831 = vld [vmem:[%s647 + $0x10] sm:$0xff]
      %v832 = vld [vmem:[%s647 + $0x18] sm:$0xff]
      %834 = vrot.lane.b32.xlu0 %v820, 96
      %v835 = vpop.permute.xlu0 %834
      %vm836 = vcmask 64512
      %v837 = vsel %vm836, %v820, 0
      %v839 = vsel %vm836, %v835, 0
      %841 = vmatprep.subr.mxu0 0.0
      %842 = vmatpush1.xpose.msra.mxu0 %v839
      %843 = vmatprep.subr.mxu0 0.0
      %844 = vmatpush1.xpose.msra.mxu0 0.0
      %845 = vmatprep.subr.mxu0 0.0
      %846 = vmatpush1.xpose.msra.mxu0 0.0
      %847 = vmatprep.subr.mxu0 0.0
      %848 = vmatpush1.xpose.msra.mxu0 0.0
      %849 = vmatprep.subr.mxu0 0.0
      %850 = vmatpush1.xpose.msra.mxu0 0.0
      %851 = vmatprep.subr.mxu0 0.0
      %852 = vmatpush1.xpose.msra.mxu0 0.0
      %853 = vmatprep.subr.mxu0 0.0
      %854 = vmatpush1.xpose.msra.mxu0 0.0
      %855 = vmatprep.subr.mxu0 0.0
      %856 = vmatpush1.xpose.msra.mxu0 0.0
      %857 = vmatprep.subr.mxu0 0.0
      %858 = vmatpush1.xpose.msra.mxu0 0.0
      %859 = vmatprep.subr.mxu0 0.0
      %860 = vmatpush1.xpose.msra.mxu0 0.0
      %861 = vmatprep.subr.mxu0 0.0
      %862 = vmatpush1.xpose.msra.mxu0 0.0
      %863 = vmatprep.subr.mxu0 0.0
      %864 = vmatpush1.xpose.msra.mxu0 0.0
      %865 = vmatprep.subr.mxu0 0.0
      %866 = vmatpush1.xpose.msra.mxu0 0.0
      %867 = vmatprep.subr.mxu0 0.0
      %868 = vmatpush1.xpose.msra.mxu0 0.0
      %869 = vmatprep.subr.mxu0 0.0
      %870 = vmatpush1.xpose.msra.mxu0 0.0
      %871 = vmatprep.subr.mxu0 0.0
      %872 = vmatpush1.xpose.msra.mxu0 0.0
      %873 = vmatprep.subr.mxu0 0.0
      %874 = vmatpush1.xpose.msra.mxu0 0.0
      %875 = vmatprep.subr.mxu0 0.0
      %876 = vmatpush1.xpose.msra.mxu0 0.0
      %877 = vmatprep.subr.mxu0 0.0
      %878 = vmatpush1.xpose.msra.mxu0 0.0
      %879 = vmatprep.subr.mxu0 0.0
      %880 = vmatpush1.xpose.msra.mxu0 0.0
      %881 = vmatprep.subr.mxu0 0.0
      %882 = vmatpush1.xpose.msra.mxu0 0.0
      %883 = vmatprep.subr.mxu0 0.0
      %884 = vmatpush1.xpose.msra.mxu0 0.0
      %885 = vmatprep.subr.mxu0 0.0
      %886 = vmatpush1.xpose.msra.mxu0 0.0
      %887 = vmatprep.subr.mxu0 0.0
      %888 = vmatpush1.xpose.msra.mxu0 0.0
      %889 = vmatprep.subr.mxu0 0.0
      %890 = vmatpush1.xpose.msra.mxu0 0.0
      %891 = vmatprep.subr.mxu0 0.0
      %892 = vmatpush1.xpose.msra.mxu0 0.0
      %893 = vmatprep.subr.mxu0 0.0
      %894 = vmatpush1.xpose.msra.mxu0 0.0
      %895 = vmatprep.subr.mxu0 0.0
      %896 = vmatpush1.xpose.msra.mxu0 0.0
      %897 = vmatprep.subr.mxu0 0.0
      %898 = vmatpush1.xpose.msra.mxu0 0.0
      %899 = vmatprep.subr.mxu0 0.0
      %900 = vmatpush1.xpose.msra.mxu0 0.0
      %901 = vmatprep.subr.mxu0 0.0
      %902 = vmatpush1.xpose.msra.mxu0 0.0
      %903 = vmatprep.subr.mxu0 0.0
      %904 = vmatpush1.xpose.msra.mxu0 0.0
      %905 = vmatprep.mubr.f32.mxu0 0.0
      %906 = vmatmul.mubr.f32.gmra.mrb[0].mxu0 %v837
      %v907 = vpop.f32.mrb[0].mxu0
      %v908 = vadd.f32 0.0, %v907
      %v909 = vpop.f32.mrb[0].mxu0
      %910 = vdwg.mxu0
      %912 = vrot.lane.b32.xlu0 %v825, 96
      %v913 = vpop.permute.xlu0 %912
      %v914 = vsel %vm836, %v825, 0
      %v916 = vsel %vm836, %v913, 0
      %918 = vmatprep.subr.mxu0 0.0
      %919 = vmatpush1.xpose.msra.mxu0 %v916
      %920 = vmatprep.subr.mxu0 0.0
      %921 = vmatpush1.xpose.msra.mxu0 0.0
      %922 = vmatprep.subr.mxu0 0.0
      %923 = vmatpush1.xpose.msra.mxu0 0.0
      %924 = vmatprep.subr.mxu0 0.0
      %925 = vmatpush1.xpose.msra.mxu0 0.0
      %926 = vmatprep.subr.mxu0 0.0
      %927 = vmatpush1.xpose.msra.mxu0 0.0
      %928 = vmatprep.subr.mxu0 0.0
      %929 = vmatpush1.xpose.msra.mxu0 0.0
      %930 = vmatprep.subr.mxu0 0.0
      %931 = vmatpush1.xpose.msra.mxu0 0.0
      %932 = vmatprep.subr.mxu0 0.0
      %933 = vmatpush1.xpose.msra.mxu0 0.0
      %934 = vmatprep.subr.mxu0 0.0
      %935 = vmatpush1.xpose.msra.mxu0 0.0
      %936 = vmatprep.subr.mxu0 0.0
      %937 = vmatpush1.xpose.msra.mxu0 0.0
      %938 = vmatprep.subr.mxu0 0.0
      %939 = vmatpush1.xpose.msra.mxu0 0.0
      %940 = vmatprep.subr.mxu0 0.0
      %941 = vmatpush1.xpose.msra.mxu0 0.0
      %942 = vmatprep.subr.mxu0 0.0
      %943 = vmatpush1.xpose.msra.mxu0 0.0
      %944 = vmatprep.subr.mxu0 0.0
      %945 = vmatpush1.xpose.msra.mxu0 0.0
      %946 = vmatprep.subr.mxu0 0.0
      %947 = vmatpush1.xpose.msra.mxu0 0.0
      %948 = vmatprep.subr.mxu0 0.0
      %949 = vmatpush1.xpose.msra.mxu0 0.0
      %950 = vmatprep.subr.mxu0 0.0
      %951 = vmatpush1.xpose.msra.mxu0 0.0
      %952 = vmatprep.subr.mxu0 0.0
      %953 = vmatpush1.xpose.msra.mxu0 0.0
      %954 = vmatprep.subr.mxu0 0.0
      %955 = vmatpush1.xpose.msra.mxu0 0.0
      %956 = vmatprep.subr.mxu0 0.0
      %957 = vmatpush1.xpose.msra.mxu0 0.0
      %958 = vmatprep.subr.mxu0 0.0
      %959 = vmatpush1.xpose.msra.mxu0 0.0
      %960 = vmatprep.subr.mxu0 0.0
      %961 = vmatpush1.xpose.msra.mxu0 0.0
      %962 = vmatprep.subr.mxu0 0.0
      %963 = vmatpush1.xpose.msra.mxu0 0.0
      %964 = vmatprep.subr.mxu0 0.0
      %965 = vmatpush1.xpose.msra.mxu0 0.0
      %966 = vmatprep.subr.mxu0 0.0
      %967 = vmatpush1.xpose.msra.mxu0 0.0
      %968 = vmatprep.subr.mxu0 0.0
      %969 = vmatpush1.xpose.msra.mxu0 0.0
      %970 = vmatprep.subr.mxu0 0.0
      %971 = vmatpush1.xpose.msra.mxu0 0.0
      %972 = vmatprep.subr.mxu0 0.0
      %973 = vmatpush1.xpose.msra.mxu0 0.0
      %974 = vmatprep.subr.mxu0 0.0
      %975 = vmatpush1.xpose.msra.mxu0 0.0
      %976 = vmatprep.subr.mxu0 0.0
      %977 = vmatpush1.xpose.msra.mxu0 0.0
      %978 = vmatprep.subr.mxu0 0.0
      %979 = vmatpush1.xpose.msra.mxu0 0.0
      %980 = vmatprep.subr.mxu0 0.0
      %981 = vmatpush1.xpose.msra.mxu0 0.0
      %982 = vmatprep.mubr.f32.mxu0 0.0
      %983 = vmatmul.mubr.f32.gmra.mrb[0].mxu0 %v914
      %v984 = vpop.f32.mrb[0].mxu0
      %v985 = vadd.f32 0.0, %v984
      %v986 = vpop.f32.mrb[0].mxu0
      %987 = vdwg.mxu0
      %v988 = vmul.f32 %v908, 0.35355338
      %v989 = vmul.f32 %v985, 0.35355338
      %v992 = vunpack.c.l.s4 1966171168
      %v993 = vunpack.c.0.s8 %v992
      %v994 = vlaneseq
      %v995 = vshrl.u32 %v994, 7
      %v996 = vsub.s32 %v993, %v995
      %v997 = vrot.slane %v828, %v996
      %v998 = vcombine.high %v997, %v997
      %v1000 = vunpack.c.l.s4 1966171168
      %v1001 = vunpack.c.0.s8 %v1000
      %v1002 = vlaneseq
      %v1003 = vshrl.u32 %v1002, 7
      %v1004 = vsub.s32 %v1001, %v1003
      %v1005 = vrot.slane %v997, %v1004
      %v1007 = vunpack.c.l.s4 1966171168
      %v1008 = vunpack.c.0.s8 %v1007
      %v1009 = vlaneseq
      %v1010 = vshrl.u32 %v1009, 7
      %v1011 = vsub.s32 %v1008, %v1010
      %v1012 = vrot.slane %v998, %v1011
      %v1013 = vlaneseq
      %v1014 = vshrl.u32 %v1013, 7
      %v1015 = vsub.s32 0, %v1014
      %v1016 = vrot.slane %v1005, %v1015
      %v1017 = vlaneseq
      %v1018 = vshrl.u32 %v1017, 7
      %v1019 = vsub.s32 0, %v1018
      %v1020 = vrot.slane %v1012, %v1019
      %v1023 = vadd.f32 %v988, %v1016
      %v1024 = vadd.f32 %v989, %v1020
      %v1025 = vsel %vm836, %v1023, -inf
      %1026 = vmax.xlane.f32.xlu0 %v1025
      %v1027 = vpop.xlane.xlu0 %1026
      %v1028 = vsel %vm836, %v1024, -inf
      %1029 = vmax.xlane.f32.xlu0 %v1028
      %v1030 = vpop.xlane.xlu0 %1029
      %v1031 = vsub.f32 %v1023, %v1027
      %v1032 = vsub.f32 %v1024, %v1030
      %v1033 = vmul.f32 %v1031, 1.442695
      %v1034 = vpow.pop %v1033
      %v1035 = vmul.f32 %v1032, 1.442695
      %v1036 = vpow.pop %v1035
      %v1037 = vsel %vm836, %v1034, 0.0
      %1038 = vadd.xlane.f32.xlu0 %v1037
      %v1039 = vpop.xlane.xlu0 %1038
      %v1040 = vsel %vm836, %v1036, 0.0
      %1041 = vadd.xlane.f32.xlu0 %v1040
      %v1042 = vpop.xlane.xlu0 %1041
      %v1043 = vrcp.pop %v1039
      %v1044 = vrcp.pop %v1042
      %v1045 = vmul.f32 %v1034, %v1043
      %v1046 = vmul.f32 %v1036, %v1044
      %1047 = vrot.lane.b32.xlu0 %v820, 64
      %v1048 = vpop.permute.xlu0 %1047
      %v1051 = vsel %vm836, %v1045, 0
      %1053 = vmatprep.subr.mxu0 0.0
      %1054 = vmatpush1.msra.mxu0 %v1048
      %1055 = vmatprep.subr.mxu0 0.0
      %1056 = vmatpush1.msra.mxu0 0.0
      %1057 = vmatprep.subr.mxu0 0.0
      %1058 = vmatpush1.msra.mxu0 0.0
      %1059 = vmatprep.subr.mxu0 0.0
      %1060 = vmatpush1.msra.mxu0 0.0
      %1061 = vmatprep.subr.mxu0 0.0
      %1062 = vmatpush1.msra.mxu0 0.0
      %1063 = vmatprep.subr.mxu0 0.0
      %1064 = vmatpush1.msra.mxu0 0.0
      %1065 = vmatprep.subr.mxu0 0.0
      %1066 = vmatpush1.msra.mxu0 0.0
      %1067 = vmatprep.subr.mxu0 0.0
      %1068 = vmatpush1.msra.mxu0 0.0
      %1069 = vmatprep.subr.mxu0 0.0
      %1070 = vmatpush1.msra.mxu0 0.0
      %1071 = vmatprep.subr.mxu0 0.0
      %1072 = vmatpush1.msra.mxu0 0.0
      %1073 = vmatprep.subr.mxu0 0.0
      %1074 = vmatpush1.msra.mxu0 0.0
      %1075 = vmatprep.subr.mxu0 0.0
      %1076 = vmatpush1.msra.mxu0 0.0
      %1077 = vmatprep.subr.mxu0 0.0
      %1078 = vmatpush1.msra.mxu0 0.0
      %1079 = vmatprep.subr.mxu0 0.0
      %1080 = vmatpush1.msra.mxu0 0.0
      %1081 = vmatprep.subr.mxu0 0.0
      %1082 = vmatpush1.msra.mxu0 0.0
      %1083 = vmatprep.subr.mxu0 0.0
      %1084 = vmatpush1.msra.mxu0 0.0
      %1085 = vmatprep.subr.mxu0 0.0
      %1086 = vmatpush1.msra.mxu0 0.0
      %1087 = vmatprep.subr.mxu0 0.0
      %1088 = vmatpush1.msra.mxu0 0.0
      %1089 = vmatprep.subr.mxu0 0.0
      %1090 = vmatpush1.msra.mxu0 0.0
      %1091 = vmatprep.subr.mxu0 0.0
      %1092 = vmatpush1.msra.mxu0 0.0
      %1093 = vmatprep.subr.mxu0 0.0
      %1094 = vmatpush1.msra.mxu0 0.0
      %1095 = vmatprep.subr.mxu0 0.0
      %1096 = vmatpush1.msra.mxu0 0.0
      %1097 = vmatprep.subr.mxu0 0.0
      %1098 = vmatpush1.msra.mxu0 0.0
      %1099 = vmatprep.subr.mxu0 0.0
      %1100 = vmatpush1.msra.mxu0 0.0
      %1101 = vmatprep.subr.mxu0 0.0
      %1102 = vmatpush1.msra.mxu0 0.0
      %1103 = vmatprep.subr.mxu0 0.0
      %1104 = vmatpush1.msra.mxu0 0.0
      %1105 = vmatprep.subr.mxu0 0.0
      %1106 = vmatpush1.msra.mxu0 0.0
      %1107 = vmatprep.subr.mxu0 0.0
      %1108 = vmatpush1.msra.mxu0 0.0
      %1109 = vmatprep.subr.mxu0 0.0
      %1110 = vmatpush1.msra.mxu0 0.0
      %1111 = vmatprep.subr.mxu0 0.0
      %1112 = vmatpush1.msra.mxu0 0.0
      %1113 = vmatprep.subr.mxu0 0.0
      %1114 = vmatpush1.msra.mxu0 0.0
      %1115 = vmatprep.subr.mxu0 0.0
      %1116 = vmatpush1.msra.mxu0 0.0
      %1117 = vmatprep.mubr.f32.mxu0 0.0
      %1118 = vmatmul.mubr.f32.gmra.mrb[0].mxu0 %v1051
      %v1119 = vpop.f32.mrb[0].mxu0
      %v1120 = vadd.f32 0.0, %v1119
      %v1121 = vpop.f32.mrb[0].mxu0
      %1122 = vdwg.mxu0
      %1123 = vrot.lane.b32.xlu0 %v825, 64
      %v1124 = vpop.permute.xlu0 %1123
      %v1127 = vsel %vm836, %v1046, 0
      %1129 = vmatprep.subr.mxu0 0.0
      %1130 = vmatpush1.msra.mxu0 %v1124
      %1131 = vmatprep.subr.mxu0 0.0
      %1132 = vmatpush1.msra.mxu0 0.0
      %1133 = vmatprep.subr.mxu0 0.0
      %1134 = vmatpush1.msra.mxu0 0.0
      %1135 = vmatprep.subr.mxu0 0.0
      %1136 = vmatpush1.msra.mxu0 0.0
      %1137 = vmatprep.subr.mxu0 0.0
      %1138 = vmatpush1.msra.mxu0 0.0
      %1139 = vmatprep.subr.mxu0 0.0
      %1140 = vmatpush1.msra.mxu0 0.0
      %1141 = vmatprep.subr.mxu0 0.0
      %1142 = vmatpush1.msra.mxu0 0.0
      %1143 = vmatprep.subr.mxu0 0.0
      %1144 = vmatpush1.msra.mxu0 0.0
      %1145 = vmatprep.subr.mxu0 0.0
      %1146 = vmatpush1.msra.mxu0 0.0
      %1147 = vmatprep.subr.mxu0 0.0
      %1148 = vmatpush1.msra.mxu0 0.0
      %1149 = vmatprep.subr.mxu0 0.0
      %1150 = vmatpush1.msra.mxu0 0.0
      %1151 = vmatprep.subr.mxu0 0.0
      %1152 = vmatpush1.msra.mxu0 0.0
      %1153 = vmatprep.subr.mxu0 0.0
      %1154 = vmatpush1.msra.mxu0 0.0
      %1155 = vmatprep.subr.mxu0 0.0
      %1156 = vmatpush1.msra.mxu0 0.0
      %1157 = vmatprep.subr.mxu0 0.0
      %1158 = vmatpush1.msra.mxu0 0.0
      %1159 = vmatprep.subr.mxu0 0.0
      %1160 = vmatpush1.msra.mxu0 0.0
      %1161 = vmatprep.subr.mxu0 0.0
      %1162 = vmatpush1.msra.mxu0 0.0
      %1163 = vmatprep.subr.mxu0 0.0
      %1164 = vmatpush1.msra.mxu0 0.0
      %1165 = vmatprep.subr.mxu0 0.0
      %1166 = vmatpush1.msra.mxu0 0.0
      %1167 = vmatprep.subr.mxu0 0.0
      %1168 = vmatpush1.msra.mxu0 0.0
      %1169 = vmatprep.subr.mxu0 0.0
      %1170 = vmatpush1.msra.mxu0 0.0
      %1171 = vmatprep.subr.mxu0 0.0
      %1172 = vmatpush1.msra.mxu0 0.0
      %1173 = vmatprep.subr.mxu0 0.0
      %1174 = vmatpush1.msra.mxu0 0.0
      %1175 = vmatprep.subr.mxu0 0.0
      %1176 = vmatpush1.msra.mxu0 0.0
      %1177 = vmatprep.subr.mxu0 0.0
      %1178 = vmatpush1.msra.mxu0 0.0
      %1179 = vmatprep.subr.mxu0 0.0
      %1180 = vmatpush1.msra.mxu0 0.0
      %1181 = vmatprep.subr.mxu0 0.0
      %1182 = vmatpush1.msra.mxu0 0.0
      %1183 = vmatprep.subr.mxu0 0.0
      %1184 = vmatpush1.msra.mxu0 0.0
      %1185 = vmatprep.subr.mxu0 0.0
      %1186 = vmatpush1.msra.mxu0 0.0
      %1187 = vmatprep.subr.mxu0 0.0
      %1188 = vmatpush1.msra.mxu0 0.0
      %1189 = vmatprep.subr.mxu0 0.0
      %1190 = vmatpush1.msra.mxu0 0.0
      %1191 = vmatprep.subr.mxu0 0.0
      %1192 = vmatpush1.msra.mxu0 0.0
      %1193 = vmatprep.mubr.f32.mxu0 0.0
      %1194 = vmatmul.mubr.f32.gmra.mrb[0].mxu0 %v1127
      %v1195 = vpop.f32.mrb[0].mxu0
      %v1196 = vadd.f32 0.0, %v1195
      %v1197 = vpop.f32.mrb[0].mxu0
      %1198 = vdwg.mxu0
      %1199 = vrot.lane.b32.xlu0 %v820, 120
      %v1200 = vpop.permute.xlu0 %1199
      %1201 = vrot.lane.b32.xlu0 %v820, 88
      %v1202 = vpop.permute.xlu0 %1201
      %v1203 = vsel %vm836, %v1200, 0
      %v1205 = vsel %vm836, %v1202, 0
      %1207 = vmatprep.subr.mxu0 0.0
      %1208 = vmatpush1.xpose.msra.mxu0 %v1205
      %1209 = vmatprep.subr.mxu0 0.0
      %1210 = vmatpush1.xpose.msra.mxu0 0.0
      %1211 = vmatprep.subr.mxu0 0.0
      %1212 = vmatpush1.xpose.msra.mxu0 0.0
      %1213 = vmatprep.subr.mxu0 0.0
      %1214 = vmatpush1.xpose.msra.mxu0 0.0
      %1215 = vmatprep.subr.mxu0 0.0
      %1216 = vmatpush1.xpose.msra.mxu0 0.0
      %1217 = vmatprep.subr.mxu0 0.0
      %1218 = vmatpush1.xpose.msra.mxu0 0.0
      %1219 = vmatprep.subr.mxu0 0.0
      %1220 = vmatpush1.xpose.msra.mxu0 0.0
      %1221 = vmatprep.subr.mxu0 0.0
      %1222 = vmatpush1.xpose.msra.mxu0 0.0
      %1223 = vmatprep.subr.mxu0 0.0
      %1224 = vmatpush1.xpose.msra.mxu0 0.0
      %1225 = vmatprep.subr.mxu0 0.0
      %1226 = vmatpush1.xpose.msra.mxu0 0.0
      %1227 = vmatprep.subr.mxu0 0.0
      %1228 = vmatpush1.xpose.msra.mxu0 0.0
      %1229 = vmatprep.subr.mxu0 0.0
      %1230 = vmatpush1.xpose.msra.mxu0 0.0
      %1231 = vmatprep.subr.mxu0 0.0
      %1232 = vmatpush1.xpose.msra.mxu0 0.0
      %1233 = vmatprep.subr.mxu0 0.0
      %1234 = vmatpush1.xpose.msra.mxu0 0.0
      %1235 = vmatprep.subr.mxu0 0.0
      %1236 = vmatpush1.xpose.msra.mxu0 0.0
      %1237 = vmatprep.subr.mxu0 0.0
      %1238 = vmatpush1.xpose.msra.mxu0 0.0
      %1239 = vmatprep.subr.mxu0 0.0
      %1240 = vmatpush1.xpose.msra.mxu0 0.0
      %1241 = vmatprep.subr.mxu0 0.0
      %1242 = vmatpush1.xpose.msra.mxu0 0.0
      %1243 = vmatprep.subr.mxu0 0.0
      %1244 = vmatpush1.xpose.msra.mxu0 0.0
      %1245 = vmatprep.subr.mxu0 0.0
      %1246 = vmatpush1.xpose.msra.mxu0 0.0
      %1247 = vmatprep.subr.mxu0 0.0
      %1248 = vmatpush1.xpose.msra.mxu0 0.0
      %1249 = vmatprep.subr.mxu0 0.0
      %1250 = vmatpush1.xpose.msra.mxu0 0.0
      %1251 = vmatprep.subr.mxu0 0.0
      %1252 = vmatpush1.xpose.msra.mxu0 0.0
      %1253 = vmatprep.subr.mxu0 0.0
      %1254 = vmatpush1.xpose.msra.mxu0 0.0
      %1255 = vmatprep.subr.mxu0 0.0
      %1256 = vmatpush1.xpose.msra.mxu0 0.0
      %1257 = vmatprep.subr.mxu0 0.0
      %1258 = vmatpush1.xpose.msra.mxu0 0.0
      %1259 = vmatprep.subr.mxu0 0.0
      %1260 = vmatpush1.xpose.msra.mxu0 0.0
      %1261 = vmatprep.subr.mxu0 0.0
      %1262 = vmatpush1.xpose.msra.mxu0 0.0
      %1263 = vmatprep.subr.mxu0 0.0
      %1264 = vmatpush1.xpose.msra.mxu0 0.0
      %1265 = vmatprep.subr.mxu0 0.0
      %1266 = vmatpush1.xpose.msra.mxu0 0.0
      %1267 = vmatprep.subr.mxu0 0.0
      %1268 = vmatpush1.xpose.msra.mxu0 0.0
      %1269 = vmatprep.subr.mxu0 0.0
      %1270 = vmatpush1.xpose.msra.mxu0 0.0
      %1271 = vmatprep.mubr.f32.mxu0 0.0
      %1272 = vmatmul.mubr.f32.gmra.mrb[0].mxu0 %v1203
      %v1273 = vpop.f32.mrb[0].mxu0
      %v1274 = vadd.f32 0.0, %v1273
      %v1275 = vpop.f32.mrb[0].mxu0
      %1276 = vdwg.mxu0
      %1277 = vrot.lane.b32.xlu0 %v825, 120
      %v1278 = vpop.permute.xlu0 %1277
      %1279 = vrot.lane.b32.xlu0 %v825, 88
      %v1280 = vpop.permute.xlu0 %1279
      %v1281 = vsel %vm836, %v1278, 0
      %v1283 = vsel %vm836, %v1280, 0
      %1285 = vmatprep.subr.mxu0 0.0
      %1286 = vmatpush1.xpose.msra.mxu0 %v1283
      %1287 = vmatprep.subr.mxu0 0.0
      %1288 = vmatpush1.xpose.msra.mxu0 0.0
      %1289 = vmatprep.subr.mxu0 0.0
      %1290 = vmatpush1.xpose.msra.mxu0 0.0
      %1291 = vmatprep.subr.mxu0 0.0
      %1292 = vmatpush1.xpose.msra.mxu0 0.0
      %1293 = vmatprep.subr.mxu0 0.0
      %1294 = vmatpush1.xpose.msra.mxu0 0.0
      %1295 = vmatprep.subr.mxu0 0.0
      %1296 = vmatpush1.xpose.msra.mxu0 0.0
      %1297 = vmatprep.subr.mxu0 0.0
      %1298 = vmatpush1.xpose.msra.mxu0 0.0
      %1299 = vmatprep.subr.mxu0 0.0
      %1300 = vmatpush1.xpose.msra.mxu0 0.0
      %1301 = vmatprep.subr.mxu0 0.0
      %1302 = vmatpush1.xpose.msra.mxu0 0.0
      %1303 = vmatprep.subr.mxu0 0.0
      %1304 = vmatpush1.xpose.msra.mxu0 0.0
      %1305 = vmatprep.subr.mxu0 0.0
      %1306 = vmatpush1.xpose.msra.mxu0 0.0
      %1307 = vmatprep.subr.mxu0 0.0
      %1308 = vmatpush1.xpose.msra.mxu0 0.0
      %1309 = vmatprep.subr.mxu0 0.0
      %1310 = vmatpush1.xpose.msra.mxu0 0.0
      %1311 = vmatprep.subr.mxu0 0.0
      %1312 = vmatpush1.xpose.msra.mxu0 0.0
      %1313 = vmatprep.subr.mxu0 0.0
      %1314 = vmatpush1.xpose.msra.mxu0 0.0
      %1315 = vmatprep.subr.mxu0 0.0
      %1316 = vmatpush1.xpose.msra.mxu0 0.0
      %1317 = vmatprep.subr.mxu0 0.0
      %1318 = vmatpush1.xpose.msra.mxu0 0.0
      %1319 = vmatprep.subr.mxu0 0.0
      %1320 = vmatpush1.xpose.msra.mxu0 0.0
      %1321 = vmatprep.subr.mxu0 0.0
      %1322 = vmatpush1.xpose.msra.mxu0 0.0
      %1323 = vmatprep.subr.mxu0 0.0
      %1324 = vmatpush1.xpose.msra.mxu0 0.0
      %1325 = vmatprep.subr.mxu0 0.0
      %1326 = vmatpush1.xpose.msra.mxu0 0.0
      %1327 = vmatprep.subr.mxu0 0.0
      %1328 = vmatpush1.xpose.msra.mxu0 0.0
      %1329 = vmatprep.subr.mxu0 0.0
      %1330 = vmatpush1.xpose.msra.mxu0 0.0
      %1331 = vmatprep.subr.mxu0 0.0
      %1332 = vmatpush1.xpose.msra.mxu0 0.0
      %1333 = vmatprep.subr.mxu0 0.0
      %1334 = vmatpush1.xpose.msra.mxu0 0.0
      %1335 = vmatprep.subr.mxu0 0.0
      %1336 = vmatpush1.xpose.msra.mxu0 0.0
      %1337 = vmatprep.subr.mxu0 0.0
      %1338 = vmatpush1.xpose.msra.mxu0 0.0
      %1339 = vmatprep.subr.mxu0 0.0
      %1340 = vmatpush1.xpose.msra.mxu0 0.0
      %1341 = vmatprep.subr.mxu0 0.0
      %1342 = vmatpush1.xpose.msra.mxu0 0.0
      %1343 = vmatprep.subr.mxu0 0.0
      %1344 = vmatpush1.xpose.msra.mxu0 0.0
      %1345 = vmatprep.subr.mxu0 0.0
      %1346 = vmatpush1.xpose.msra.mxu0 0.0
      %1347 = vmatprep.subr.mxu0 0.0
      %1348 = vmatpush1.xpose.msra.mxu0 0.0
      %1349 = vmatprep.mubr.f32.mxu0 0.0
      %1350 = vmatmul.mubr.f32.gmra.mrb[0].mxu0 %v1281
      %v1351 = vpop.f32.mrb[0].mxu0
      %v1352 = vadd.f32 0.0, %v1351
      %v1353 = vpop.f32.mrb[0].mxu0
      %1354 = vdwg.mxu0
      %v1355 = vmul.f32 %v1274, 0.35355338
      %v1356 = vmul.f32 %v1352, 0.35355338
      %v1357 = vadd.f32 %v1355, %v1016
      %v1358 = vadd.f32 %v1356, %v1020
      %v1359 = vsel %vm836, %v1357, -inf
      %1360 = vmax.xlane.f32.xlu0 %v1359
      %v1361 = vpop.xlane.xlu0 %1360
      %v1362 = vsel %vm836, %v1358, -inf
      %1363 = vmax.xlane.f32.xlu0 %v1362
      %v1364 = vpop.xlane.xlu0 %1363
      %v1365 = vsub.f32 %v1357, %v1361
      %v1366 = vsub.f32 %v1358, %v1364
      %v1367 = vmul.f32 %v1365, 1.442695
      %v1368 = vpow.pop %v1367
      %v1369 = vmul.f32 %v1366, 1.442695
      %v1370 = vpow.pop %v1369
      %v1371 = vsel %vm836, %v1368, 0.0
      %1372 = vadd.xlane.f32.xlu0 %v1371
      %v1373 = vpop.xlane.xlu0 %1372
      %v1374 = vsel %vm836, %v1370, 0.0
      %1375 = vadd.xlane.f32.xlu0 %v1374
      %v1376 = vpop.xlane.xlu0 %1375
      %v1377 = vrcp.pop %v1373
      %v1378 = vrcp.pop %v1376
      %v1379 = vmul.f32 %v1368, %v1377
      %v1380 = vmul.f32 %v1370, %v1378
      %1381 = vrot.lane.b32.xlu0 %v820, 56
      %v1382 = vpop.permute.xlu0 %1381
      %v1385 = vsel %vm836, %v1379, 0
      %1387 = vmatprep.subr.mxu0 0.0
      %1388 = vmatpush1.msra.mxu0 %v1382
      %1389 = vmatprep.subr.mxu0 0.0
      %1390 = vmatpush1.msra.mxu0 0.0
      %1391 = vmatprep.subr.mxu0 0.0
      %1392 = vmatpush1.msra.mxu0 0.0
      %1393 = vmatprep.subr.mxu0 0.0
      %1394 = vmatpush1.msra.mxu0 0.0
      %1395 = vmatprep.subr.mxu0 0.0
      %1396 = vmatpush1.msra.mxu0 0.0
      %1397 = vmatprep.subr.mxu0 0.0
      %1398 = vmatpush1.msra.mxu0 0.0
      %1399 = vmatprep.subr.mxu0 0.0
      %1400 = vmatpush1.msra.mxu0 0.0
      %1401 = vmatprep.subr.mxu0 0.0
      %1402 = vmatpush1.msra.mxu0 0.0
      %1403 = vmatprep.subr.mxu0 0.0
      %1404 = vmatpush1.msra.mxu0 0.0
      %1405 = vmatprep.subr.mxu0 0.0
      %1406 = vmatpush1.msra.mxu0 0.0
      %1407 = vmatprep.subr.mxu0 0.0
      %1408 = vmatpush1.msra.mxu0 0.0
      %1409 = vmatprep.subr.mxu0 0.0
      %1410 = vmatpush1.msra.mxu0 0.0
      %1411 = vmatprep.subr.mxu0 0.0
      %1412 = vmatpush1.msra.mxu0 0.0
      %1413 = vmatprep.subr.mxu0 0.0
      %1414 = vmatpush1.msra.mxu0 0.0
      %1415 = vmatprep.subr.mxu0 0.0
      %1416 = vmatpush1.msra.mxu0 0.0
      %1417 = vmatprep.subr.mxu0 0.0
      %1418 = vmatpush1.msra.mxu0 0.0
      %1419 = vmatprep.subr.mxu0 0.0
      %1420 = vmatpush1.msra.mxu0 0.0
      %1421 = vmatprep.subr.mxu0 0.0
      %1422 = vmatpush1.msra.mxu0 0.0
      %1423 = vmatprep.subr.mxu0 0.0
      %1424 = vmatpush1.msra.mxu0 0.0
      %1425 = vmatprep.subr.mxu0 0.0
      %1426 = vmatpush1.msra.mxu0 0.0
      %1427 = vmatprep.subr.mxu0 0.0
      %1428 = vmatpush1.msra.mxu0 0.0
      %1429 = vmatprep.subr.mxu0 0.0
      %1430 = vmatpush1.msra.mxu0 0.0
      %1431 = vmatprep.subr.mxu0 0.0
      %1432 = vmatpush1.msra.mxu0 0.0
      %1433 = vmatprep.subr.mxu0 0.0
      %1434 = vmatpush1.msra.mxu0 0.0
      %1435 = vmatprep.subr.mxu0 0.0
      %1436 = vmatpush1.msra.mxu0 0.0
      %1437 = vmatprep.subr.mxu0 0.0
      %1438 = vmatpush1.msra.mxu0 0.0
      %1439 = vmatprep.subr.mxu0 0.0
      %1440 = vmatpush1.msra.mxu0 0.0
      %1441 = vmatprep.subr.mxu0 0.0
      %1442 = vmatpush1.msra.mxu0 0.0
      %1443 = vmatprep.subr.mxu0 0.0
      %1444 = vmatpush1.msra.mxu0 0.0
      %1445 = vmatprep.subr.mxu0 0.0
      %1446 = vmatpush1.msra.mxu0 0.0
      %1447 = vmatprep.subr.mxu0 0.0
      %1448 = vmatpush1.msra.mxu0 0.0
      %1449 = vmatprep.subr.mxu0 0.0
      %1450 = vmatpush1.msra.mxu0 0.0
      %1451 = vmatprep.mubr.f32.mxu0 0.0
      %1452 = vmatmul.mubr.f32.gmra.mrb[0].mxu0 %v1385
      %v1453 = vpop.f32.mrb[0].mxu0
      %v1454 = vadd.f32 0.0, %v1453
      %v1455 = vpop.f32.mrb[0].mxu0
      %1456 = vdwg.mxu0
      %1457 = vrot.lane.b32.xlu0 %v825, 56
      %v1458 = vpop.permute.xlu0 %1457
      %v1461 = vsel %vm836, %v1380, 0
      %1463 = vmatprep.subr.mxu0 0.0
      %1464 = vmatpush1.msra.mxu0 %v1458
      %1465 = vmatprep.subr.mxu0 0.0
      %1466 = vmatpush1.msra.mxu0 0.0
      %1467 = vmatprep.subr.mxu0 0.0
      %1468 = vmatpush1.msra.mxu0 0.0
      %1469 = vmatprep.subr.mxu0 0.0
      %1470 = vmatpush1.msra.mxu0 0.0
      %1471 = vmatprep.subr.mxu0 0.0
      %1472 = vmatpush1.msra.mxu0 0.0
      %1473 = vmatprep.subr.mxu0 0.0
      %1474 = vmatpush1.msra.mxu0 0.0
      %1475 = vmatprep.subr.mxu0 0.0
      %1476 = vmatpush1.msra.mxu0 0.0
      %1477 = vmatprep.subr.mxu0 0.0
      %1478 = vmatpush1.msra.mxu0 0.0
      %1479 = vmatprep.subr.mxu0 0.0
      %1480 = vmatpush1.msra.mxu0 0.0
      %1481 = vmatprep.subr.mxu0 0.0
      %1482 = vmatpush1.msra.mxu0 0.0
      %1483 = vmatprep.subr.mxu0 0.0
      %1484 = vmatpush1.msra.mxu0 0.0
      %1485 = vmatprep.subr.mxu0 0.0
      %1486 = vmatpush1.msra.mxu0 0.0
      %1487 = vmatprep.subr.mxu0 0.0
      %1488 = vmatpush1.msra.mxu0 0.0
      %1489 = vmatprep.subr.mxu0 0.0
      %1490 = vmatpush1.msra.mxu0 0.0
      %1491 = vmatprep.subr.mxu0 0.0
      %1492 = vmatpush1.msra.mxu0 0.0
      %1493 = vmatprep.subr.mxu0 0.0
      %1494 = vmatpush1.msra.mxu0 0.0
      %1495 = vmatprep.subr.mxu0 0.0
      %1496 = vmatpush1.msra.mxu0 0.0
      %1497 = vmatprep.subr.mxu0 0.0
      %1498 = vmatpush1.msra.mxu0 0.0
      %1499 = vmatprep.subr.mxu0 0.0
      %1500 = vmatpush1.msra.mxu0 0.0
      %1501 = vmatprep.subr.mxu0 0.0
      %1502 = vmatpush1.msra.mxu0 0.0
      %1503 = vmatprep.subr.mxu0 0.0
      %1504 = vmatpush1.msra.mxu0 0.0
      %1505 = vmatprep.subr.mxu0 0.0
      %1506 = vmatpush1.msra.mxu0 0.0
      %1507 = vmatprep.subr.mxu0 0.0
      %1508 = vmatpush1.msra.mxu0 0.0
      %1509 = vmatprep.subr.mxu0 0.0
      %1510 = vmatpush1.msra.mxu0 0.0
      %1511 = vmatprep.subr.mxu0 0.0
      %1512 = vmatpush1.msra.mxu0 0.0
      %1513 = vmatprep.subr.mxu0 0.0
      %1514 = vmatpush1.msra.mxu0 0.0
      %1515 = vmatprep.subr.mxu0 0.0
      %1516 = vmatpush1.msra.mxu0 0.0
      %1517 = vmatprep.subr.mxu0 0.0
      %1518 = vmatpush1.msra.mxu0 0.0
      %1519 = vmatprep.subr.mxu0 0.0
      %1520 = vmatpush1.msra.mxu0 0.0
      %1521 = vmatprep.subr.mxu0 0.0
      %1522 = vmatpush1.msra.mxu0 0.0
      %1523 = vmatprep.subr.mxu0 0.0
      %1524 = vmatpush1.msra.mxu0 0.0
      %1525 = vmatprep.subr.mxu0 0.0
      %1526 = vmatpush1.msra.mxu0 0.0
      %1527 = vmatprep.mubr.f32.mxu0 0.0
      %1528 = vmatmul.mubr.f32.gmra.mrb[0].mxu0 %v1461
      %v1529 = vpop.f32.mrb[0].mxu0
      %v1530 = vadd.f32 0.0, %v1529
      %v1531 = vpop.f32.mrb[0].mxu0
      %1532 = vdwg.mxu0
      %v1534 = vsel %vm836, %v1454, 0
      %v1537 = vsel %vm836, %v1530, 0
      %1539 = vmatprep.subr.mxu0 0.0
      %1540 = vmatpush1.msra.mxu0 %v830
      %1541 = vmatprep.subr.mxu0 0.0
      %1542 = vmatpush1.msra.mxu0 0.0
      %1543 = vmatprep.subr.mxu0 0.0
      %1544 = vmatpush1.msra.mxu0 0.0
      %1545 = vmatprep.subr.mxu0 0.0
      %1546 = vmatpush1.msra.mxu0 0.0
      %1547 = vmatprep.subr.mxu0 0.0
      %1548 = vmatpush1.msra.mxu0 0.0
      %1549 = vmatprep.subr.mxu0 0.0
      %1550 = vmatpush1.msra.mxu0 0.0
      %1551 = vmatprep.subr.mxu0 0.0
      %1552 = vmatpush1.msra.mxu0 0.0
      %1553 = vmatprep.subr.mxu0 0.0
      %1554 = vmatpush1.msra.mxu0 0.0
      %1555 = vmatprep.subr.mxu0 0.0
      %1556 = vmatpush1.msra.mxu0 0.0
      %1557 = vmatprep.subr.mxu0 0.0
      %1558 = vmatpush1.msra.mxu0 0.0
      %1559 = vmatprep.subr.mxu0 0.0
      %1560 = vmatpush1.msra.mxu0 0.0
      %1561 = vmatprep.subr.mxu0 0.0
      %1562 = vmatpush1.msra.mxu0 0.0
      %1563 = vmatprep.subr.mxu0 0.0
      %1564 = vmatpush1.msra.mxu0 0.0
      %1565 = vmatprep.subr.mxu0 0.0
      %1566 = vmatpush1.msra.mxu0 0.0
      %1567 = vmatprep.subr.mxu0 0.0
      %1568 = vmatpush1.msra.mxu0 0.0
      %1569 = vmatprep.subr.mxu0 0.0
      %1570 = vmatpush1.msra.mxu0 0.0
      %1571 = vmatprep.subr.mxu0 0.0
      %1572 = vmatpush1.msra.mxu0 0.0
      %1573 = vmatprep.subr.mxu0 0.0
      %1574 = vmatpush1.msra.mxu0 0.0
      %1575 = vmatprep.subr.mxu0 0.0
      %1576 = vmatpush1.msra.mxu0 0.0
      %1577 = vmatprep.subr.mxu0 0.0
      %1578 = vmatpush1.msra.mxu0 0.0
      %1579 = vmatprep.subr.mxu0 0.0
      %1580 = vmatpush1.msra.mxu0 0.0
      %1581 = vmatprep.subr.mxu0 0.0
      %1582 = vmatpush1.msra.mxu0 0.0
      %1583 = vmatprep.subr.mxu0 0.0
      %1584 = vmatpush1.msra.mxu0 0.0
      %1585 = vmatprep.subr.mxu0 0.0
      %1586 = vmatpush1.msra.mxu0 0.0
      %1587 = vmatprep.subr.mxu0 0.0
      %1588 = vmatpush1.msra.mxu0 0.0
      %1589 = vmatprep.subr.mxu0 0.0
      %1590 = vmatpush1.msra.mxu0 0.0
      %1591 = vmatprep.subr.mxu0 0.0
      %1592 = vmatpush1.msra.mxu0 0.0
      %1593 = vmatprep.subr.mxu0 0.0
      %1594 = vmatpush1.msra.mxu0 0.0
      %1595 = vmatprep.subr.mxu0 0.0
      %1596 = vmatpush1.msra.mxu0 0.0
      %1597 = vmatprep.subr.mxu0 0.0
      %1598 = vmatpush1.msra.mxu0 0.0
      %1599 = vmatprep.subr.mxu0 0.0
      %1600 = vmatpush1.msra.mxu0 0.0
      %1601 = vmatprep.subr.mxu0 0.0
      %1602 = vmatpush1.msra.mxu0 0.0
      %1603 = vmatprep.mubr.f32.mxu0 0.0
      %1604 = vmatmul.mubr.f32.gmra.mrb[0].mxu0 %v1534
      %v1605 = vpop.f32.mrb[0].mxu0
      %v1606 = vadd.f32 0.0, %v1605
      %v1607 = vpop.f32.mrb[0].mxu0
      %1608 = vmatprep.mubr.f32.mxu0 0.0
      %1609 = vmatmul.mubr.f32.gmra.mrb[0].mxu0 %v1537
      %v1610 = vpop.f32.mrb[0].mxu0
      %v1611 = vadd.f32 0.0, %v1610
      %v1612 = vpop.f32.mrb[0].mxu0
      %1613 = vdwg.mxu0
      %v1615 = vsel %vm836, %v1120, 0
      %v1618 = vsel %vm836, %v1196, 0
      %1620 = vmatprep.subr.mxu0 0.0
      %1621 = vmatpush1.msra.mxu0 %v829
      %1622 = vmatprep.subr.mxu0 0.0
      %1623 = vmatpush1.msra.mxu0 0.0
      %1624 = vmatprep.subr.mxu0 0.0
      %1625 = vmatpush1.msra.mxu0 0.0
      %1626 = vmatprep.subr.mxu0 0.0
      %1627 = vmatpush1.msra.mxu0 0.0
      %1628 = vmatprep.subr.mxu0 0.0
      %1629 = vmatpush1.msra.mxu0 0.0
      %1630 = vmatprep.subr.mxu0 0.0
      %1631 = vmatpush1.msra.mxu0 0.0
      %1632 = vmatprep.subr.mxu0 0.0
      %1633 = vmatpush1.msra.mxu0 0.0
      %1634 = vmatprep.subr.mxu0 0.0
      %1635 = vmatpush1.msra.mxu0 0.0
      %1636 = vmatprep.subr.mxu0 0.0
      %1637 = vmatpush1.msra.mxu0 0.0
      %1638 = vmatprep.subr.mxu0 0.0
      %1639 = vmatpush1.msra.mxu0 0.0
      %1640 = vmatprep.subr.mxu0 0.0
      %1641 = vmatpush1.msra.mxu0 0.0
      %1642 = vmatprep.subr.mxu0 0.0
      %1643 = vmatpush1.msra.mxu0 0.0
      %1644 = vmatprep.subr.mxu0 0.0
      %1645 = vmatpush1.msra.mxu0 0.0
      %1646 = vmatprep.subr.mxu0 0.0
      %1647 = vmatpush1.msra.mxu0 0.0
      %1648 = vmatprep.subr.mxu0 0.0
      %1649 = vmatpush1.msra.mxu0 0.0
      %1650 = vmatprep.subr.mxu0 0.0
      %1651 = vmatpush1.msra.mxu0 0.0
      %1652 = vmatprep.subr.mxu0 0.0
      %1653 = vmatpush1.msra.mxu0 0.0
      %1654 = vmatprep.subr.mxu0 0.0
      %1655 = vmatpush1.msra.mxu0 0.0
      %1656 = vmatprep.subr.mxu0 0.0
      %1657 = vmatpush1.msra.mxu0 0.0
      %1658 = vmatprep.subr.mxu0 0.0
      %1659 = vmatpush1.msra.mxu0 0.0
      %1660 = vmatprep.subr.mxu0 0.0
      %1661 = vmatpush1.msra.mxu0 0.0
      %1662 = vmatprep.subr.mxu0 0.0
      %1663 = vmatpush1.msra.mxu0 0.0
      %1664 = vmatprep.subr.mxu0 0.0
      %1665 = vmatpush1.msra.mxu0 0.0
      %1666 = vmatprep.subr.mxu0 0.0
      %1667 = vmatpush1.msra.mxu0 0.0
      %1668 = vmatprep.subr.mxu0 0.0
      %1669 = vmatpush1.msra.mxu0 0.0
      %1670 = vmatprep.subr.mxu0 0.0
      %1671 = vmatpush1.msra.mxu0 0.0
      %1672 = vmatprep.subr.mxu0 0.0
      %1673 = vmatpush1.msra.mxu0 0.0
      %1674 = vmatprep.subr.mxu0 0.0
      %1675 = vmatpush1.msra.mxu0 0.0
      %1676 = vmatprep.subr.mxu0 0.0
      %1677 = vmatpush1.msra.mxu0 0.0
      %1678 = vmatprep.subr.mxu0 0.0
      %1679 = vmatpush1.msra.mxu0 0.0
      %1680 = vmatprep.subr.mxu0 0.0
      %1681 = vmatpush1.msra.mxu0 0.0
      %1682 = vmatprep.subr.mxu0 0.0
      %1683 = vmatpush1.msra.mxu0 0.0
      %1684 = vmatprep.mubr.f32.mxu0 0.0
      %1685 = vmatmul.mubr.f32.gmra.mrb[0].mxu0 %v1615
      %v1686 = vpop.f32.mrb[0].mxu0
      %v1687 = vadd.f32 %v1606, %v1686
      %v1688 = vpop.f32.mrb[0].mxu0
      %1689 = vmatprep.mubr.f32.mxu0 0.0
      %1690 = vmatmul.mubr.f32.gmra.mrb[0].mxu0 %v1618
      %v1691 = vpop.f32.mrb[0].mxu0
      %v1692 = vadd.f32 %v1611, %v1691
      %v1693 = vpop.f32.mrb[0].mxu0
      %1694 = vdwg.mxu0
      %1695 = vrot.lane.b32.xlu0 %v820, 112
      %v1696 = vpop.permute.xlu0 %1695
      %1697 = vrot.lane.b32.xlu0 %v820, 80
      %v1698 = vpop.permute.xlu0 %1697
      %v1699 = vsel %vm836, %v1696, 0
      %v1701 = vsel %vm836, %v1698, 0
      %1703 = vmatprep.subr.mxu0 0.0
      %1704 = vmatpush1.xpose.msra.mxu0 %v1701
      %1705 = vmatprep.subr.mxu0 0.0
      %1706 = vmatpush1.xpose.msra.mxu0 0.0
      %1707 = vmatprep.subr.mxu0 0.0
      %1708 = vmatpush1.xpose.msra.mxu0 0.0
      %1709 = vmatprep.subr.mxu0 0.0
      %1710 = vmatpush1.xpose.msra.mxu0 0.0
      %1711 = vmatprep.subr.mxu0 0.0
      %1712 = vmatpush1.xpose.msra.mxu0 0.0
      %1713 = vmatprep.subr.mxu0 0.0
      %1714 = vmatpush1.xpose.msra.mxu0 0.0
      %1715 = vmatprep.subr.mxu0 0.0
      %1716 = vmatpush1.xpose.msra.mxu0 0.0
      %1717 = vmatprep.subr.mxu0 0.0
      %1718 = vmatpush1.xpose.msra.mxu0 0.0
      %1719 = vmatprep.subr.mxu0 0.0
      %1720 = vmatpush1.xpose.msra.mxu0 0.0
      %1721 = vmatprep.subr.mxu0 0.0
      %1722 = vmatpush1.xpose.msra.mxu0 0.0
      %1723 = vmatprep.subr.mxu0 0.0
      %1724 = vmatpush1.xpose.msra.mxu0 0.0
      %1725 = vmatprep.subr.mxu0 0.0
      %1726 = vmatpush1.xpose.msra.mxu0 0.0
      %1727 = vmatprep.subr.mxu0 0.0
      %1728 = vmatpush1.xpose.msra.mxu0 0.0
      %1729 = vmatprep.subr.mxu0 0.0
      %1730 = vmatpush1.xpose.msra.mxu0 0.0
      %1731 = vmatprep.subr.mxu0 0.0
      %1732 = vmatpush1.xpose.msra.mxu0 0.0
      %1733 = vmatprep.subr.mxu0 0.0
      %1734 = vmatpush1.xpose.msra.mxu0 0.0
      %1735 = vmatprep.subr.mxu0 0.0
      %1736 = vmatpush1.xpose.msra.mxu0 0.0
      %1737 = vmatprep.subr.mxu0 0.0
      %1738 = vmatpush1.xpose.msra.mxu0 0.0
      %1739 = vmatprep.subr.mxu0 0.0
      %1740 = vmatpush1.xpose.msra.mxu0 0.0
      %1741 = vmatprep.subr.mxu0 0.0
      %1742 = vmatpush1.xpose.msra.mxu0 0.0
      %1743 = vmatprep.subr.mxu0 0.0
      %1744 = vmatpush1.xpose.msra.mxu0 0.0
      %1745 = vmatprep.subr.mxu0 0.0
      %1746 = vmatpush1.xpose.msra.mxu0 0.0
      %1747 = vmatprep.subr.mxu0 0.0
      %1748 = vmatpush1.xpose.msra.mxu0 0.0
      %1749 = vmatprep.subr.mxu0 0.0
      %1750 = vmatpush1.xpose.msra.mxu0 0.0
      %1751 = vmatprep.subr.mxu0 0.0
      %1752 = vmatpush1.xpose.msra.mxu0 0.0
      %1753 = vmatprep.subr.mxu0 0.0
      %1754 = vmatpush1.xpose.msra.mxu0 0.0
      %1755 = vmatprep.subr.mxu0 0.0
      %1756 = vmatpush1.xpose.msra.mxu0 0.0
      %1757 = vmatprep.subr.mxu0 0.0
      %1758 = vmatpush1.xpose.msra.mxu0 0.0
      %1759 = vmatprep.subr.mxu0 0.0
      %1760 = vmatpush1.xpose.msra.mxu0 0.0
      %1761 = vmatprep.subr.mxu0 0.0
      %1762 = vmatpush1.xpose.msra.mxu0 0.0
      %1763 = vmatprep.subr.mxu0 0.0
      %1764 = vmatpush1.xpose.msra.mxu0 0.0
      %1765 = vmatprep.subr.mxu0 0.0
      %1766 = vmatpush1.xpose.msra.mxu0 0.0
      %1767 = vmatprep.mubr.f32.mxu0 0.0
      %1768 = vmatmul.mubr.f32.gmra.mrb[0].mxu0 %v1699
      %v1769 = vpop.f32.mrb[0].mxu0
      %v1770 = vadd.f32 0.0, %v1769
      %v1771 = vpop.f32.mrb[0].mxu0
      %1772 = vdwg.mxu0
      %1773 = vrot.lane.b32.xlu0 %v825, 112
      %v1774 = vpop.permute.xlu0 %1773
      %1775 = vrot.lane.b32.xlu0 %v825, 80
      %v1776 = vpop.permute.xlu0 %1775
      %v1777 = vsel %vm836, %v1774, 0
      %v1779 = vsel %vm836, %v1776, 0
      %1781 = vmatprep.subr.mxu0 0.0
      %1782 = vmatpush1.xpose.msra.mxu0 %v1779
      %1783 = vmatprep.subr.mxu0 0.0
      %1784 = vmatpush1.xpose.msra.mxu0 0.0
      %1785 = vmatprep.subr.mxu0 0.0
      %1786 = vmatpush1.xpose.msra.mxu0 0.0
      %1787 = vmatprep.subr.mxu0 0.0
      %1788 = vmatpush1.xpose.msra.mxu0 0.0
      %1789 = vmatprep.subr.mxu0 0.0
      %1790 = vmatpush1.xpose.msra.mxu0 0.0
      %1791 = vmatprep.subr.mxu0 0.0
      %1792 = vmatpush1.xpose.msra.mxu0 0.0
      %1793 = vmatprep.subr.mxu0 0.0
      %1794 = vmatpush1.xpose.msra.mxu0 0.0
      %1795 = vmatprep.subr.mxu0 0.0
      %1796 = vmatpush1.xpose.msra.mxu0 0.0
      %1797 = vmatprep.subr.mxu0 0.0
      %1798 = vmatpush1.xpose.msra.mxu0 0.0
      %1799 = vmatprep.subr.mxu0 0.0
      %1800 = vmatpush1.xpose.msra.mxu0 0.0
      %1801 = vmatprep.subr.mxu0 0.0
      %1802 = vmatpush1.xpose.msra.mxu0 0.0
      %1803 = vmatprep.subr.mxu0 0.0
      %1804 = vmatpush1.xpose.msra.mxu0 0.0
      %1805 = vmatprep.subr.mxu0 0.0
      %1806 = vmatpush1.xpose.msra.mxu0 0.0
      %1807 = vmatprep.subr.mxu0 0.0
      %1808 = vmatpush1.xpose.msra.mxu0 0.0
      %1809 = vmatprep.subr.mxu0 0.0
      %1810 = vmatpush1.xpose.msra.mxu0 0.0
      %1811 = vmatprep.subr.mxu0 0.0
      %1812 = vmatpush1.xpose.msra.mxu0 0.0
      %1813 = vmatprep.subr.mxu0 0.0
      %1814 = vmatpush1.xpose.msra.mxu0 0.0
      %1815 = vmatprep.subr.mxu0 0.0
      %1816 = vmatpush1.xpose.msra.mxu0 0.0
      %1817 = vmatprep.subr.mxu0 0.0
      %1818 = vmatpush1.xpose.msra.mxu0 0.0
      %1819 = vmatprep.subr.mxu0 0.0
      %1820 = vmatpush1.xpose.msra.mxu0 0.0
      %1821 = vmatprep.subr.mxu0 0.0
      %1822 = vmatpush1.xpose.msra.mxu0 0.0
      %1823 = vmatprep.subr.mxu0 0.0
      %1824 = vmatpush1.xpose.msra.mxu0 0.0
      %1825 = vmatprep.subr.mxu0 0.0
      %1826 = vmatpush1.xpose.msra.mxu0 0.0
      %1827 = vmatprep.subr.mxu0 0.0
      %1828 = vmatpush1.xpose.msra.mxu0 0.0
      %1829 = vmatprep.subr.mxu0 0.0
      %1830 = vmatpush1.xpose.msra.mxu0 0.0
      %1831 = vmatprep.subr.mxu0 0.0
      %1832 = vmatpush1.xpose.msra.mxu0 0.0
      %1833 = vmatprep.subr.mxu0 0.0
      %1834 = vmatpush1.xpose.msra.mxu0 0.0
      %1835 = vmatprep.subr.mxu0 0.0
      %1836 = vmatpush1.xpose.msra.mxu0 0.0
      %1837 = vmatprep.subr.mxu0 0.0
      %1838 = vmatpush1.xpose.msra.mxu0 0.0
      %1839 = vmatprep.subr.mxu0 0.0
      %1840 = vmatpush1.xpose.msra.mxu0 0.0
      %1841 = vmatprep.subr.mxu0 0.0
      %1842 = vmatpush1.xpose.msra.mxu0 0.0
      %1843 = vmatprep.subr.mxu0 0.0
      %1844 = vmatpush1.xpose.msra.mxu0 0.0
      %1845 = vmatprep.mubr.f32.mxu0 0.0
      %1846 = vmatmul.mubr.f32.gmra.mrb[0].mxu0 %v1777
      %v1847 = vpop.f32.mrb[0].mxu0
      %v1848 = vadd.f32 0.0, %v1847
      %v1849 = vpop.f32.mrb[0].mxu0
      %1850 = vdwg.mxu0
      %v1851 = vmul.f32 %v1770, 0.35355338
      %v1852 = vmul.f32 %v1848, 0.35355338
      %v1853 = vadd.f32 %v1851, %v1016
      %v1854 = vadd.f32 %v1852, %v1020
      %v1855 = vsel %vm836, %v1853, -inf
      %1856 = vmax.xlane.f32.xlu0 %v1855
      %v1857 = vpop.xlane.xlu0 %1856
      %v1858 = vsel %vm836, %v1854, -inf
      %1859 = vmax.xlane.f32.xlu0 %v1858
      %v1860 = vpop.xlane.xlu0 %1859
      %v1861 = vsub.f32 %v1853, %v1857
      %v1862 = vsub.f32 %v1854, %v1860
      %v1863 = vmul.f32 %v1861, 1.442695
      %v1864 = vpow.pop %v1863
      %v1865 = vmul.f32 %v1862, 1.442695
      %v1866 = vpow.pop %v1865
      %v1867 = vsel %vm836, %v1864, 0.0
      %1868 = vadd.xlane.f32.xlu0 %v1867
      %v1869 = vpop.xlane.xlu0 %1868
      %v1870 = vsel %vm836, %v1866, 0.0
      %1871 = vadd.xlane.f32.xlu0 %v1870
      %v1872 = vpop.xlane.xlu0 %1871
      %v1873 = vrcp.pop %v1869
      %v1874 = vrcp.pop %v1872
      %v1875 = vmul.f32 %v1864, %v1873
      %v1876 = vmul.f32 %v1866, %v1874
      %1877 = vrot.lane.b32.xlu0 %v820, 48
      %v1878 = vpop.permute.xlu0 %1877
      %v1881 = vsel %vm836, %v1875, 0
      %1883 = vmatprep.subr.mxu0 0.0
      %1884 = vmatpush1.msra.mxu0 %v1878
      %1885 = vmatprep.subr.mxu0 0.0
      %1886 = vmatpush1.msra.mxu0 0.0
      %1887 = vmatprep.subr.mxu0 0.0
      %1888 = vmatpush1.msra.mxu0 0.0
      %1889 = vmatprep.subr.mxu0 0.0
      %1890 = vmatpush1.msra.mxu0 0.0
      %1891 = vmatprep.subr.mxu0 0.0
      %1892 = vmatpush1.msra.mxu0 0.0
      %1893 = vmatprep.subr.mxu0 0.0
      %1894 = vmatpush1.msra.mxu0 0.0
      %1895 = vmatprep.subr.mxu0 0.0
      %1896 = vmatpush1.msra.mxu0 0.0
      %1897 = vmatprep.subr.mxu0 0.0
      %1898 = vmatpush1.msra.mxu0 0.0
      %1899 = vmatprep.subr.mxu0 0.0
      %1900 = vmatpush1.msra.mxu0 0.0
      %1901 = vmatprep.subr.mxu0 0.0
      %1902 = vmatpush1.msra.mxu0 0.0
      %1903 = vmatprep.subr.mxu0 0.0
      %1904 = vmatpush1.msra.mxu0 0.0
      %1905 = vmatprep.subr.mxu0 0.0
      %1906 = vmatpush1.msra.mxu0 0.0
      %1907 = vmatprep.subr.mxu0 0.0
      %1908 = vmatpush1.msra.mxu0 0.0
      %1909 = vmatprep.subr.mxu0 0.0
      %1910 = vmatpush1.msra.mxu0 0.0
      %1911 = vmatprep.subr.mxu0 0.0
      %1912 = vmatpush1.msra.mxu0 0.0
      %1913 = vmatprep.subr.mxu0 0.0
      %1914 = vmatpush1.msra.mxu0 0.0
      %1915 = vmatprep.subr.mxu0 0.0
      %1916 = vmatpush1.msra.mxu0 0.0
      %1917 = vmatprep.subr.mxu0 0.0
      %1918 = vmatpush1.msra.mxu0 0.0
      %1919 = vmatprep.subr.mxu0 0.0
      %1920 = vmatpush1.msra.mxu0 0.0
      %1921 = vmatprep.subr.mxu0 0.0
      %1922 = vmatpush1.msra.mxu0 0.0
      %1923 = vmatprep.subr.mxu0 0.0
      %1924 = vmatpush1.msra.mxu0 0.0
      %1925 = vmatprep.subr.mxu0 0.0
      %1926 = vmatpush1.msra.mxu0 0.0
      %1927 = vmatprep.subr.mxu0 0.0
      %1928 = vmatpush1.msra.mxu0 0.0
      %1929 = vmatprep.subr.mxu0 0.0
      %1930 = vmatpush1.msra.mxu0 0.0
      %1931 = vmatprep.subr.mxu0 0.0
      %1932 = vmatpush1.msra.mxu0 0.0
      %1933 = vmatprep.subr.mxu0 0.0
      %1934 = vmatpush1.msra.mxu0 0.0
      %1935 = vmatprep.subr.mxu0 0.0
      %1936 = vmatpush1.msra.mxu0 0.0
      %1937 = vmatprep.subr.mxu0 0.0
      %1938 = vmatpush1.msra.mxu0 0.0
      %1939 = vmatprep.subr.mxu0 0.0
      %1940 = vmatpush1.msra.mxu0 0.0
      %1941 = vmatprep.subr.mxu0 0.0
      %1942 = vmatpush1.msra.mxu0 0.0
      %1943 = vmatprep.subr.mxu0 0.0
      %1944 = vmatpush1.msra.mxu0 0.0
      %1945 = vmatprep.subr.mxu0 0.0
      %1946 = vmatpush1.msra.mxu0 0.0
      %1947 = vmatprep.mubr.f32.mxu0 0.0
      %1948 = vmatmul.mubr.f32.gmra.mrb[0].mxu0 %v1881
      %v1949 = vpop.f32.mrb[0].mxu0
      %v1950 = vadd.f32 0.0, %v1949
      %v1951 = vpop.f32.mrb[0].mxu0
      %1952 = vdwg.mxu0
      %1953 = vrot.lane.b32.xlu0 %v825, 48
      %v1954 = vpop.permute.xlu0 %1953
      %v1957 = vsel %vm836, %v1876, 0
      %1959 = vmatprep.subr.mxu0 0.0
      %1960 = vmatpush1.msra.mxu0 %v1954
      %1961 = vmatprep.subr.mxu0 0.0
      %1962 = vmatpush1.msra.mxu0 0.0
      %1963 = vmatprep.subr.mxu0 0.0
      %1964 = vmatpush1.msra.mxu0 0.0
      %1965 = vmatprep.subr.mxu0 0.0
      %1966 = vmatpush1.msra.mxu0 0.0
      %1967 = vmatprep.subr.mxu0 0.0
      %1968 = vmatpush1.msra.mxu0 0.0
      %1969 = vmatprep.subr.mxu0 0.0
      %1970 = vmatpush1.msra.mxu0 0.0
      %1971 = vmatprep.subr.mxu0 0.0
      %1972 = vmatpush1.msra.mxu0 0.0
      %1973 = vmatprep.subr.mxu0 0.0
      %1974 = vmatpush1.msra.mxu0 0.0
      %1975 = vmatprep.subr.mxu0 0.0
      %1976 = vmatpush1.msra.mxu0 0.0
      %1977 = vmatprep.subr.mxu0 0.0
      %1978 = vmatpush1.msra.mxu0 0.0
      %1979 = vmatprep.subr.mxu0 0.0
      %1980 = vmatpush1.msra.mxu0 0.0
      %1981 = vmatprep.subr.mxu0 0.0
      %1982 = vmatpush1.msra.mxu0 0.0
      %1983 = vmatprep.subr.mxu0 0.0
      %1984 = vmatpush1.msra.mxu0 0.0
      %1985 = vmatprep.subr.mxu0 0.0
      %1986 = vmatpush1.msra.mxu0 0.0
      %1987 = vmatprep.subr.mxu0 0.0
      %1988 = vmatpush1.msra.mxu0 0.0
      %1989 = vmatprep.subr.mxu0 0.0
      %1990 = vmatpush1.msra.mxu0 0.0
      %1991 = vmatprep.subr.mxu0 0.0
      %1992 = vmatpush1.msra.mxu0 0.0
      %1993 = vmatprep.subr.mxu0 0.0
      %1994 = vmatpush1.msra.mxu0 0.0
      %1995 = vmatprep.subr.mxu0 0.0
      %1996 = vmatpush1.msra.mxu0 0.0
      %1997 = vmatprep.subr.mxu0 0.0
      %1998 = vmatpush1.msra.mxu0 0.0
      %1999 = vmatprep.subr.mxu0 0.0
      %2000 = vmatpush1.msra.mxu0 0.0
      %2001 = vmatprep.subr.mxu0 0.0
      %2002 = vmatpush1.msra.mxu0 0.0
      %2003 = vmatprep.subr.mxu0 0.0
      %2004 = vmatpush1.msra.mxu0 0.0
      %2005 = vmatprep.subr.mxu0 0.0
      %2006 = vmatpush1.msra.mxu0 0.0
      %2007 = vmatprep.subr.mxu0 0.0
      %2008 = vmatpush1.msra.mxu0 0.0
      %2009 = vmatprep.subr.mxu0 0.0
      %2010 = vmatpush1.msra.mxu0 0.0
      %2011 = vmatprep.subr.mxu0 0.0
      %2012 = vmatpush1.msra.mxu0 0.0
      %2013 = vmatprep.subr.mxu0 0.0
      %2014 = vmatpush1.msra.mxu0 0.0
      %2015 = vmatprep.subr.mxu0 0.0
      %2016 = vmatpush1.msra.mxu0 0.0
      %2017 = vmatprep.subr.mxu0 0.0
      %2018 = vmatpush1.msra.mxu0 0.0
      %2019 = vmatprep.subr.mxu0 0.0
      %2020 = vmatpush1.msra.mxu0 0.0
      %2021 = vmatprep.subr.mxu0 0.0
      %2022 = vmatpush1.msra.mxu0 0.0
      %2023 = vmatprep.mubr.f32.mxu0 0.0
      %2024 = vmatmul.mubr.f32.gmra.mrb[0].mxu0 %v1957
      %v2025 = vpop.f32.mrb[0].mxu0
      %v2026 = vadd.f32 0.0, %v2025
      %v2027 = vpop.f32.mrb[0].mxu0
      %2028 = vdwg.mxu0
      %v2030 = vsel %vm836, %v1950, 0
      %v2033 = vsel %vm836, %v2026, 0
      %2035 = vmatprep.subr.mxu0 0.0
      %2036 = vmatpush1.msra.mxu0 %v831
      %2037 = vmatprep.subr.mxu0 0.0
      %2038 = vmatpush1.msra.mxu0 0.0
      %2039 = vmatprep.subr.mxu0 0.0
      %2040 = vmatpush1.msra.mxu0 0.0
      %2041 = vmatprep.subr.mxu0 0.0
      %2042 = vmatpush1.msra.mxu0 0.0
      %2043 = vmatprep.subr.mxu0 0.0
      %2044 = vmatpush1.msra.mxu0 0.0
      %2045 = vmatprep.subr.mxu0 0.0
      %2046 = vmatpush1.msra.mxu0 0.0
      %2047 = vmatprep.subr.mxu0 0.0
      %2048 = vmatpush1.msra.mxu0 0.0
      %2049 = vmatprep.subr.mxu0 0.0
      %2050 = vmatpush1.msra.mxu0 0.0
      %2051 = vmatprep.subr.mxu0 0.0
      %2052 = vmatpush1.msra.mxu0 0.0
      %2053 = vmatprep.subr.mxu0 0.0
      %2054 = vmatpush1.msra.mxu0 0.0
      %2055 = vmatprep.subr.mxu0 0.0
      %2056 = vmatpush1.msra.mxu0 0.0
      %2057 = vmatprep.subr.mxu0 0.0
      %2058 = vmatpush1.msra.mxu0 0.0
      %2059 = vmatprep.subr.mxu0 0.0
      %2060 = vmatpush1.msra.mxu0 0.0
      %2061 = vmatprep.subr.mxu0 0.0
      %2062 = vmatpush1.msra.mxu0 0.0
      %2063 = vmatprep.subr.mxu0 0.0
      %2064 = vmatpush1.msra.mxu0 0.0
      %2065 = vmatprep.subr.mxu0 0.0
      %2066 = vmatpush1.msra.mxu0 0.0
      %2067 = vmatprep.subr.mxu0 0.0
      %2068 = vmatpush1.msra.mxu0 0.0
      %2069 = vmatprep.subr.mxu0 0.0
      %2070 = vmatpush1.msra.mxu0 0.0
      %2071 = vmatprep.subr.mxu0 0.0
      %2072 = vmatpush1.msra.mxu0 0.0
      %2073 = vmatprep.subr.mxu0 0.0
      %2074 = vmatpush1.msra.mxu0 0.0
      %2075 = vmatprep.subr.mxu0 0.0
      %2076 = vmatpush1.msra.mxu0 0.0
      %2077 = vmatprep.subr.mxu0 0.0
      %2078 = vmatpush1.msra.mxu0 0.0
      %2079 = vmatprep.subr.mxu0 0.0
      %2080 = vmatpush1.msra.mxu0 0.0
      %2081 = vmatprep.subr.mxu0 0.0
      %2082 = vmatpush1.msra.mxu0 0.0
      %2083 = vmatprep.subr.mxu0 0.0
      %2084 = vmatpush1.msra.mxu0 0.0
      %2085 = vmatprep.subr.mxu0 0.0
      %2086 = vmatpush1.msra.mxu0 0.0
      %2087 = vmatprep.subr.mxu0 0.0
      %2088 = vmatpush1.msra.mxu0 0.0
      %2089 = vmatprep.subr.mxu0 0.0
      %2090 = vmatpush1.msra.mxu0 0.0
      %2091 = vmatprep.subr.mxu0 0.0
      %2092 = vmatpush1.msra.mxu0 0.0
      %2093 = vmatprep.subr.mxu0 0.0
      %2094 = vmatpush1.msra.mxu0 0.0
      %2095 = vmatprep.subr.mxu0 0.0
      %2096 = vmatpush1.msra.mxu0 0.0
      %2097 = vmatprep.subr.mxu0 0.0
      %2098 = vmatpush1.msra.mxu0 0.0
      %2099 = vmatprep.mubr.f32.mxu0 0.0
      %2100 = vmatmul.mubr.f32.gmra.mrb[0].mxu0 %v2030
      %v2101 = vpop.f32.mrb[0].mxu0
      %v2102 = vadd.f32 0.0, %v2101
      %v2103 = vpop.f32.mrb[0].mxu0
      %2104 = vmatprep.mubr.f32.mxu0 0.0
      %2105 = vmatmul.mubr.f32.gmra.mrb[0].mxu0 %v2033
      %v2106 = vpop.f32.mrb[0].mxu0
      %v2107 = vadd.f32 0.0, %v2106
      %v2108 = vpop.f32.mrb[0].mxu0
      %2109 = vdwg.mxu0
      %v2110 = vadd.f32 %v1687, %v2102
      %v2111 = vadd.f32 %v1692, %v2107
      %2112 = vrot.lane.b32.xlu0 %v820, 104
      %v2113 = vpop.permute.xlu0 %2112
      %2114 = vrot.lane.b32.xlu0 %v820, 72
      %v2115 = vpop.permute.xlu0 %2114
      %v2116 = vsel %vm836, %v2113, 0
      %v2118 = vsel %vm836, %v2115, 0
      %2120 = vmatprep.subr.mxu0 0.0
      %2121 = vmatpush1.xpose.msra.mxu0 %v2118
      %2122 = vmatprep.subr.mxu0 0.0
      %2123 = vmatpush1.xpose.msra.mxu0 0.0
      %2124 = vmatprep.subr.mxu0 0.0
      %2125 = vmatpush1.xpose.msra.mxu0 0.0
      %2126 = vmatprep.subr.mxu0 0.0
      %2127 = vmatpush1.xpose.msra.mxu0 0.0
      %2128 = vmatprep.subr.mxu0 0.0
      %2129 = vmatpush1.xpose.msra.mxu0 0.0
      %2130 = vmatprep.subr.mxu0 0.0
      %2131 = vmatpush1.xpose.msra.mxu0 0.0
      %2132 = vmatprep.subr.mxu0 0.0
      %2133 = vmatpush1.xpose.msra.mxu0 0.0
      %2134 = vmatprep.subr.mxu0 0.0
      %2135 = vmatpush1.xpose.msra.mxu0 0.0
      %2136 = vmatprep.subr.mxu0 0.0
      %2137 = vmatpush1.xpose.msra.mxu0 0.0
      %2138 = vmatprep.subr.mxu0 0.0
      %2139 = vmatpush1.xpose.msra.mxu0 0.0
      %2140 = vmatprep.subr.mxu0 0.0
      %2141 = vmatpush1.xpose.msra.mxu0 0.0
      %2142 = vmatprep.subr.mxu0 0.0
      %2143 = vmatpush1.xpose.msra.mxu0 0.0
      %2144 = vmatprep.subr.mxu0 0.0
      %2145 = vmatpush1.xpose.msra.mxu0 0.0
      %2146 = vmatprep.subr.mxu0 0.0
      %2147 = vmatpush1.xpose.msra.mxu0 0.0
      %2148 = vmatprep.subr.mxu0 0.0
      %2149 = vmatpush1.xpose.msra.mxu0 0.0
      %2150 = vmatprep.subr.mxu0 0.0
      %2151 = vmatpush1.xpose.msra.mxu0 0.0
      %2152 = vmatprep.subr.mxu0 0.0
      %2153 = vmatpush1.xpose.msra.mxu0 0.0
      %2154 = vmatprep.subr.mxu0 0.0
      %2155 = vmatpush1.xpose.msra.mxu0 0.0
      %2156 = vmatprep.subr.mxu0 0.0
      %2157 = vmatpush1.xpose.msra.mxu0 0.0
      %2158 = vmatprep.subr.mxu0 0.0
      %2159 = vmatpush1.xpose.msra.mxu0 0.0
      %2160 = vmatprep.subr.mxu0 0.0
      %2161 = vmatpush1.xpose.msra.mxu0 0.0
      %2162 = vmatprep.subr.mxu0 0.0
      %2163 = vmatpush1.xpose.msra.mxu0 0.0
      %2164 = vmatprep.subr.mxu0 0.0
      %2165 = vmatpush1.xpose.msra.mxu0 0.0
      %2166 = vmatprep.subr.mxu0 0.0
      %2167 = vmatpush1.xpose.msra.mxu0 0.0
      %2168 = vmatprep.subr.mxu0 0.0
      %2169 = vmatpush1.xpose.msra.mxu0 0.0
      %2170 = vmatprep.subr.mxu0 0.0
      %2171 = vmatpush1.xpose.msra.mxu0 0.0
      %2172 = vmatprep.subr.mxu0 0.0
      %2173 = vmatpush1.xpose.msra.mxu0 0.0
      %2174 = vmatprep.subr.mxu0 0.0
      %2175 = vmatpush1.xpose.msra.mxu0 0.0
      %2176 = vmatprep.subr.mxu0 0.0
      %2177 = vmatpush1.xpose.msra.mxu0 0.0
      %2178 = vmatprep.subr.mxu0 0.0
      %2179 = vmatpush1.xpose.msra.mxu0 0.0
      %2180 = vmatprep.subr.mxu0 0.0
      %2181 = vmatpush1.xpose.msra.mxu0 0.0
      %2182 = vmatprep.subr.mxu0 0.0
      %2183 = vmatpush1.xpose.msra.mxu0 0.0
      %2184 = vmatprep.mubr.f32.mxu0 0.0
      %2185 = vmatmul.mubr.f32.gmra.mrb[0].mxu0 %v2116
      %v2186 = vpop.f32.mrb[0].mxu0
      %v2187 = vadd.f32 0.0, %v2186
      %v2188 = vpop.f32.mrb[0].mxu0
      %2189 = vdwg.mxu0
      %2190 = vrot.lane.b32.xlu0 %v825, 104
      %v2191 = vpop.permute.xlu0 %2190
      %2192 = vrot.lane.b32.xlu0 %v825, 72
      %v2193 = vpop.permute.xlu0 %2192
      %v2194 = vsel %vm836, %v2191, 0
      %v2196 = vsel %vm836, %v2193, 0
      %2198 = vmatprep.subr.mxu0 0.0
      %2199 = vmatpush1.xpose.msra.mxu0 %v2196
      %2200 = vmatprep.subr.mxu0 0.0
      %2201 = vmatpush1.xpose.msra.mxu0 0.0
      %2202 = vmatprep.subr.mxu0 0.0
      %2203 = vmatpush1.xpose.msra.mxu0 0.0
      %2204 = vmatprep.subr.mxu0 0.0
      %2205 = vmatpush1.xpose.msra.mxu0 0.0
      %2206 = vmatprep.subr.mxu0 0.0
      %2207 = vmatpush1.xpose.msra.mxu0 0.0
      %2208 = vmatprep.subr.mxu0 0.0
      %2209 = vmatpush1.xpose.msra.mxu0 0.0
      %2210 = vmatprep.subr.mxu0 0.0
      %2211 = vmatpush1.xpose.msra.mxu0 0.0
      %2212 = vmatprep.subr.mxu0 0.0
      %2213 = vmatpush1.xpose.msra.mxu0 0.0
      %2214 = vmatprep.subr.mxu0 0.0
      %2215 = vmatpush1.xpose.msra.mxu0 0.0
      %2216 = vmatprep.subr.mxu0 0.0
      %2217 = vmatpush1.xpose.msra.mxu0 0.0
      %2218 = vmatprep.subr.mxu0 0.0
      %2219 = vmatpush1.xpose.msra.mxu0 0.0
      %2220 = vmatprep.subr.mxu0 0.0
      %2221 = vmatpush1.xpose.msra.mxu0 0.0
      %2222 = vmatprep.subr.mxu0 0.0
      %2223 = vmatpush1.xpose.msra.mxu0 0.0
      %2224 = vmatprep.subr.mxu0 0.0
      %2225 = vmatpush1.xpose.msra.mxu0 0.0
      %2226 = vmatprep.subr.mxu0 0.0
      %2227 = vmatpush1.xpose.msra.mxu0 0.0
      %2228 = vmatprep.subr.mxu0 0.0
      %2229 = vmatpush1.xpose.msra.mxu0 0.0
      %2230 = vmatprep.subr.mxu0 0.0
      %2231 = vmatpush1.xpose.msra.mxu0 0.0
      %2232 = vmatprep.subr.mxu0 0.0
      %2233 = vmatpush1.xpose.msra.mxu0 0.0
      %2234 = vmatprep.subr.mxu0 0.0
      %2235 = vmatpush1.xpose.msra.mxu0 0.0
      %2236 = vmatprep.subr.mxu0 0.0
      %2237 = vmatpush1.xpose.msra.mxu0 0.0
      %2238 = vmatprep.subr.mxu0 0.0
      %2239 = vmatpush1.xpose.msra.mxu0 0.0
      %2240 = vmatprep.subr.mxu0 0.0
      %2241 = vmatpush1.xpose.msra.mxu0 0.0
      %2242 = vmatprep.subr.mxu0 0.0
      %2243 = vmatpush1.xpose.msra.mxu0 0.0
      %2244 = vmatprep.subr.mxu0 0.0
      %2245 = vmatpush1.xpose.msra.mxu0 0.0
      %2246 = vmatprep.subr.mxu0 0.0
      %2247 = vmatpush1.xpose.msra.mxu0 0.0
      %2248 = vmatprep.subr.mxu0 0.0
      %2249 = vmatpush1.xpose.msra.mxu0 0.0
      %2250 = vmatprep.subr.mxu0 0.0
      %2251 = vmatpush1.xpose.msra.mxu0 0.0
      %2252 = vmatprep.subr.mxu0 0.0
      %2253 = vmatpush1.xpose.msra.mxu0 0.0
      %2254 = vmatprep.subr.mxu0 0.0
      %2255 = vmatpush1.xpose.msra.mxu0 0.0
      %2256 = vmatprep.subr.mxu0 0.0
      %2257 = vmatpush1.xpose.msra.mxu0 0.0
      %2258 = vmatprep.subr.mxu0 0.0
      %2259 = vmatpush1.xpose.msra.mxu0 0.0
      %2260 = vmatprep.subr.mxu0 0.0
      %2261 = vmatpush1.xpose.msra.mxu0 0.0
      %2262 = vmatprep.mubr.f32.mxu0 0.0
      %2263 = vmatmul.mubr.f32.gmra.mrb[0].mxu0 %v2194
      %v2264 = vpop.f32.mrb[0].mxu0
      %v2265 = vadd.f32 0.0, %v2264
      %v2266 = vpop.f32.mrb[0].mxu0
      %2267 = vdwg.mxu0
      %v2268 = vmul.f32 %v2187, 0.35355338
      %v2269 = vmul.f32 %v2265, 0.35355338
      %v2270 = vadd.f32 %v2268, %v1016
      %v2271 = vadd.f32 %v2269, %v1020
      %v2272 = vsel %vm836, %v2270, -inf
      %2273 = vmax.xlane.f32.xlu0 %v2272
      %v2274 = vpop.xlane.xlu0 %2273
      %v2275 = vsel %vm836, %v2271, -inf
      %2276 = vmax.xlane.f32.xlu0 %v2275
      %v2277 = vpop.xlane.xlu0 %2276
      %v2278 = vsub.f32 %v2270, %v2274
      %v2279 = vsub.f32 %v2271, %v2277
      %v2280 = vmul.f32 %v2278, 1.442695
      %v2281 = vpow.pop %v2280
      %v2282 = vmul.f32 %v2279, 1.442695
      %v2283 = vpow.pop %v2282
      %v2284 = vsel %vm836, %v2281, 0.0
      %2285 = vadd.xlane.f32.xlu0 %v2284
      %v2286 = vpop.xlane.xlu0 %2285
      %v2287 = vsel %vm836, %v2283, 0.0
      %2288 = vadd.xlane.f32.xlu0 %v2287
      %v2289 = vpop.xlane.xlu0 %2288
      %v2290 = vrcp.pop %v2286
      %v2291 = vrcp.pop %v2289
      %v2292 = vmul.f32 %v2281, %v2290
      %v2293 = vmul.f32 %v2283, %v2291
      %2294 = vrot.lane.b32.xlu0 %v820, 40
      %v2295 = vpop.permute.xlu0 %2294
      %v2298 = vsel %vm836, %v2292, 0
      %2300 = vmatprep.subr.mxu0 0.0
      %2301 = vmatpush1.msra.mxu0 %v2295
      %2302 = vmatprep.subr.mxu0 0.0
      %2303 = vmatpush1.msra.mxu0 0.0
      %2304 = vmatprep.subr.mxu0 0.0
      %2305 = vmatpush1.msra.mxu0 0.0
      %2306 = vmatprep.subr.mxu0 0.0
      %2307 = vmatpush1.msra.mxu0 0.0
      %2308 = vmatprep.subr.mxu0 0.0
      %2309 = vmatpush1.msra.mxu0 0.0
      %2310 = vmatprep.subr.mxu0 0.0
      %2311 = vmatpush1.msra.mxu0 0.0
      %2312 = vmatprep.subr.mxu0 0.0
      %2313 = vmatpush1.msra.mxu0 0.0
      %2314 = vmatprep.subr.mxu0 0.0
      %2315 = vmatpush1.msra.mxu0 0.0
      %2316 = vmatprep.subr.mxu0 0.0
      %2317 = vmatpush1.msra.mxu0 0.0
      %2318 = vmatprep.subr.mxu0 0.0
      %2319 = vmatpush1.msra.mxu0 0.0
      %2320 = vmatprep.subr.mxu0 0.0
      %2321 = vmatpush1.msra.mxu0 0.0
      %2322 = vmatprep.subr.mxu0 0.0
      %2323 = vmatpush1.msra.mxu0 0.0
      %2324 = vmatprep.subr.mxu0 0.0
      %2325 = vmatpush1.msra.mxu0 0.0
      %2326 = vmatprep.subr.mxu0 0.0
      %2327 = vmatpush1.msra.mxu0 0.0
      %2328 = vmatprep.subr.mxu0 0.0
      %2329 = vmatpush1.msra.mxu0 0.0
      %2330 = vmatprep.subr.mxu0 0.0
      %2331 = vmatpush1.msra.mxu0 0.0
      %2332 = vmatprep.subr.mxu0 0.0
      %2333 = vmatpush1.msra.mxu0 0.0
      %2334 = vmatprep.subr.mxu0 0.0
      %2335 = vmatpush1.msra.mxu0 0.0
      %2336 = vmatprep.subr.mxu0 0.0
      %2337 = vmatpush1.msra.mxu0 0.0
      %2338 = vmatprep.subr.mxu0 0.0
      %2339 = vmatpush1.msra.mxu0 0.0
      %2340 = vmatprep.subr.mxu0 0.0
      %2341 = vmatpush1.msra.mxu0 0.0
      %2342 = vmatprep.subr.mxu0 0.0
      %2343 = vmatpush1.msra.mxu0 0.0
      %2344 = vmatprep.subr.mxu0 0.0
      %2345 = vmatpush1.msra.mxu0 0.0
      %2346 = vmatprep.subr.mxu0 0.0
      %2347 = vmatpush1.msra.mxu0 0.0
      %2348 = vmatprep.subr.mxu0 0.0
      %2349 = vmatpush1.msra.mxu0 0.0
      %2350 = vmatprep.subr.mxu0 0.0
      %2351 = vmatpush1.msra.mxu0 0.0
      %2352 = vmatprep.subr.mxu0 0.0
      %2353 = vmatpush1.msra.mxu0 0.0
      %2354 = vmatprep.subr.mxu0 0.0
      %2355 = vmatpush1.msra.mxu0 0.0
      %2356 = vmatprep.subr.mxu0 0.0
      %2357 = vmatpush1.msra.mxu0 0.0
      %2358 = vmatprep.subr.mxu0 0.0
      %2359 = vmatpush1.msra.mxu0 0.0
      %2360 = vmatprep.subr.mxu0 0.0
      %2361 = vmatpush1.msra.mxu0 0.0
      %2362 = vmatprep.subr.mxu0 0.0
      %2363 = vmatpush1.msra.mxu0 0.0
      %2364 = vmatprep.mubr.f32.mxu0 0.0
      %2365 = vmatmul.mubr.f32.gmra.mrb[0].mxu0 %v2298
      %v2366 = vpop.f32.mrb[0].mxu0
      %v2367 = vadd.f32 0.0, %v2366
      %v2368 = vpop.f32.mrb[0].mxu0
      %2369 = vdwg.mxu0
      %2370 = vrot.lane.b32.xlu0 %v825, 40
      %v2371 = vpop.permute.xlu0 %2370
      %v2374 = vsel %vm836, %v2293, 0
      %2376 = vmatprep.subr.mxu0 0.0
      %2377 = vmatpush1.msra.mxu0 %v2371
      %2378 = vmatprep.subr.mxu0 0.0
      %2379 = vmatpush1.msra.mxu0 0.0
      %2380 = vmatprep.subr.mxu0 0.0
      %2381 = vmatpush1.msra.mxu0 0.0
      %2382 = vmatprep.subr.mxu0 0.0
      %2383 = vmatpush1.msra.mxu0 0.0
      %2384 = vmatprep.subr.mxu0 0.0
      %2385 = vmatpush1.msra.mxu0 0.0
      %2386 = vmatprep.subr.mxu0 0.0
      %2387 = vmatpush1.msra.mxu0 0.0
      %2388 = vmatprep.subr.mxu0 0.0
      %2389 = vmatpush1.msra.mxu0 0.0
      %2390 = vmatprep.subr.mxu0 0.0
      %2391 = vmatpush1.msra.mxu0 0.0
      %2392 = vmatprep.subr.mxu0 0.0
      %2393 = vmatpush1.msra.mxu0 0.0
      %2394 = vmatprep.subr.mxu0 0.0
      %2395 = vmatpush1.msra.mxu0 0.0
      %2396 = vmatprep.subr.mxu0 0.0
      %2397 = vmatpush1.msra.mxu0 0.0
      %2398 = vmatprep.subr.mxu0 0.0
      %2399 = vmatpush1.msra.mxu0 0.0
      %2400 = vmatprep.subr.mxu0 0.0
      %2401 = vmatpush1.msra.mxu0 0.0
      %2402 = vmatprep.subr.mxu0 0.0
      %2403 = vmatpush1.msra.mxu0 0.0
      %2404 = vmatprep.subr.mxu0 0.0
      %2405 = vmatpush1.msra.mxu0 0.0
      %2406 = vmatprep.subr.mxu0 0.0
      %2407 = vmatpush1.msra.mxu0 0.0
      %2408 = vmatprep.subr.mxu0 0.0
      %2409 = vmatpush1.msra.mxu0 0.0
      %2410 = vmatprep.subr.mxu0 0.0
      %2411 = vmatpush1.msra.mxu0 0.0
      %2412 = vmatprep.subr.mxu0 0.0
      %2413 = vmatpush1.msra.mxu0 0.0
      %2414 = vmatprep.subr.mxu0 0.0
      %2415 = vmatpush1.msra.mxu0 0.0
      %2416 = vmatprep.subr.mxu0 0.0
      %2417 = vmatpush1.msra.mxu0 0.0
      %2418 = vmatprep.subr.mxu0 0.0
      %2419 = vmatpush1.msra.mxu0 0.0
      %2420 = vmatprep.subr.mxu0 0.0
      %2421 = vmatpush1.msra.mxu0 0.0
      %2422 = vmatprep.subr.mxu0 0.0
      %2423 = vmatpush1.msra.mxu0 0.0
      %2424 = vmatprep.subr.mxu0 0.0
      %2425 = vmatpush1.msra.mxu0 0.0
      %2426 = vmatprep.subr.mxu0 0.0
      %2427 = vmatpush1.msra.mxu0 0.0
      %2428 = vmatprep.subr.mxu0 0.0
      %2429 = vmatpush1.msra.mxu0 0.0
      %2430 = vmatprep.subr.mxu0 0.0
      %2431 = vmatpush1.msra.mxu0 0.0
      %2432 = vmatprep.subr.mxu0 0.0
      %2433 = vmatpush1.msra.mxu0 0.0
      %2434 = vmatprep.subr.mxu0 0.0
      %2435 = vmatpush1.msra.mxu0 0.0
      %2436 = vmatprep.subr.mxu0 0.0
      %2437 = vmatpush1.msra.mxu0 0.0
      %2438 = vmatprep.subr.mxu0 0.0
      %2439 = vmatpush1.msra.mxu0 0.0
      %2440 = vmatprep.mubr.f32.mxu0 0.0
      %2441 = vmatmul.mubr.f32.gmra.mrb[0].mxu0 %v2374
      %v2442 = vpop.f32.mrb[0].mxu0
      %v2443 = vadd.f32 0.0, %v2442
      %v2444 = vpop.f32.mrb[0].mxu0
      %2445 = vdwg.mxu0
      %v2447 = vsel %vm836, %v2367, 0
      %v2450 = vsel %vm836, %v2443, 0
      %2452 = vmatprep.subr.mxu0 0.0
      %2453 = vmatpush1.msra.mxu0 %v832
      %2454 = vmatprep.subr.mxu0 0.0
      %2455 = vmatpush1.msra.mxu0 0.0
      %2456 = vmatprep.subr.mxu0 0.0
      %2457 = vmatpush1.msra.mxu0 0.0
      %2458 = vmatprep.subr.mxu0 0.0
      %2459 = vmatpush1.msra.mxu0 0.0
      %2460 = vmatprep.subr.mxu0 0.0
      %2461 = vmatpush1.msra.mxu0 0.0
      %2462 = vmatprep.subr.mxu0 0.0
      %2463 = vmatpush1.msra.mxu0 0.0
      %2464 = vmatprep.subr.mxu0 0.0
      %2465 = vmatpush1.msra.mxu0 0.0
      %2466 = vmatprep.subr.mxu0 0.0
      %2467 = vmatpush1.msra.mxu0 0.0
      %2468 = vmatprep.subr.mxu0 0.0
      %2469 = vmatpush1.msra.mxu0 0.0
      %2470 = vmatprep.subr.mxu0 0.0
      %2471 = vmatpush1.msra.mxu0 0.0
      %2472 = vmatprep.subr.mxu0 0.0
      %2473 = vmatpush1.msra.mxu0 0.0
      %2474 = vmatprep.subr.mxu0 0.0
      %2475 = vmatpush1.msra.mxu0 0.0
      %2476 = vmatprep.subr.mxu0 0.0
      %2477 = vmatpush1.msra.mxu0 0.0
      %2478 = vmatprep.subr.mxu0 0.0
      %2479 = vmatpush1.msra.mxu0 0.0
      %2480 = vmatprep.subr.mxu0 0.0
      %2481 = vmatpush1.msra.mxu0 0.0
      %2482 = vmatprep.subr.mxu0 0.0
      %2483 = vmatpush1.msra.mxu0 0.0
      %2484 = vmatprep.subr.mxu0 0.0
      %2485 = vmatpush1.msra.mxu0 0.0
      %2486 = vmatprep.subr.mxu0 0.0
      %2487 = vmatpush1.msra.mxu0 0.0
      %2488 = vmatprep.subr.mxu0 0.0
      %2489 = vmatpush1.msra.mxu0 0.0
      %2490 = vmatprep.subr.mxu0 0.0
      %2491 = vmatpush1.msra.mxu0 0.0
      %2492 = vmatprep.subr.mxu0 0.0
      %2493 = vmatpush1.msra.mxu0 0.0
      %2494 = vmatprep.subr.mxu0 0.0
      %2495 = vmatpush1.msra.mxu0 0.0
      %2496 = vmatprep.subr.mxu0 0.0
      %2497 = vmatpush1.msra.mxu0 0.0
      %2498 = vmatprep.subr.mxu0 0.0
      %2499 = vmatpush1.msra.mxu0 0.0
      %2500 = vmatprep.subr.mxu0 0.0
      %2501 = vmatpush1.msra.mxu0 0.0
      %2502 = vmatprep.subr.mxu0 0.0
      %2503 = vmatpush1.msra.mxu0 0.0
      %2504 = vmatprep.subr.mxu0 0.0
      %2505 = vmatpush1.msra.mxu0 0.0
      %2506 = vmatprep.subr.mxu0 0.0
      %2507 = vmatpush1.msra.mxu0 0.0
      %2508 = vmatprep.subr.mxu0 0.0
      %2509 = vmatpush1.msra.mxu0 0.0
      %2510 = vmatprep.subr.mxu0 0.0
      %2511 = vmatpush1.msra.mxu0 0.0
      %2512 = vmatprep.subr.mxu0 0.0
      %2513 = vmatpush1.msra.mxu0 0.0
      %2514 = vmatprep.subr.mxu0 0.0
      %2515 = vmatpush1.msra.mxu0 0.0
      %2516 = vmatprep.mubr.f32.mxu0 0.0
      %2517 = vmatmul.mubr.f32.gmra.mrb[0].mxu0 %v2447
      %v2518 = vpop.f32.mrb[0].mxu0
      %v2519 = vadd.f32 0.0, %v2518
      %v2520 = vpop.f32.mrb[0].mxu0
      %2521 = vmatprep.mubr.f32.mxu0 0.0
      %2522 = vmatmul.mubr.f32.gmra.mrb[0].mxu0 %v2450
      %v2523 = vpop.f32.mrb[0].mxu0
      %v2524 = vadd.f32 0.0, %v2523
      %v2525 = vpop.f32.mrb[0].mxu0
      %2526 = vdwg.mxu0
      %v2527 = vadd.f32 %v2110, %v2519
      %v2528 = vadd.f32 %v2111, %v2524
      %v2529 = vld [vmem:[%s650] sm:$0x1]
      %v2531 = vlaneseq
      %v2532 = vshrl.u32 %v2531, 7
      %v2533 = vsub.s32 0, %v2532
      %v2534 = vrot.slane %v2529, %v2533
      %v2536 = vadd.f32 %v2527, %v2534
      %v2537 = vadd.f32 %v2528, %v2534
      %v2538 = vadd.f32 %v2536, %v733
      %v2539 = vadd.f32 %v2537, %v734
      %v2540 = vld [vmem:[%s653] sm:$0x1]
      %v2541 = vld [vmem:[%s656] sm:$0x1]
      %v2542 = vsel %vm746, %v2538, 0.0
      %2543 = vadd.xlane.f32.xlu0 %v2542
      %v2544 = vpop.xlane.xlu0 %2543
      %v2545 = vsel %vm746, %v2539, 0.0
      %2546 = vadd.xlane.f32.xlu0 %v2545
      %v2547 = vpop.xlane.xlu0 %2546
      %v2548 = vrcp.pop 32.0
      %v2549 = vmul.f32 %v2544, %v2548
      %v2550 = vmul.f32 %v2547, %v2548
      %v2551 = vsub.f32 %v2538, %v2549
      %v2552 = vsub.f32 %v2539, %v2550
      %v2553 = vmul.f32 %v2551, %v2551
      %v2554 = vmul.f32 %v2552, %v2552
      %v2555 = vsel %vm746, %v2553, 0.0
      %2556 = vadd.xlane.f32.xlu0 %v2555
      %v2557 = vpop.xlane.xlu0 %2556
      %v2558 = vsel %vm746, %v2554, 0.0
      %2559 = vadd.xlane.f32.xlu0 %v2558
      %v2560 = vpop.xlane.xlu0 %2559
      %v2561 = vmul.f32 %v2557, %v2548
      %v2562 = vmul.f32 %v2560, %v2548
      %v2563 = vadd.f32 %v2561, 1e-12
      %v2564 = vadd.f32 %v2562, 1e-12
      %v2565 = vrsqrt.pop %v2563
      %v2566 = vrsqrt.pop %v2564
      %v2567 = vmul.f32 %v2551, %v2565
      %v2568 = vmul.f32 %v2552, %v2566
      %v2570 = vlaneseq
      %v2571 = vshrl.u32 %v2570, 7
      %v2572 = vsub.s32 0, %v2571
      %v2573 = vrot.slane %v2540, %v2572
      %v2575 = vmul.f32 %v2567, %v2573
      %v2576 = vmul.f32 %v2568, %v2573
      %v2578 = vlaneseq
      %v2579 = vshrl.u32 %v2578, 7
      %v2580 = vsub.s32 0, %v2579
      %v2581 = vrot.slane %v2541, %v2580
      %v2583 = vadd.f32 %v2575, %v2581
      %v2584 = vadd.f32 %v2576, %v2581
      %v2585 = vld [vmem:[%s661] sm:$0xff]
      %v2586 = vld [vmem:[%s661 + $0x8] sm:$0xff]
      %v2587 = vld [vmem:[%s661 + $0x10] sm:$0xff]
      %v2588 = vld [vmem:[%s661 + $0x18] sm:$0xff]
      %v2589 = vld [vmem:[%s664] sm:$0x1]
      %v2591 = vlaneseq
      %v2592 = vshrl.u32 %v2591, 7
      %v2593 = vsub.s32 0, %v2592
      %v2594 = vrot.slane %v2589, %v2593
      %v2597 = vsel %vm746, %v2583, 0
      %v2600 = vsel %vm746, %v2584, 0
      %2602 = vmatprep.subr.mxu0 0.0
      %2603 = vmatpush1.msra.mxu0 %v2585
      %2604 = vmatprep.subr.mxu0 0.0
      %2605 = vmatpush1.msra.mxu0 %v2586
      %2606 = vmatprep.subr.mxu0 0.0
      %2607 = vmatpush1.msra.mxu0 %v2587
      %2608 = vmatprep.subr.mxu0 0.0
      %2609 = vmatpush1.msra.mxu0 %v2588
      %2610 = vmatprep.subr.mxu0 0.0
      %2611 = vmatpush1.msra.mxu0 0.0
      %2612 = vmatprep.subr.mxu0 0.0
      %2613 = vmatpush1.msra.mxu0 0.0
      %2614 = vmatprep.subr.mxu0 0.0
      %2615 = vmatpush1.msra.mxu0 0.0
      %2616 = vmatprep.subr.mxu0 0.0
      %2617 = vmatpush1.msra.mxu0 0.0
      %2618 = vmatprep.subr.mxu0 0.0
      %2619 = vmatpush1.msra.mxu0 0.0
      %2620 = vmatprep.subr.mxu0 0.0
      %2621 = vmatpush1.msra.mxu0 0.0
      %2622 = vmatprep.subr.mxu0 0.0
      %2623 = vmatpush1.msra.mxu0 0.0
      %2624 = vmatprep.subr.mxu0 0.0
      %2625 = vmatpush1.msra.mxu0 0.0
      %2626 = vmatprep.subr.mxu0 0.0
      %2627 = vmatpush1.msra.mxu0 0.0
      %2628 = vmatprep.subr.mxu0 0.0
      %2629 = vmatpush1.msra.mxu0 0.0
      %2630 = vmatprep.subr.mxu0 0.0
      %2631 = vmatpush1.msra.mxu0 0.0
      %2632 = vmatprep.subr.mxu0 0.0
      %2633 = vmatpush1.msra.mxu0 0.0
      %2634 = vmatprep.subr.mxu0 0.0
      %2635 = vmatpush1.msra.mxu0 0.0
      %2636 = vmatprep.subr.mxu0 0.0
      %2637 = vmatpush1.msra.mxu0 0.0
      %2638 = vmatprep.subr.mxu0 0.0
      %2639 = vmatpush1.msra.mxu0 0.0
      %2640 = vmatprep.subr.mxu0 0.0
      %2641 = vmatpush1.msra.mxu0 0.0
      %2642 = vmatprep.subr.mxu0 0.0
      %2643 = vmatpush1.msra.mxu0 0.0
      %2644 = vmatprep.subr.mxu0 0.0
      %2645 = vmatpush1.msra.mxu0 0.0
      %2646 = vmatprep.subr.mxu0 0.0
      %2647 = vmatpush1.msra.mxu0 0.0
      %2648 = vmatprep.subr.mxu0 0.0
      %2649 = vmatpush1.msra.mxu0 0.0
      %2650 = vmatprep.subr.mxu0 0.0
      %2651 = vmatpush1.msra.mxu0 0.0
      %2652 = vmatprep.subr.mxu0 0.0
      %2653 = vmatpush1.msra.mxu0 0.0
      %2654 = vmatprep.subr.mxu0 0.0
      %2655 = vmatpush1.msra.mxu0 0.0
      %2656 = vmatprep.subr.mxu0 0.0
      %2657 = vmatpush1.msra.mxu0 0.0
      %2658 = vmatprep.subr.mxu0 0.0
      %2659 = vmatpush1.msra.mxu0 0.0
      %2660 = vmatprep.subr.mxu0 0.0
      %2661 = vmatpush1.msra.mxu0 0.0
      %2662 = vmatprep.subr.mxu0 0.0
      %2663 = vmatpush1.msra.mxu0 0.0
      %2664 = vmatprep.subr.mxu0 0.0
      %2665 = vmatpush1.msra.mxu0 0.0
      %2666 = vmatprep.mubr.f32.mxu0 0.0
      %2667 = vmatmul.mubr.f32.gmra.mrb[0].mxu0 %v2597
      %v2668 = vpop.f32.mrb[0].mxu0
      %v2669 = vadd.f32 %v2594, %v2668
      %v2670 = vpop.f32.mrb[0].mxu0
      %2671 = vmatprep.mubr.f32.mxu0 0.0
      %2672 = vmatmul.mubr.f32.gmra.mrb[0].mxu0 %v2600
      %v2673 = vpop.f32.mrb[0].mxu0
      %v2674 = vadd.f32 %v2594, %v2673
      %v2675 = vpop.f32.mrb[0].mxu0
      %2676 = vdwg.mxu0
      %v2677 = vmul.f32 %v2669, %v2669
      %v2678 = vmul.f32 %v2674, %v2674
      %v2679 = vmul.f32 %v2669, %v2677
      %v2680 = vmul.f32 %v2674, %v2678
      %v2681 = vmul.f32 %v2679, 0.044715
      %v2682 = vmul.f32 %v2680, 0.044715
      %v2683 = vadd.f32 %v2669, %v2681
      %v2684 = vadd.f32 %v2674, %v2682
      %v2685 = vmul.f32 %v2683, 0.7978846
      %v2686 = vmul.f32 %v2684, 0.7978846
      %v2687 = vtanh.pop %v2685
      %v2688 = vtanh.pop %v2686
      %v2689 = vadd.f32 %v2687, 1.0
      %v2690 = vadd.f32 %v2688, 1.0
      %v2691 = vmul.f32 %v2689, 0.5
      %v2692 = vmul.f32 %v2690, 0.5
      %v2693 = vmul.f32 %v2669, %v2691
      %v2694 = vmul.f32 %v2674, %v2692
      %v2695 = vld [vmem:[%s669] sm:$0xff]
      %v2696 = vld [vmem:[%s669 + $0x8] sm:$0xff]
      %v2697 = vld [vmem:[%s669 + $0x10] sm:$0xff]
      %v2698 = vld [vmem:[%s669 + $0x18] sm:$0xff]
      %v2699 = vld [vmem:[%s669 + $0x20] sm:$0xff]
      %v2700 = vld [vmem:[%s669 + $0x28] sm:$0xff]
      %v2701 = vld [vmem:[%s669 + $0x30] sm:$0xff]
      %v2702 = vld [vmem:[%s669 + $0x38] sm:$0xff]
      %v2703 = vld [vmem:[%s672] sm:$0x1]
      %v2705 = vlaneseq
      %v2706 = vshrl.u32 %v2705, 7
      %v2707 = vsub.s32 0, %v2706
      %v2708 = vrot.slane %v2703, %v2707
      %vm2710 = vcmask 523264
      %v2712 = vsel %vm2710, %v2693, 0
      %v2715 = vsel %vm2710, %v2694, 0
      %2717 = vmatprep.subr.mxu0 0.0
      %2718 = vmatpush1.msra.mxu0 %v2695
      %2719 = vmatprep.subr.mxu0 0.0
      %2720 = vmatpush1.msra.mxu0 %v2696
      %2721 = vmatprep.subr.mxu0 0.0
      %2722 = vmatpush1.msra.mxu0 %v2697
      %2723 = vmatprep.subr.mxu0 0.0
      %2724 = vmatpush1.msra.mxu0 %v2698
      %2725 = vmatprep.subr.mxu0 0.0
      %2726 = vmatpush1.msra.mxu0 %v2699
      %2727 = vmatprep.subr.mxu0 0.0
      %2728 = vmatpush1.msra.mxu0 %v2700
      %2729 = vmatprep.subr.mxu0 0.0
      %2730 = vmatpush1.msra.mxu0 %v2701
      %2731 = vmatprep.subr.mxu0 0.0
      %2732 = vmatpush1.msra.mxu0 %v2702
      %2733 = vmatprep.subr.mxu0 0.0
      %2734 = vmatpush1.msra.mxu0 0.0
      %2735 = vmatprep.subr.mxu0 0.0
      %2736 = vmatpush1.msra.mxu0 0.0
      %2737 = vmatprep.subr.mxu0 0.0
      %2738 = vmatpush1.msra.mxu0 0.0
      %2739 = vmatprep.subr.mxu0 0.0
      %2740 = vmatpush1.msra.mxu0 0.0
      %2741 = vmatprep.subr.mxu0 0.0
      %2742 = vmatpush1.msra.mxu0 0.0
      %2743 = vmatprep.subr.mxu0 0.0
      %2744 = vmatpush1.msra.mxu0 0.0
      %2745 = vmatprep.subr.mxu0 0.0
      %2746 = vmatpush1.msra.mxu0 0.0
      %2747 = vmatprep.subr.mxu0 0.0
      %2748 = vmatpush1.msra.mxu0 0.0
      %2749 = vmatprep.subr.mxu0 0.0
      %2750 = vmatpush1.msra.mxu0 0.0
      %2751 = vmatprep.subr.mxu0 0.0
      %2752 = vmatpush1.msra.mxu0 0.0
      %2753 = vmatprep.subr.mxu0 0.0
      %2754 = vmatpush1.msra.mxu0 0.0
      %2755 = vmatprep.subr.mxu0 0.0
      %2756 = vmatpush1.msra.mxu0 0.0
      %2757 = vmatprep.subr.mxu0 0.0
      %2758 = vmatpush1.msra.mxu0 0.0
      %2759 = vmatprep.subr.mxu0 0.0
      %2760 = vmatpush1.msra.mxu0 0.0
      %2761 = vmatprep.subr.mxu0 0.0
      %2762 = vmatpush1.msra.mxu0 0.0
      %2763 = vmatprep.subr.mxu0 0.0
      %2764 = vmatpush1.msra.mxu0 0.0
      %2765 = vmatprep.subr.mxu0 0.0
      %2766 = vmatpush1.msra.mxu0 0.0
      %2767 = vmatprep.subr.mxu0 0.0
      %2768 = vmatpush1.msra.mxu0 0.0
      %2769 = vmatprep.subr.mxu0 0.0
      %2770 = vmatpush1.msra.mxu0 0.0
      %2771 = vmatprep.subr.mxu0 0.0
      %2772 = vmatpush1.msra.mxu0 0.0
      %2773 = vmatprep.subr.mxu0 0.0
      %2774 = vmatpush1.msra.mxu0 0.0
      %2775 = vmatprep.subr.mxu0 0.0
      %2776 = vmatpush1.msra.mxu0 0.0
      %2777 = vmatprep.subr.mxu0 0.0
      %2778 = vmatpush1.msra.mxu0 0.0
      %2779 = vmatprep.subr.mxu0 0.0
      %2780 = vmatpush1.msra.mxu0 0.0
      %2781 = vmatprep.mubr.f32.mxu0 0.0
      %2782 = vmatmul.mubr.f32.gmra.mrb[0].mxu0 %v2712
      %v2783 = vpop.f32.mrb[0].mxu0
      %v2784 = vadd.f32 %v2708, %v2783
      %v2785 = vpop.f32.mrb[0].mxu0
      %2786 = vmatprep.mubr.f32.mxu0 0.0
      %2787 = vmatmul.mubr.f32.gmra.mrb[0].mxu0 %v2715
      %v2788 = vpop.f32.mrb[0].mxu0
      %v2789 = vadd.f32 %v2708, %v2788
      %v2790 = vpop.f32.mrb[0].mxu0
      %2791 = vdwg.mxu0
      %v2792 = vadd.f32 %v2784, %v2583
      %v2793 = vadd.f32 %v2789, %v2584
      %v2794 = vld [vmem:[%s675] sm:$0x1]
      %v2795 = vld [vmem:[%s678] sm:$0x1]
      %v2796 = vsel %vm746, %v2792, 0.0
      %2797 = vadd.xlane.f32.xlu0 %v2796
      %v2798 = vpop.xlane.xlu0 %2797
      %v2799 = vsel %vm746, %v2793, 0.0
      %2800 = vadd.xlane.f32.xlu0 %v2799
      %v2801 = vpop.xlane.xlu0 %2800
      %v2802 = vmul.f32 %v2798, %v2548
      %v2803 = vmul.f32 %v2801, %v2548
      %v2804 = vsub.f32 %v2792, %v2802
      %v2805 = vsub.f32 %v2793, %v2803
      %v2806 = vmul.f32 %v2804, %v2804
      %v2807 = vmul.f32 %v2805, %v2805
      %v2808 = vsel %vm746, %v2806, 0.0
      %2809 = vadd.xlane.f32.xlu0 %v2808
      %v2810 = vpop.xlane.xlu0 %2809
      %v2811 = vsel %vm746, %v2807, 0.0
      %2812 = vadd.xlane.f32.xlu0 %v2811
      %v2813 = vpop.xlane.xlu0 %2812
      %v2814 = vmul.f32 %v2810, %v2548
      %v2815 = vmul.f32 %v2813, %v2548
      %v2816 = vadd.f32 %v2814, 1e-12
      %v2817 = vadd.f32 %v2815, 1e-12
      %v2818 = vrsqrt.pop %v2816
      %v2819 = vrsqrt.pop %v2817
      %v2820 = vmul.f32 %v2804, %v2818
      %v2821 = vmul.f32 %v2805, %v2819
      %v2823 = vlaneseq
      %v2824 = vshrl.u32 %v2823, 7
      %v2825 = vsub.s32 0, %v2824
      %v2826 = vrot.slane %v2794, %v2825
      %v2828 = vmul.f32 %v2820, %v2826
      %v2829 = vmul.f32 %v2821, %v2826
      %v2831 = vlaneseq
      %v2832 = vshrl.u32 %v2831, 7
      %v2833 = vsub.s32 0, %v2832
      %v2834 = vrot.slane %v2795, %v2833
      %v2836 = vadd.f32 %v2828, %v2834
      %v2837 = vadd.f32 %v2829, %v2834
      %2838 = vst.msk [vmem:[#allocation2] sm:$0xff] %vm746, %v2836
      %2839 = vst.msk [vmem:[#allocation2 + $0x8] sm:$0xff] %vm746, %v2837
      %p2840 = scmp.eq.s32.totalorder %s27, 1
      // Predicated region
      $region89: #{bert_classifier_forward.2} parent=83 // pred_check
        %p2841 = pneg %p2840
      $region90: #{bert_classifier_forward.2} parent=83 // pred_check_branch
        %2843 = sbr.rel (%p2841) target = $region92
      $region91: #{bert_classifier_forward.2} parent=83 // pred_region
        %2844 = vst.msk [vmem:[%s16] sm:$0xff] %vm746, %v2836
        %2845 = vst.msk [vmem:[%s16 + $0x8] sm:$0xff] %vm746, %v2837
      $region92: #{bert_classifier_forward.2} parent=83 // pred_fallthru
        _
      // Predicated region
      $region93: #{bert_classifier_forward.2} parent=83 // pred_check
        %p2846 = pneg %p436
      $region94: #{bert_classifier_forward.2} parent=83 // pred_check_branch
        %2848 = sbr.rel (%p2846) target = $region96
      $region95: #{bert_classifier_forward.2} parent=83 // pred_region
        _
      $region96: #{bert_classifier_forward.2} parent=83 // pred_fallthru
        _
      // Predicated region
      $region97: #{bert_classifier_forward.2} parent=83 // pred_check
        %p2849 = pneg %p436
      $region98: #{bert_classifier_forward.2} parent=83 // pred_check_branch
        %2851 = sbr.rel (%p2849) target = $region100
      $region99: #{bert_classifier_forward.2} parent=83 // pred_region
        _
      $region100: #{bert_classifier_forward.2} parent=83 // pred_fallthru
        _
    $region84: #{bert_classifier_forward.2} parent=5 // pred_fallthru
      _
    %p2852 = scmp.le.s32.totalorder 2, %s22
    // Predicated region
    $region101: #{bert_classifier_forward.2} parent=5 // pred_check
      %p2853 = pneg %p2852
    $region102: #{bert_classifier_forward.2} parent=5 // pred_check_branch
      %2855 = sbr.rel (%p2853) target = $region104
    $region103: #{bert_classifier_forward.2} parent=5 // pred_region
      %s2856 = ssub.s32 %s22, 2
    $region104: #{bert_classifier_forward.2} parent=5 // pred_fallthru
      _
  $region6: #{bert_classifier_forward.2} parent=0 // loop_footer
    %s26 = sadd.s32 1, %s22
  $region7: #{bert_classifier_forward.2} parent=0 // loop_footer_branch
    %21 = sbr.rel target = $region3
  $region8: #{bert_classifier_forward.2} parent=0 // loop_exit
    _

</llo_original>
